<compile_context>
chip_gen: v6e
topology: v6e:2x2x1
jax: 0.10.0
libtpu: 0.0.40
codegen_flags: <defaults>
</compile_context>

<pallas_src>
import numpy as np
import jax
import jax.numpy as jnp
from jax.experimental import pallas as pl
from jax.experimental.pallas import tpu as pltpu

WINDOW_SIZES = [4, 8, 10, 12]
F3 = 32                                    # conv-stack features per net (32 ch x len 1)
F3_ALL = F3 * len(WINDOW_SIZES)            # packed conv feature width (= 128, lane dense)


# ---------------------------------------------------------------------------
# Deterministic parameter construction (PyTorch Conv1d / Linear default init).
# ---------------------------------------------------------------------------
def _uniform(rng, shape, fan_in):
    bound = 1.0 / np.sqrt(fan_in)
    return rng.uniform(-bound, bound, size=shape).astype(np.float32)


def make_conv_params(rng, c_in, c_out, k=3):
    return _uniform(rng, (c_out, c_in, k), c_in * k), _uniform(rng, (c_out,), c_in * k)


def make_linear_params(rng, d_in, d_out):
    return _uniform(rng, (d_out, d_in), d_in), _uniform(rng, (d_out,), d_in)


# ---------------------------------------------------------------------------
# Offline lowering helpers (flat feature layout is channel-major: idx = c * L + t).
# ---------------------------------------------------------------------------
def conv1d_dense(w, l_in, padding):
    """Dense D so that flat_out = flat_in @ D reproduces Conv1d (stride=1, zero pad)."""
    c_out, c_in, k = w.shape
    l_out = l_in + 2 * padding - (k - 1)
    D = np.zeros((c_in * l_in, c_out * l_out), np.float64)
    for co in range(c_out):
        for ci in range(c_in):
            for u in range(l_out):
                for kk in range(k):
                    t = u + kk - padding
                    if 0 <= t < l_in:
                        D[ci * l_in + t, co * l_out + u] += w[co, ci, kk]
    return D, l_out


def pool_select(c, l):
    """Even/odd column selections implementing MaxPool1d(2, stride=2)."""
    lp = l // 2
    se = np.zeros((c * l, c * lp), np.float64)
    so = np.zeros((c * l, c * lp), np.float64)
    for ch in range(c):
        for j in range(lp):
            se[ch * l + 2 * j, ch * lp + j] = 1.0
            so[ch * l + 2 * j + 1, ch * lp + j] = 1.0
    return se, so, lp


def conv_stage(w, b, l_in, padding, pool):
    """-> (W_even, W_odd | None, bias_row, l_out).
    MaxPool commutes with the per-channel bias, so bias is added after the max."""
    D, l_out = conv1d_dense(w, l_in, padding)
    c_out = w.shape[0]
    if pool:
        se, so, lp = pool_select(c_out, l_out)
        we, wo, l_fin = D @ se, D @ so, lp
    else:
        we, wo, l_fin = D, None, l_out
    bias = np.repeat(b.astype(np.float64), l_fin)[None, :]
    return we, wo, bias, l_fin


def block_diag(blocks):
    rows = sum(b.shape[0] for b in blocks)
    cols = sum(b.shape[1] for b in blocks)
    out = np.zeros((rows, cols), np.float64)
    r = c = 0
    for b in blocks:
        out[r:r + b.shape[0], c:c + b.shape[1]] = b
        r += b.shape[0]
        c += b.shape[1]
    return out


# ---------------------------------------------------------------------------
# Build raw (PyTorch-style) params + packed / pre-composed matrices for the kernel.
# ---------------------------------------------------------------------------
def build_packed_params(L, M, seed=0):
    rng = np.random.default_rng(seed)
    raw = []
    for win in WINDOW_SIZES:
        assert 4 <= win < L, "lowering assumes 4 <= window_size < L"
        raw.append(dict(
            win=win,
            c1=make_conv_params(rng, 1, 8), c2=make_conv_params(rng, 8, 16),
            c3=make_conv_params(rng, 16, 32), fc=make_linear_params(rng, 64, win),
            m1=make_conv_params(rng, 1, 16), m2=make_conv_params(rng, 16, 32),
            m3=make_conv_params(rng, 32, 64), mfc=make_linear_params(rng, 64, 32)))

    n_pos_max = L - min(WINDOW_SIZES)

    c1e, c1o, cb1 = [], [], []
    c2e, c2o, cb2 = [], [], []
    c3e, c3o, cb3 = [], [], []
    m1e, m1o, mb1 = [], [], []
    m2e, m2o, mb2 = [], [], []
    m3w, mb3 = [], []
    mfw, mfb = [], []
    gm_rows, g_blocks = [], []
    bias_row = np.zeros((1, L), np.float64)

    for net in raw:
        win = net['win']

        # --- window conv stack: Conv(pad=2)+Pool, Conv(pad=1)+Pool, Conv(pad=1)[+Pool] ---
        w, b = net['c1']; e, o, br, l = conv_stage(w, b, win, 2, True)
        c1e.append(e); c1o.append(o); cb1.append(br)
        w, b = net['c2']; e, o, br, l = conv_stage(w, b, l, 1, True)
        c2e.append(e); c2o.append(o); cb2.append(br)
        w, b = net['c3']; e, o, br, l = conv_stage(w, b, l, 1, win >= 6)
        if o is None:          # no pool (win < 6): duplicate block so the shared max is a no-op
            o = e
        c3e.append(e); c3o.append(o); cb3.append(br)
        assert 32 * l == F3, "conv stack must reduce the window to length 1"

        # --- metrics encoder: Conv+Pool, Conv+Pool, Conv (no pool), Linear(64, 32) ---
        w, b = net['m1']; e, o, br, l = conv_stage(w, b, M, 1, True)
        m1e.append(e); m1o.append(o); mb1.append(br)
        w, b = net['m2']; e, o, br, l = conv_stage(w, b, l, 1, True)
        m2e.append(e); m2o.append(o); mb2.append(br)
        w, b = net['m3']; e, _, br, l = conv_stage(w, b, l, 1, False)
        m3w.append(e); mb3.append(br)
        assert 64 * l == 64, "metrics length must reduce to 1 (requires 4 <= M <= 7)"
        lw, lb = net['mfc']
        mfw.append(lw.T.astype(np.float64)); mfb.append(lb.astype(np.float64)[None, :])

        # --- pre-compose Linear(64, win) with overlap-add / coverage norm / (1/4) avg ---
        n_pos = L - win                                   # reference: range(win//2, L-win//2)
        A = np.zeros((n_pos * win, L), np.float64)
        cov = np.zeros((L,), np.float64)
        for n in range(n_pos):
            for k in range(win):
                A[n * win + k, n + k] = 1.0
                cov[n + k] += 1.0
        inv = np.where(cov > 0, 1.0 / np.maximum(cov, 1.0), 0.0)
        A *= inv[None, :] / float(len(WINDOW_SIZES))
        A_sum = A.reshape(n_pos, win, L).sum(axis=0)      # (win, L)

        fw, fb = net['fc']                                # (win, 64), (win,)
        wc = fw[:, :F3].astype(np.float64)                # conv-feature half
        wm = fw[:, F3:].astype(np.float64)                # metrics-feature half
        gm_rows.append(wm.T @ A_sum)                      # (32, L)
        bias_row += fb.astype(np.float64)[None, :] @ A_sum
        gj = np.zeros((n_pos_max, F3, L), np.float64)
        for n in range(n_pos):                            # rows for n >= n_pos stay 0
            gj[n] = wc.T @ A[n * win:(n + 1) * win, :]
        g_blocks.append(gj)

    g_all = np.concatenate(g_blocks, axis=1)              # (n_pos_max, 128, L)
    packed = (
        block_diag(c1e), block_diag(c1o), np.hstack(cb1),
        block_diag(c2e), block_diag(c2o), np.hstack(cb2),
        block_diag(c3e), block_diag(c3o), np.hstack(cb3),
        g_all.reshape(n_pos_max * F3_ALL, L),
        np.hstack(m1e), np.hstack(m1o), np.hstack(mb1),    # shared metrics input -> hstack
        block_diag(m2e), block_diag(m2o), np.hstack(mb2),
        block_diag(m3w), np.hstack(mb3),
        block_diag(mfw), np.hstack(mfb),
        np.vstack(gm_rows),                                # (128, L)
        bias_row,                                          # (1, L)
    )
    packed = tuple(np.ascontiguousarray(p, dtype=np.float32) for p in packed)
    return raw, packed, n_pos_max


# ---------------------------------------------------------------------------
# The fused Pallas kernel: whole Combined_Net forward in one launch.
# ---------------------------------------------------------------------------
def make_kernel(batch, n_pos_max):
    def kernel(xw_ref, xm_ref,
               c1e_ref, c1o_ref, cb1_ref, c2e_ref, c2o_ref, cb2_ref,
               c3e_ref, c3o_ref, cb3_ref, g_ref,
               m1e_ref, m1o_ref, mb1_ref, m2e_ref, m2o_ref, mb2_ref,
               m3_ref, mb3_ref, mfw_ref, mfb_ref, gm_ref,
               brow_ref, out_ref):
        f32 = jnp.float32

        def stage(x, we_ref, wo_ref, b_ref):
            # Conv1d -> MaxPool1d(2,2): max of even/odd column-selected matmuls, then bias.
            e = jnp.dot(x, we_ref[...], preferred_element_type=f32)
            o = jnp.dot(x, wo_ref[...], preferred_element_type=f32)
            return jnp.maximum(e, o) + b_ref[...]

        # ---- per-window conv stacks: 4 nets block-diagonal, rows = pos * batch + b ----
        xw = xw_ref[...]
        h = jnp.maximum(stage(xw, c1e_ref, c1o_ref, cb1_ref), 0.0)    # ReLU
        h = jnp.maximum(stage(h, c2e_ref, c2o_ref, cb2_ref), 0.0)     # ReLU
        h3 = jax.nn.sigmoid(stage(h, c3e_ref, c3o_ref, cb3_ref))      # (batch*n_pos_max, 128)

        # ---- metrics encoders: 4 nets, shared input, block-diagonal weights ----
        xm = xm_ref[...]
        m = jnp.maximum(stage(xm, m1e_ref, m1o_ref, mb1_ref), 0.0)
        m = jnp.maximum(stage(m, m2e_ref, m2o_ref, mb2_ref), 0.0)
        m = jax.nn.sigmoid(jnp.dot(m, m3_ref[...], preferred_element_type=f32)
                           + mb3_ref[...])                            # stage 3: no pool
        m_enc = jnp.dot(m, mfw_ref[...], preferred_element_type=f32) + mfb_ref[...]

        # ---- pre-composed fc + overlap-add + coverage norm + 1/4 averaging ----
        acc = jnp.dot(m_enc, gm_ref[...], preferred_element_type=f32) + brow_ref[...]
        for n in range(n_pos_max):        # small static unroll (n_pos_max = L - min(win));
            acc = acc + jnp.dot(h3[n * batch:(n + 1) * batch, :],      # g rows are 128-aligned
                                g_ref[n * F3_ALL:(n + 1) * F3_ALL, :],
                                preferred_element_type=f32)
        out_ref[...] = acc                                             # single (B, L) store

    return kernel


def build_forward(packed, L, batch, n_pos_max):
    weights = tuple(jnp.asarray(w) for w in packed)
    kernel = make_kernel(batch, n_pos_max)

    # Combined window-gather index for ALL nets: one constant-index gather in the XLA
    # wrapper instead of 4 gathers + concat + masking.  Rows for positions past a net's
    # last valid window read clamped (finite) data; their contribution is exactly zeroed
    # by the all-zero rows of the pre-composed G matrix, so no validity masking needed.
    idx_blocks = []
    for win in WINDOW_SIZES:
        idx_blocks.append(np.minimum(
            np.arange(n_pos_max)[:, None] + np.arange(win)[None, :], L - 1))
    gather_idx = jnp.asarray(np.concatenate(idx_blocks, axis=1), dtype=jnp.int32)

    def vmem():
        return pl.BlockSpec(memory_space=pltpu.MemorySpace.VMEM)

    call = pl.pallas_call(
        kernel,
        out_shape=jax.ShapeDtypeStruct((batch, L), jnp.float32),
        in_specs=[vmem() for _ in range(2 + len(weights))],
        out_specs=vmem(),
    )

    @jax.jit
    def forward(x, metrics):
        # Gather all sliding windows of all nets into one packed operand:
        # rows = pos * B + b, columns = per-net window blocks.
        x1 = x[:, 0, :].astype(jnp.float32)                            # (B, L)
        wnd = x1[:, gather_idx]                                        # (B, n_pos_max, sum(win))
        xw = jnp.transpose(wnd, (1, 0, 2)).reshape(n_pos_max * batch, -1)
        return call(xw, metrics.astype(jnp.float32), *weights)

    return forward


# ---------------------------------------------------------------------------
# Float64 NumPy reference of the original PyTorch module (eval mode) for validation.
# ---------------------------------------------------------------------------
def _conv1d_ref(x, w, b, padding):
    bn, c_in, l_in = x.shape
    c_out, _, k = w.shape
    l_out = l_in + 2 * padding - (k - 1)
    xp = np.pad(x, ((0, 0), (0, 0), (padding, padding)))
    out = np.zeros((bn, c_out, l_out))
    for u in range(l_out):
        out[:, :, u] = np.einsum('bck,ock->bo', xp[:, :, u:u + k], w) + b
    return out


def _maxpool_ref(x):
    l2 = (x.shape[2] // 2) * 2
    return np.maximum(x[:, :, 0:l2:2], x[:, :, 1:l2:2])


def _relu(x):
    return np.maximum(x, 0.0)


def _sigmoid(x):
    return 1.0 / (1.0 + np.exp(-x))


def reference_forward(x, metrics, raw_nets, L):
    x = np.asarray(x, np.float64)
    metrics = np.asarray(metrics, np.float64)
    bn = x.shape[0]
    m3d = metrics[:, None, :]                 # Combined_Net: metrics.unsqueeze(1) -> (B,1,M)
    out = np.zeros((bn, L))
    for net in raw_nets:
        win = net['win']
        (w1, b1), (w2, b2), (w3, b3) = net['c1'], net['c2'], net['c3']
        fw, fb = net['fc']
        (q1, p1), (q2, p2), (q3, p3) = net['m1'], net['m2'], net['m3']
        mw, mb = net['mfc']
        # MetricsEncoder (the two permutes cancel: conv input is (B, 1, M)); dropout = id.
        h = _relu(_maxpool_ref(_conv1d_ref(m3d, q1, p1, 1)))
        h = _relu(_maxpool_ref(_conv1d_ref(h, q2, p2, 1)))
        h = _sigmoid(_conv1d_ref(h, q3, p3, 1))
        m_enc = h.reshape(bn, -1) @ mw.T + mb
        collection = np.zeros(L)
        out_win = np.zeros((bn, L))
        for i in range(win // 2, L - win // 2):
            s = i - win // 2
            collection[s:s + win] += 1.0
            xi = x[:, :, s:s + win]
            h1 = _relu(_maxpool_ref(_conv1d_ref(xi, w1, b1, 2)))
            h2 = _relu(_maxpool_ref(_conv1d_ref(h1, w2, b2, 1)))
            h3 = _conv1d_ref(h2, w3, b3, 1)
            if win >= 6:
                h3 = _maxpool_ref(h3)
            h3 = _sigmoid(h3)
            feat = np.concatenate([h3.reshape(bn, -1), m_enc], axis=1)
            pred = feat @ fw.T + fb
            out_win[:, s:s + win] += pred
        mask = collection != 0
        out_win[:, mask] /= collection[mask]
        out += out_win / float(len(WINDOW_SIZES))
    return out


# ---------------------------------------------------------------------------
if __name__ == "__main__":
    B, L, M = 2, 16, 4          # x: (B, 1, L) NCW with 1 channel; metrics: (B, M)
    key = jax.random.PRNGKey(0)
    kx, km = jax.random.split(key)
    x = jax.random.normal(kx, (B, 1, L), dtype=jnp.float32)
    metrics = jax.random.normal(km, (B, M), dtype=jnp.float32)

    raw, packed, n_pos_max = build_packed_params(L, M)
    forward = build_forward(packed, L, B, n_pos_max)

    out = jax.block_until_ready(forward(x, metrics))
    assert out.shape == (B, L) and out.dtype == jnp.float32

    ref = reference_forward(np.asarray(x), np.asarray(metrics), raw, L)
    np.testing.assert_allclose(np.asarray(out), ref, rtol=2e-2, atol=2e-2)
    print("KERNEL_OK")
</pallas_src>

<mosaic_0001>
module attributes {stable_mosaic.version = 11 : i64} {
  func.func @kernel(%arg0: memref<24x34xf32, #tpu.memory_space<vmem>>, %arg1: memref<2x4xf32, #tpu.memory_space<vmem>>, %arg2: memref<34x168xf32, #tpu.memory_space<vmem>>, %arg3: memref<34x168xf32, #tpu.memory_space<vmem>>, %arg4: memref<1x168xf32, #tpu.memory_space<vmem>>, %arg5: memref<168x144xf32, #tpu.memory_space<vmem>>, %arg6: memref<168x144xf32, #tpu.memory_space<vmem>>, %arg7: memref<1x144xf32, #tpu.memory_space<vmem>>, %arg8: memref<144x128xf32, #tpu.memory_space<vmem>>, %arg9: memref<144x128xf32, #tpu.memory_space<vmem>>, %arg10: memref<1x128xf32, #tpu.memory_space<vmem>>, %arg11: memref<1536x16xf32, #tpu.memory_space<vmem>>, %arg12: memref<4x128xf32, #tpu.memory_space<vmem>>, %arg13: memref<4x128xf32, #tpu.memory_space<vmem>>, %arg14: memref<1x128xf32, #tpu.memory_space<vmem>>, %arg15: memref<128x128xf32, #tpu.memory_space<vmem>>, %arg16: memref<128x128xf32, #tpu.memory_space<vmem>>, %arg17: memref<1x128xf32, #tpu.memory_space<vmem>>, %arg18: memref<128x256xf32, #tpu.memory_space<vmem>>, %arg19: memref<1x256xf32, #tpu.memory_space<vmem>>, %arg20: memref<256x128xf32, #tpu.memory_space<vmem>>, %arg21: memref<1x128xf32, #tpu.memory_space<vmem>>, %arg22: memref<128x16xf32, #tpu.memory_space<vmem>>, %arg23: memref<1x16xf32, #tpu.memory_space<vmem>>, %arg24: memref<2x16xf32, #tpu.memory_space<vmem>>) attributes {dimension_semantics = [], scalar_prefetch = 0 : i64, scratch_operands = 0 : i64, tpu.core_type = #tpu.core_type<tc>} {
    %c0 = arith.constant 0 : index
    %c0_0 = arith.constant 0 : index
    %0 = vector.load %arg0[%c0, %c0_0] : memref<24x34xf32, #tpu.memory_space<vmem>>, vector<24x34xf32>
    %c0_1 = arith.constant 0 : index
    %c0_2 = arith.constant 0 : index
    %1 = vector.load %arg2[%c0_1, %c0_2] : memref<34x168xf32, #tpu.memory_space<vmem>>, vector<34x168xf32>
    %cst = arith.constant dense<0.000000e+00> : vector<24x168xf32>
    %2 = tpu.matmul %0, %1, %cst {dimension_numbers = #tpu.dot_dimension_numbers<[1], [0], [0], [1], [0, 0, 1, 1], [], []>} : vector<24x34xf32>, vector<34x168xf32>, vector<24x168xf32> -> vector<24x168xf32>
    %c0_3 = arith.constant 0 : index
    %c0_4 = arith.constant 0 : index
    %3 = vector.load %arg3[%c0_3, %c0_4] : memref<34x168xf32, #tpu.memory_space<vmem>>, vector<34x168xf32>
    %cst_5 = arith.constant dense<0.000000e+00> : vector<24x168xf32>
    %4 = tpu.matmul %0, %3, %cst_5 {dimension_numbers = #tpu.dot_dimension_numbers<[1], [0], [0], [1], [0, 0, 1, 1], [], []>} : vector<24x34xf32>, vector<34x168xf32>, vector<24x168xf32> -> vector<24x168xf32>
    %5 = arith.maximumf %2, %4 : vector<24x168xf32>
    %c0_6 = arith.constant 0 : index
    %c0_7 = arith.constant 0 : index
    %6 = vector.load %arg4[%c0_6, %c0_7] : memref<1x168xf32, #tpu.memory_space<vmem>>, vector<1x168xf32>
    %7 = vector.broadcast %6 : vector<1x168xf32> to vector<24x168xf32>
    %8 = arith.addf %5, %7 : vector<24x168xf32>
    %cst_8 = arith.constant 0.000000e+00 : f32
    %9 = vector.broadcast %cst_8 : f32 to vector<24x168xf32>
    %10 = arith.maximumf %8, %9 : vector<24x168xf32>
    %c0_9 = arith.constant 0 : index
    %c0_10 = arith.constant 0 : index
    %11 = vector.load %arg5[%c0_9, %c0_10] : memref<168x144xf32, #tpu.memory_space<vmem>>, vector<168x144xf32>
    %cst_11 = arith.constant dense<0.000000e+00> : vector<24x144xf32>
    %12 = tpu.matmul %10, %11, %cst_11 {dimension_numbers = #tpu.dot_dimension_numbers<[1], [0], [0], [1], [0, 0, 1, 1], [], []>} : vector<24x168xf32>, vector<168x144xf32>, vector<24x144xf32> -> vector<24x144xf32>
    %c0_12 = arith.constant 0 : index
    %c0_13 = arith.constant 0 : index
    %13 = vector.load %arg6[%c0_12, %c0_13] : memref<168x144xf32, #tpu.memory_space<vmem>>, vector<168x144xf32>
    %cst_14 = arith.constant dense<0.000000e+00> : vector<24x144xf32>
    %14 = tpu.matmul %10, %13, %cst_14 {dimension_numbers = #tpu.dot_dimension_numbers<[1], [0], [0], [1], [0, 0, 1, 1], [], []>} : vector<24x168xf32>, vector<168x144xf32>, vector<24x144xf32> -> vector<24x144xf32>
    %15 = arith.maximumf %12, %14 : vector<24x144xf32>
    %c0_15 = arith.constant 0 : index
    %c0_16 = arith.constant 0 : index
    %16 = vector.load %arg7[%c0_15, %c0_16] : memref<1x144xf32, #tpu.memory_space<vmem>>, vector<1x144xf32>
    %17 = vector.broadcast %16 : vector<1x144xf32> to vector<24x144xf32>
    %18 = arith.addf %15, %17 : vector<24x144xf32>
    %cst_17 = arith.constant 0.000000e+00 : f32
    %19 = vector.broadcast %cst_17 : f32 to vector<24x144xf32>
    %20 = arith.maximumf %18, %19 : vector<24x144xf32>
    %c0_18 = arith.constant 0 : index
    %c0_19 = arith.constant 0 : index
    %21 = vector.load %arg8[%c0_18, %c0_19] : memref<144x128xf32, #tpu.memory_space<vmem>>, vector<144x128xf32>
    %cst_20 = arith.constant dense<0.000000e+00> : vector<24x128xf32>
    %22 = tpu.matmul %20, %21, %cst_20 {dimension_numbers = #tpu.dot_dimension_numbers<[1], [0], [0], [1], [0, 0, 1, 1], [], []>} : vector<24x144xf32>, vector<144x128xf32>, vector<24x128xf32> -> vector<24x128xf32>
    %c0_21 = arith.constant 0 : index
    %c0_22 = arith.constant 0 : index
    %23 = vector.load %arg9[%c0_21, %c0_22] : memref<144x128xf32, #tpu.memory_space<vmem>>, vector<144x128xf32>
    %cst_23 = arith.constant dense<0.000000e+00> : vector<24x128xf32>
    %24 = tpu.matmul %20, %23, %cst_23 {dimension_numbers = #tpu.dot_dimension_numbers<[1], [0], [0], [1], [0, 0, 1, 1], [], []>} : vector<24x144xf32>, vector<144x128xf32>, vector<24x128xf32> -> vector<24x128xf32>
    %25 = arith.maximumf %22, %24 : vector<24x128xf32>
    %c0_24 = arith.constant 0 : index
    %c0_25 = arith.constant 0 : index
    %26 = vector.load %arg10[%c0_24, %c0_25] : memref<1x128xf32, #tpu.memory_space<vmem>>, vector<1x128xf32>
    %27 = vector.broadcast %26 : vector<1x128xf32> to vector<24x128xf32>
    %28 = arith.addf %25, %27 : vector<24x128xf32>
    %29 = arith.negf %28 : vector<24x128xf32>
    %30 = math.exp %29 : vector<24x128xf32>
    %cst_26 = arith.constant 1.000000e+00 : f32
    %31 = vector.broadcast %cst_26 : f32 to vector<24x128xf32>
    %32 = arith.addf %31, %30 : vector<24x128xf32>
    %33 = arith.divf %31, %32 : vector<24x128xf32>
    %c0_27 = arith.constant 0 : index
    %c0_28 = arith.constant 0 : index
    %34 = vector.load %arg1[%c0_27, %c0_28] : memref<2x4xf32, #tpu.memory_space<vmem>>, vector<2x4xf32>
    %c0_29 = arith.constant 0 : index
    %c0_30 = arith.constant 0 : index
    %35 = vector.load %arg12[%c0_29, %c0_30] : memref<4x128xf32, #tpu.memory_space<vmem>>, vector<4x128xf32>
    %cst_31 = arith.constant dense<0.000000e+00> : vector<2x128xf32>
    %36 = tpu.matmul %34, %35, %cst_31 {dimension_numbers = #tpu.dot_dimension_numbers<[1], [0], [0], [1], [0, 0, 1, 1], [], []>} : vector<2x4xf32>, vector<4x128xf32>, vector<2x128xf32> -> vector<2x128xf32>
    %c0_32 = arith.constant 0 : index
    %c0_33 = arith.constant 0 : index
    %37 = vector.load %arg13[%c0_32, %c0_33] : memref<4x128xf32, #tpu.memory_space<vmem>>, vector<4x128xf32>
    %cst_34 = arith.constant dense<0.000000e+00> : vector<2x128xf32>
    %38 = tpu.matmul %34, %37, %cst_34 {dimension_numbers = #tpu.dot_dimension_numbers<[1], [0], [0], [1], [0, 0, 1, 1], [], []>} : vector<2x4xf32>, vector<4x128xf32>, vector<2x128xf32> -> vector<2x128xf32>
    %39 = arith.maximumf %36, %38 : vector<2x128xf32>
    %c0_35 = arith.constant 0 : index
    %c0_36 = arith.constant 0 : index
    %40 = vector.load %arg14[%c0_35, %c0_36] : memref<1x128xf32, #tpu.memory_space<vmem>>, vector<1x128xf32>
    %41 = vector.broadcast %40 : vector<1x128xf32> to vector<2x128xf32>
    %42 = arith.addf %39, %41 : vector<2x128xf32>
    %cst_37 = arith.constant 0.000000e+00 : f32
    %43 = vector.broadcast %cst_37 : f32 to vector<2x128xf32>
    %44 = arith.maximumf %42, %43 : vector<2x128xf32>
    %c0_38 = arith.constant 0 : index
    %c0_39 = arith.constant 0 : index
    %45 = vector.load %arg15[%c0_38, %c0_39] : memref<128x128xf32, #tpu.memory_space<vmem>>, vector<128x128xf32>
    %cst_40 = arith.constant dense<0.000000e+00> : vector<2x128xf32>
    %46 = tpu.matmul %44, %45, %cst_40 {dimension_numbers = #tpu.dot_dimension_numbers<[1], [0], [0], [1], [0, 0, 1, 1], [], []>} : vector<2x128xf32>, vector<128x128xf32>, vector<2x128xf32> -> vector<2x128xf32>
    %c0_41 = arith.constant 0 : index
    %c0_42 = arith.constant 0 : index
    %47 = vector.load %arg16[%c0_41, %c0_42] : memref<128x128xf32, #tpu.memory_space<vmem>>, vector<128x128xf32>
    %cst_43 = arith.constant dense<0.000000e+00> : vector<2x128xf32>
    %48 = tpu.matmul %44, %47, %cst_43 {dimension_numbers = #tpu.dot_dimension_numbers<[1], [0], [0], [1], [0, 0, 1, 1], [], []>} : vector<2x128xf32>, vector<128x128xf32>, vector<2x128xf32> -> vector<2x128xf32>
    %49 = arith.maximumf %46, %48 : vector<2x128xf32>
    %c0_44 = arith.constant 0 : index
    %c0_45 = arith.constant 0 : index
    %50 = vector.load %arg17[%c0_44, %c0_45] : memref<1x128xf32, #tpu.memory_space<vmem>>, vector<1x128xf32>
    %51 = vector.broadcast %50 : vector<1x128xf32> to vector<2x128xf32>
    %52 = arith.addf %49, %51 : vector<2x128xf32>
    %cst_46 = arith.constant 0.000000e+00 : f32
    %53 = vector.broadcast %cst_46 : f32 to vector<2x128xf32>
    %54 = arith.maximumf %52, %53 : vector<2x128xf32>
    %c0_47 = arith.constant 0 : index
    %c0_48 = arith.constant 0 : index
    %55 = vector.load %arg18[%c0_47, %c0_48] : memref<128x256xf32, #tpu.memory_space<vmem>>, vector<128x256xf32>
    %cst_49 = arith.constant dense<0.000000e+00> : vector<2x256xf32>
    %56 = tpu.matmul %54, %55, %cst_49 {dimension_numbers = #tpu.dot_dimension_numbers<[1], [0], [0], [1], [0, 0, 1, 1], [], []>} : vector<2x128xf32>, vector<128x256xf32>, vector<2x256xf32> -> vector<2x256xf32>
    %c0_50 = arith.constant 0 : index
    %c0_51 = arith.constant 0 : index
    %57 = vector.load %arg19[%c0_50, %c0_51] : memref<1x256xf32, #tpu.memory_space<vmem>>, vector<1x256xf32>
    %58 = vector.broadcast %57 : vector<1x256xf32> to vector<2x256xf32>
    %59 = arith.addf %56, %58 : vector<2x256xf32>
    %60 = arith.negf %59 : vector<2x256xf32>
    %61 = math.exp %60 : vector<2x256xf32>
    %cst_52 = arith.constant 1.000000e+00 : f32
    %62 = vector.broadcast %cst_52 : f32 to vector<2x256xf32>
    %63 = arith.addf %62, %61 : vector<2x256xf32>
    %64 = arith.divf %62, %63 : vector<2x256xf32>
    %c0_53 = arith.constant 0 : index
    %c0_54 = arith.constant 0 : index
    %65 = vector.load %arg20[%c0_53, %c0_54] : memref<256x128xf32, #tpu.memory_space<vmem>>, vector<256x128xf32>
    %cst_55 = arith.constant dense<0.000000e+00> : vector<2x128xf32>
    %66 = tpu.matmul %64, %65, %cst_55 {dimension_numbers = #tpu.dot_dimension_numbers<[1], [0], [0], [1], [0, 0, 1, 1], [], []>} : vector<2x256xf32>, vector<256x128xf32>, vector<2x128xf32> -> vector<2x128xf32>
    %c0_56 = arith.constant 0 : index
    %c0_57 = arith.constant 0 : index
    %67 = vector.load %arg21[%c0_56, %c0_57] : memref<1x128xf32, #tpu.memory_space<vmem>>, vector<1x128xf32>
    %68 = vector.broadcast %67 : vector<1x128xf32> to vector<2x128xf32>
    %69 = arith.addf %66, %68 : vector<2x128xf32>
    %c0_58 = arith.constant 0 : index
    %c0_59 = arith.constant 0 : index
    %70 = vector.load %arg22[%c0_58, %c0_59] : memref<128x16xf32, #tpu.memory_space<vmem>>, vector<128x16xf32>
    %cst_60 = arith.constant dense<0.000000e+00> : vector<2x16xf32>
    %71 = tpu.matmul %69, %70, %cst_60 {dimension_numbers = #tpu.dot_dimension_numbers<[1], [0], [0], [1], [0, 0, 1, 1], [], []>} : vector<2x128xf32>, vector<128x16xf32>, vector<2x16xf32> -> vector<2x16xf32>
    %c0_61 = arith.constant 0 : index
    %c0_62 = arith.constant 0 : index
    %72 = vector.load %arg23[%c0_61, %c0_62] : memref<1x16xf32, #tpu.memory_space<vmem>>, vector<1x16xf32>
    %73 = vector.broadcast %72 : vector<1x16xf32> to vector<2x16xf32>
    %74 = arith.addf %71, %73 : vector<2x16xf32>
    %75 = vector.extract_strided_slice %33 {offsets = [0, 0], sizes = [2, 128], strides = [1, 1]} : vector<24x128xf32> to vector<2x128xf32>
    %c0_63 = arith.constant 0 : index
    %c0_64 = arith.constant 0 : index
    %76 = vector.load %arg11[%c0_63, %c0_64] : memref<1536x16xf32, #tpu.memory_space<vmem>>, vector<128x16xf32>
    %cst_65 = arith.constant dense<0.000000e+00> : vector<2x16xf32>
    %77 = tpu.matmul %75, %76, %cst_65 {dimension_numbers = #tpu.dot_dimension_numbers<[1], [0], [0], [1], [0, 0, 1, 1], [], []>} : vector<2x128xf32>, vector<128x16xf32>, vector<2x16xf32> -> vector<2x16xf32>
    %78 = arith.addf %74, %77 : vector<2x16xf32>
    %79 = vector.extract_strided_slice %33 {offsets = [2, 0], sizes = [2, 128], strides = [1, 1]} : vector<24x128xf32> to vector<2x128xf32>
    %c128 = arith.constant 128 : index
    %c0_66 = arith.constant 0 : index
    %80 = vector.load %arg11[%c128, %c0_66] : memref<1536x16xf32, #tpu.memory_space<vmem>>, vector<128x16xf32>
    %cst_67 = arith.constant dense<0.000000e+00> : vector<2x16xf32>
    %81 = tpu.matmul %79, %80, %cst_67 {dimension_numbers = #tpu.dot_dimension_numbers<[1], [0], [0], [1], [0, 0, 1, 1], [], []>} : vector<2x128xf32>, vector<128x16xf32>, vector<2x16xf32> -> vector<2x16xf32>
    %82 = arith.addf %78, %81 : vector<2x16xf32>
    %83 = vector.extract_strided_slice %33 {offsets = [4, 0], sizes = [2, 128], strides = [1, 1]} : vector<24x128xf32> to vector<2x128xf32>
    %c256 = arith.constant 256 : index
    %c0_68 = arith.constant 0 : index
    %84 = vector.load %arg11[%c256, %c0_68] : memref<1536x16xf32, #tpu.memory_space<vmem>>, vector<128x16xf32>
    %cst_69 = arith.constant dense<0.000000e+00> : vector<2x16xf32>
    %85 = tpu.matmul %83, %84, %cst_69 {dimension_numbers = #tpu.dot_dimension_numbers<[1], [0], [0], [1], [0, 0, 1, 1], [], []>} : vector<2x128xf32>, vector<128x16xf32>, vector<2x16xf32> -> vector<2x16xf32>
    %86 = arith.addf %82, %85 : vector<2x16xf32>
    %87 = vector.extract_strided_slice %33 {offsets = [6, 0], sizes = [2, 128], strides = [1, 1]} : vector<24x128xf32> to vector<2x128xf32>
    %c384 = arith.constant 384 : index
    %c0_70 = arith.constant 0 : index
    %88 = vector.load %arg11[%c384, %c0_70] : memref<1536x16xf32, #tpu.memory_space<vmem>>, vector<128x16xf32>
    %cst_71 = arith.constant dense<0.000000e+00> : vector<2x16xf32>
    %89 = tpu.matmul %87, %88, %cst_71 {dimension_numbers = #tpu.dot_dimension_numbers<[1], [0], [0], [1], [0, 0, 1, 1], [], []>} : vector<2x128xf32>, vector<128x16xf32>, vector<2x16xf32> -> vector<2x16xf32>
    %90 = arith.addf %86, %89 : vector<2x16xf32>
    %91 = vector.extract_strided_slice %33 {offsets = [8, 0], sizes = [2, 128], strides = [1, 1]} : vector<24x128xf32> to vector<2x128xf32>
    %c512 = arith.constant 512 : index
    %c0_72 = arith.constant 0 : index
    %92 = vector.load %arg11[%c512, %c0_72] : memref<1536x16xf32, #tpu.memory_space<vmem>>, vector<128x16xf32>
    %cst_73 = arith.constant dense<0.000000e+00> : vector<2x16xf32>
    %93 = tpu.matmul %91, %92, %cst_73 {dimension_numbers = #tpu.dot_dimension_numbers<[1], [0], [0], [1], [0, 0, 1, 1], [], []>} : vector<2x128xf32>, vector<128x16xf32>, vector<2x16xf32> -> vector<2x16xf32>
    %94 = arith.addf %90, %93 : vector<2x16xf32>
    %95 = vector.extract_strided_slice %33 {offsets = [10, 0], sizes = [2, 128], strides = [1, 1]} : vector<24x128xf32> to vector<2x128xf32>
    %c640 = arith.constant 640 : index
    %c0_74 = arith.constant 0 : index
    %96 = vector.load %arg11[%c640, %c0_74] : memref<1536x16xf32, #tpu.memory_space<vmem>>, vector<128x16xf32>
    %cst_75 = arith.constant dense<0.000000e+00> : vector<2x16xf32>
    %97 = tpu.matmul %95, %96, %cst_75 {dimension_numbers = #tpu.dot_dimension_numbers<[1], [0], [0], [1], [0, 0, 1, 1], [], []>} : vector<2x128xf32>, vector<128x16xf32>, vector<2x16xf32> -> vector<2x16xf32>
    %98 = arith.addf %94, %97 : vector<2x16xf32>
    %99 = vector.extract_strided_slice %33 {offsets = [12, 0], sizes = [2, 128], strides = [1, 1]} : vector<24x128xf32> to vector<2x128xf32>
    %c768 = arith.constant 768 : index
    %c0_76 = arith.constant 0 : index
    %100 = vector.load %arg11[%c768, %c0_76] : memref<1536x16xf32, #tpu.memory_space<vmem>>, vector<128x16xf32>
    %cst_77 = arith.constant dense<0.000000e+00> : vector<2x16xf32>
    %101 = tpu.matmul %99, %100, %cst_77 {dimension_numbers = #tpu.dot_dimension_numbers<[1], [0], [0], [1], [0, 0, 1, 1], [], []>} : vector<2x128xf32>, vector<128x16xf32>, vector<2x16xf32> -> vector<2x16xf32>
    %102 = arith.addf %98, %101 : vector<2x16xf32>
    %103 = vector.extract_strided_slice %33 {offsets = [14, 0], sizes = [2, 128], strides = [1, 1]} : vector<24x128xf32> to vector<2x128xf32>
    %c896 = arith.constant 896 : index
    %c0_78 = arith.constant 0 : index
    %104 = vector.load %arg11[%c896, %c0_78] : memref<1536x16xf32, #tpu.memory_space<vmem>>, vector<128x16xf32>
    %cst_79 = arith.constant dense<0.000000e+00> : vector<2x16xf32>
    %105 = tpu.matmul %103, %104, %cst_79 {dimension_numbers = #tpu.dot_dimension_numbers<[1], [0], [0], [1], [0, 0, 1, 1], [], []>} : vector<2x128xf32>, vector<128x16xf32>, vector<2x16xf32> -> vector<2x16xf32>
    %106 = arith.addf %102, %105 : vector<2x16xf32>
    %107 = vector.extract_strided_slice %33 {offsets = [16, 0], sizes = [2, 128], strides = [1, 1]} : vector<24x128xf32> to vector<2x128xf32>
    %c1024 = arith.constant 1024 : index
    %c0_80 = arith.constant 0 : index
    %108 = vector.load %arg11[%c1024, %c0_80] : memref<1536x16xf32, #tpu.memory_space<vmem>>, vector<128x16xf32>
    %cst_81 = arith.constant dense<0.000000e+00> : vector<2x16xf32>
    %109 = tpu.matmul %107, %108, %cst_81 {dimension_numbers = #tpu.dot_dimension_numbers<[1], [0], [0], [1], [0, 0, 1, 1], [], []>} : vector<2x128xf32>, vector<128x16xf32>, vector<2x16xf32> -> vector<2x16xf32>
    %110 = arith.addf %106, %109 : vector<2x16xf32>
    %111 = vector.extract_strided_slice %33 {offsets = [18, 0], sizes = [2, 128], strides = [1, 1]} : vector<24x128xf32> to vector<2x128xf32>
    %c1152 = arith.constant 1152 : index
    %c0_82 = arith.constant 0 : index
    %112 = vector.load %arg11[%c1152, %c0_82] : memref<1536x16xf32, #tpu.memory_space<vmem>>, vector<128x16xf32>
    %cst_83 = arith.constant dense<0.000000e+00> : vector<2x16xf32>
    %113 = tpu.matmul %111, %112, %cst_83 {dimension_numbers = #tpu.dot_dimension_numbers<[1], [0], [0], [1], [0, 0, 1, 1], [], []>} : vector<2x128xf32>, vector<128x16xf32>, vector<2x16xf32> -> vector<2x16xf32>
    %114 = arith.addf %110, %113 : vector<2x16xf32>
    %115 = vector.extract_strided_slice %33 {offsets = [20, 0], sizes = [2, 128], strides = [1, 1]} : vector<24x128xf32> to vector<2x128xf32>
    %c1280 = arith.constant 1280 : index
    %c0_84 = arith.constant 0 : index
    %116 = vector.load %arg11[%c1280, %c0_84] : memref<1536x16xf32, #tpu.memory_space<vmem>>, vector<128x16xf32>
    %cst_85 = arith.constant dense<0.000000e+00> : vector<2x16xf32>
    %117 = tpu.matmul %115, %116, %cst_85 {dimension_numbers = #tpu.dot_dimension_numbers<[1], [0], [0], [1], [0, 0, 1, 1], [], []>} : vector<2x128xf32>, vector<128x16xf32>, vector<2x16xf32> -> vector<2x16xf32>
    %118 = arith.addf %114, %117 : vector<2x16xf32>
    %119 = vector.extract_strided_slice %33 {offsets = [22, 0], sizes = [2, 128], strides = [1, 1]} : vector<24x128xf32> to vector<2x128xf32>
    %c1408 = arith.constant 1408 : index
    %c0_86 = arith.constant 0 : index
    %120 = vector.load %arg11[%c1408, %c0_86] : memref<1536x16xf32, #tpu.memory_space<vmem>>, vector<128x16xf32>
    %cst_87 = arith.constant dense<0.000000e+00> : vector<2x16xf32>
    %121 = tpu.matmul %119, %120, %cst_87 {dimension_numbers = #tpu.dot_dimension_numbers<[1], [0], [0], [1], [0, 0, 1, 1], [], []>} : vector<2x128xf32>, vector<128x16xf32>, vector<2x16xf32> -> vector<2x16xf32>
    %122 = arith.addf %118, %121 : vector<2x16xf32>
    %c0_88 = arith.constant 0 : index
    %c0_89 = arith.constant 0 : index
    %123 = vector.load %arg24[%c0_88, %c0_89] : memref<2x16xf32, #tpu.memory_space<vmem>>, vector<2x16xf32>
    tpu.vector_store %arg24[%c0_88, %c0_89], %122 {strides = array<i32>} : memref<2x16xf32, #tpu.memory_space<vmem>>, vector<2x16xf32>,
    return
  }
}

</mosaic_0001>

<llo_original>
// kernel: forward.1
$region0: #{forward.1}
  #allocation0 [shape = 'u32[]', space=smem, size = 0x4, offset = 0x4, fixed_abs, tag = 'smem constant byte address 0x4 - core index']
  #allocation1 [shape = 'u32[144,128]{1,0:T(1,128)}', space=vmem, size = 0x12000, scoped, tag = 'internal scratch']
  %s0 = inlined_call_operand.vmem [shape: f32[24,34], index: 0, kind: input, shape index: {}]
  %s1 = inlined_call_operand.vmem [shape: f32[2,4], index: 1, kind: input, shape index: {}]
  %s2 = inlined_call_operand.hbm [shape: f32[34,168], index: 2, kind: input, shape index: {}]
  %s3 = inlined_call_operand.hbm [shape: f32[34,168], index: 3, kind: input, shape index: {}]
  %s4 = inlined_call_operand.vmem [shape: f32[1,168], index: 4, kind: input, shape index: {}]
  %s5 = inlined_call_operand.vmem [shape: f32[168,144], index: 5, kind: input, shape index: {}]
  %s6 = inlined_call_operand.vmem [shape: f32[168,144], index: 6, kind: input, shape index: {}]
  %s7 = inlined_call_operand.vmem [shape: f32[1,144], index: 7, kind: input, shape index: {}]
  %s8 = inlined_call_operand.hbm [shape: f32[144,128], index: 8, kind: input, shape index: {}]
  %s9 = inlined_call_operand.vmem [shape: f32[144,128], index: 9, kind: input, shape index: {}]
  %s10 = inlined_call_operand.vmem [shape: f32[1,128], index: 10, kind: input, shape index: {}]
  %s11 = inlined_call_operand.hbm [shape: f32[1536,16], index: 11, kind: input, shape index: {}]
  %s12 = inlined_call_operand.vmem [shape: f32[4,128], index: 12, kind: input, shape index: {}]
  %s13 = inlined_call_operand.vmem [shape: f32[4,128], index: 13, kind: input, shape index: {}]
  %s14 = inlined_call_operand.vmem [shape: f32[1,128], index: 14, kind: input, shape index: {}]
  %s15 = inlined_call_operand.hbm [shape: f32[128,128], index: 15, kind: input, shape index: {}]
  %s16 = inlined_call_operand.hbm [shape: f32[128,128], index: 16, kind: input, shape index: {}]
  %s17 = inlined_call_operand.vmem [shape: f32[1,128], index: 17, kind: input, shape index: {}]
  %s18 = inlined_call_operand.hbm [shape: f32[128,256], index: 18, kind: input, shape index: {}]
  %s19 = inlined_call_operand.vmem [shape: f32[1,256], index: 19, kind: input, shape index: {}]
  %s20 = inlined_call_operand.hbm [shape: f32[256,128], index: 20, kind: input, shape index: {}]
  %s21 = inlined_call_operand.vmem [shape: f32[1,128], index: 21, kind: input, shape index: {}]
  %s22 = inlined_call_operand.hbm [shape: f32[128,16], index: 22, kind: input, shape index: {}]
  %s23 = inlined_call_operand.vmem [shape: f32[1,16], index: 23, kind: input, shape index: {}]
  %s24 = inlined_call_operand.hbm [shape: f32[2,16], index: 24, kind: output, shape index: {}]
  %s25 = sld [smem:[#allocation0]]
  $region142: #{forward.1} parent=0
    _
  %s27 = ssub.s32 1, %s25
  %s28 = scalar_select 0, %s27, %s25
  $region1: #{forward.1} parent=0
    #allocation2 [shape = 'u8[40960]{0}', space=vmem, size = 0xa000, scoped, tag = 'input window, operand 2, single buffered']
    #allocation3 [shape = 's32[1]{0}', space=sflag, size = 0x4, scoped, tag = 'scoped memory for forward.1']
    #allocation4 [shape = 's32[1]{0}', space=sflag, size = 0x4, scoped, tag = 'scoped memory for forward.1']
    #allocation5 [shape = 'u8[40960]{0}', space=vmem, size = 0xa000, scoped, tag = 'input window, operand 3, single buffered']
    #allocation6 [shape = 's32[1]{0}', space=sflag, size = 0x4, scoped, tag = 'scoped memory for forward.1']
    #allocation7 [shape = 'u8[73728]{0}', space=vmem, size = 0x12000, scoped, tag = 'input window, operand 8, single buffered']
    #allocation8 [shape = 'u8[786432]{0}', space=vmem, size = 0xc0000, scoped, tag = 'input window, operand 11, single buffered']
    #allocation9 [shape = 's32[1]{0}', space=sflag, size = 0x4, scoped, tag = 'scoped memory for forward.1']
    #allocation10 [shape = 'u8[65536]{0}', space=vmem, size = 0x10000, scoped, tag = 'input window, operand 15, single buffered']
    #allocation11 [shape = 'u8[65536]{0}', space=vmem, size = 0x10000, scoped, tag = 'input window, operand 16, single buffered']
    #allocation12 [shape = 's32[1]{0}', space=sflag, size = 0x4, scoped, tag = 'scoped memory for forward.1']
    #allocation13 [shape = 'u8[131072]{0}', space=vmem, size = 0x20000, scoped, tag = 'input window, operand 18, single buffered']
    #allocation14 [shape = 'u8[131072]{0}', space=vmem, size = 0x20000, scoped, tag = 'input window, operand 20, single buffered']
    #allocation15 [shape = 's32[1]{0}', space=sflag, size = 0x4, scoped, tag = 'scoped memory for forward.1']
    #allocation16 [shape = 'u8[65536]{0}', space=vmem, size = 0x10000, scoped, tag = 'input window, operand 22, single buffered']
    #allocation17 [shape = 'u8[1024]{0}', space=vmem, size = 0x400, scoped, tag = 'output window, operand 0, single buffered']
    %29 = vsyncpa [#allocation3], 0
    %30 = vsyncpa [#allocation6], 0
    %31 = vsyncpa [#allocation9], 0
    %32 = vsyncpa [#allocation12], 0
    %33 = vsyncpa [#allocation15], 0
    %34 = vsyncpa [#allocation4], 0
    // Predicated region
    $region2: #{forward.1} parent=1 // pred_check
      _
    $region3: #{forward.1} parent=1 // pred_check_branch
      %36 = sbr.rel (0) target = $region5
    $region4: #{forward.1} parent=1 // pred_region
      _
    $region5: #{forward.1} parent=1 // pred_fallthru
      _
    // Predicated region
    $region6: #{forward.1} parent=1 // pred_check
      _
    $region7: #{forward.1} parent=1 // pred_check_branch
      %38 = sbr.rel (0) target = $region9
    $region8: #{forward.1} parent=1 // pred_region
      _
    $region9: #{forward.1} parent=1 // pred_fallthru
      _
    // Predicated region
    $region10: #{forward.1} parent=1 // pred_check
      _
    $region11: #{forward.1} parent=1 // pred_check_branch
      %40 = sbr.rel (0) target = $region13
    $region12: #{forward.1} parent=1 // pred_region
      %s42 = ssub.s32 1280, 1280
      %43 = vsyncadd [#allocation3], %s42
      %s44 = sshll.u32 [#allocation2], 4
      %s45 = int_to_ptr.vmem [resolvable:$true] %s44
      %50 = dma.hbm_to_vmem [thread:$0]  %s2, 1280, %s45, [#allocation3], 256, 256, 16
    $region13: #{forward.1} parent=1 // pred_fallthru
      _
    // Predicated region
    $region14: #{forward.1} parent=1 // pred_check
      _
    $region15: #{forward.1} parent=1 // pred_check_branch
      %52 = sbr.rel (0) target = $region17
    $region16: #{forward.1} parent=1 // pred_region
      %s54 = ssub.s32 1280, 1280
      %55 = vsyncadd [#allocation6], %s54
      %s56 = sshll.u32 [#allocation5], 4
      %s57 = int_to_ptr.vmem [resolvable:$true] %s56
      %62 = dma.hbm_to_vmem [thread:$0]  %s3, 1280, %s57, [#allocation6], 256, 256, 16
    $region17: #{forward.1} parent=1 // pred_fallthru
      _
    // Predicated region
    $region18: #{forward.1} parent=1 // pred_check
      _
    $region19: #{forward.1} parent=1 // pred_check_branch
      %64 = sbr.rel (0) target = $region21
    $region20: #{forward.1} parent=1 // pred_region
      _
    $region21: #{forward.1} parent=1 // pred_fallthru
      _
    // Predicated region
    $region22: #{forward.1} parent=1 // pred_check
      _
    $region23: #{forward.1} parent=1 // pred_check_branch
      %66 = sbr.rel (0) target = $region25
    $region24: #{forward.1} parent=1 // pred_region
      _
    $region25: #{forward.1} parent=1 // pred_fallthru
      _
    // Predicated region
    $region26: #{forward.1} parent=1 // pred_check
      _
    $region27: #{forward.1} parent=1 // pred_check_branch
      %68 = sbr.rel (0) target = $region29
    $region28: #{forward.1} parent=1 // pred_region
      _
    $region29: #{forward.1} parent=1 // pred_fallthru
      _
    // Predicated region
    $region30: #{forward.1} parent=1 // pred_check
      _
    $region31: #{forward.1} parent=1 // pred_check_branch
      %70 = sbr.rel (0) target = $region33
    $region32: #{forward.1} parent=1 // pred_region
      _
    $region33: #{forward.1} parent=1 // pred_fallthru
      _
    // Predicated region
    $region34: #{forward.1} parent=1 // pred_check
      _
    $region35: #{forward.1} parent=1 // pred_check_branch
      %72 = sbr.rel (0) target = $region37
    $region36: #{forward.1} parent=1 // pred_region
      %s74 = ssub.s32 2304, 2304
      %75 = vsyncadd [#allocation6], %s74
      %s76 = sshll.u32 [#allocation7], 4
      %s77 = int_to_ptr.vmem [resolvable:$true] %s76
      %82 = dma.hbm_to_vmem [thread:$0]  %s8, 2304, %s77, [#allocation6], 128, 128, 8
    $region37: #{forward.1} parent=1 // pred_fallthru
      _
    // Predicated region
    $region38: #{forward.1} parent=1 // pred_check
      _
    $region39: #{forward.1} parent=1 // pred_check_branch
      %84 = sbr.rel (0) target = $region41
    $region40: #{forward.1} parent=1 // pred_region
      _
    $region41: #{forward.1} parent=1 // pred_fallthru
      _
    // Predicated region
    $region42: #{forward.1} parent=1 // pred_check
      _
    $region43: #{forward.1} parent=1 // pred_check_branch
      %86 = sbr.rel (0) target = $region45
    $region44: #{forward.1} parent=1 // pred_region
      _
    $region45: #{forward.1} parent=1 // pred_fallthru
      _
    // Predicated region
    $region46: #{forward.1} parent=1 // pred_check
      _
    $region47: #{forward.1} parent=1 // pred_check_branch
      %88 = sbr.rel (0) target = $region49
    $region48: #{forward.1} parent=1 // pred_region
      %s90 = ssub.s32 24576, 24576
      %91 = vsyncadd [#allocation9], %s90
      %s92 = sshll.u32 [#allocation8], 4
      %s93 = int_to_ptr.vmem [resolvable:$true] %s92
      %98 = dma.hbm_to_vmem [thread:$0]  %s11, 24576, %s93, [#allocation9], 128, 128, 8
    $region49: #{forward.1} parent=1 // pred_fallthru
      _
    // Predicated region
    $region50: #{forward.1} parent=1 // pred_check
      _
    $region51: #{forward.1} parent=1 // pred_check_branch
      %100 = sbr.rel (0) target = $region53
    $region52: #{forward.1} parent=1 // pred_region
      _
    $region53: #{forward.1} parent=1 // pred_fallthru
      _
    // Predicated region
    $region54: #{forward.1} parent=1 // pred_check
      _
    $region55: #{forward.1} parent=1 // pred_check_branch
      %102 = sbr.rel (0) target = $region57
    $region56: #{forward.1} parent=1 // pred_region
      _
    $region57: #{forward.1} parent=1 // pred_fallthru
      _
    // Predicated region
    $region58: #{forward.1} parent=1 // pred_check
      _
    $region59: #{forward.1} parent=1 // pred_check_branch
      %104 = sbr.rel (0) target = $region61
    $region60: #{forward.1} parent=1 // pred_region
      _
    $region61: #{forward.1} parent=1 // pred_fallthru
      _
    // Predicated region
    $region62: #{forward.1} parent=1 // pred_check
      _
    $region63: #{forward.1} parent=1 // pred_check_branch
      %106 = sbr.rel (0) target = $region65
    $region64: #{forward.1} parent=1 // pred_region
      %s108 = ssub.s32 2048, 2048
      %109 = vsyncadd [#allocation9], %s108
      %s110 = sshll.u32 [#allocation10], 4
      %s111 = int_to_ptr.vmem [resolvable:$true] %s110
      %116 = dma.hbm_to_vmem [thread:$0]  %s15, 2048, %s111, [#allocation9], 128, 128, 8
    $region65: #{forward.1} parent=1 // pred_fallthru
      _
    // Predicated region
    $region66: #{forward.1} parent=1 // pred_check
      _
    $region67: #{forward.1} parent=1 // pred_check_branch
      %118 = sbr.rel (0) target = $region69
    $region68: #{forward.1} parent=1 // pred_region
      %s120 = ssub.s32 2048, 2048
      %121 = vsyncadd [#allocation12], %s120
      %s122 = sshll.u32 [#allocation11], 4
      %s123 = int_to_ptr.vmem [resolvable:$true] %s122
      %128 = dma.hbm_to_vmem [thread:$0]  %s16, 2048, %s123, [#allocation12], 128, 128, 8
    $region69: #{forward.1} parent=1 // pred_fallthru
      _
    // Predicated region
    $region70: #{forward.1} parent=1 // pred_check
      _
    $region71: #{forward.1} parent=1 // pred_check_branch
      %130 = sbr.rel (0) target = $region73
    $region72: #{forward.1} parent=1 // pred_region
      _
    $region73: #{forward.1} parent=1 // pred_fallthru
      _
    // Predicated region
    $region74: #{forward.1} parent=1 // pred_check
      _
    $region75: #{forward.1} parent=1 // pred_check_branch
      %132 = sbr.rel (0) target = $region77
    $region76: #{forward.1} parent=1 // pred_region
      %s134 = ssub.s32 4096, 4096
      %135 = vsyncadd [#allocation12], %s134
      %s136 = sshll.u32 [#allocation13], 4
      %s137 = int_to_ptr.vmem [resolvable:$true] %s136
      %142 = dma.hbm_to_vmem [thread:$0]  %s18, 4096, %s137, [#allocation12], 256, 256, 16
    $region77: #{forward.1} parent=1 // pred_fallthru
      _
    // Predicated region
    $region78: #{forward.1} parent=1 // pred_check
      _
    $region79: #{forward.1} parent=1 // pred_check_branch
      %144 = sbr.rel (0) target = $region81
    $region80: #{forward.1} parent=1 // pred_region
      _
    $region81: #{forward.1} parent=1 // pred_fallthru
      _
    // Predicated region
    $region82: #{forward.1} parent=1 // pred_check
      _
    $region83: #{forward.1} parent=1 // pred_check_branch
      %146 = sbr.rel (0) target = $region85
    $region84: #{forward.1} parent=1 // pred_region
      %s148 = ssub.s32 4096, 4096
      %149 = vsyncadd [#allocation15], %s148
      %s150 = sshll.u32 [#allocation14], 4
      %s151 = int_to_ptr.vmem [resolvable:$true] %s150
      %156 = dma.hbm_to_vmem [thread:$0]  %s20, 4096, %s151, [#allocation15], 128, 128, 8
    $region85: #{forward.1} parent=1 // pred_fallthru
      _
    // Predicated region
    $region86: #{forward.1} parent=1 // pred_check
      _
    $region87: #{forward.1} parent=1 // pred_check_branch
      %158 = sbr.rel (0) target = $region89
    $region88: #{forward.1} parent=1 // pred_region
      _
    $region89: #{forward.1} parent=1 // pred_fallthru
      _
    // Predicated region
    $region90: #{forward.1} parent=1 // pred_check
      _
    $region91: #{forward.1} parent=1 // pred_check_branch
      %160 = sbr.rel (0) target = $region93
    $region92: #{forward.1} parent=1 // pred_region
      %s162 = ssub.s32 2048, 2048
      %163 = vsyncadd [#allocation15], %s162
      %s164 = sshll.u32 [#allocation16], 4
      %s165 = int_to_ptr.vmem [resolvable:$true] %s164
      %170 = dma.hbm_to_vmem [thread:$0]  %s22, 2048, %s165, [#allocation15], 128, 128, 8
    $region93: #{forward.1} parent=1 // pred_fallthru
      _
    // Predicated region
    $region94: #{forward.1} parent=1 // pred_check
      _
    $region95: #{forward.1} parent=1 // pred_check_branch
      %172 = sbr.rel (0) target = $region97
    $region96: #{forward.1} parent=1 // pred_region
      _
    $region97: #{forward.1} parent=1 // pred_fallthru
      _
    // Predicated region
    $region98: #{forward.1} parent=1 // pred_check
      _
    $region99: #{forward.1} parent=1 // pred_check_branch
      %174 = sbr.rel (0) target = $region101
    $region100: #{forward.1} parent=1 // pred_region
      %175 = dma.done [#allocation3], 1280
    $region101: #{forward.1} parent=1 // pred_fallthru
      _
    // Predicated region
    $region102: #{forward.1} parent=1 // pred_check
      _
    $region103: #{forward.1} parent=1 // pred_check_branch
      %177 = sbr.rel (0) target = $region105
    $region104: #{forward.1} parent=1 // pred_region
      %178 = dma.done [#allocation6], 1280
    $region105: #{forward.1} parent=1 // pred_fallthru
      _
    // Predicated region
    $region106: #{forward.1} parent=1 // pred_check
      _
    $region107: #{forward.1} parent=1 // pred_check_branch
      %180 = sbr.rel (0) target = $region109
    $region108: #{forward.1} parent=1 // pred_region
      %181 = dma.done [#allocation6], 2304
    $region109: #{forward.1} parent=1 // pred_fallthru
      _
    // Predicated region
    $region110: #{forward.1} parent=1 // pred_check
      _
    $region111: #{forward.1} parent=1 // pred_check_branch
      %183 = sbr.rel (0) target = $region113
    $region112: #{forward.1} parent=1 // pred_region
      %184 = dma.done [#allocation9], 24576
    $region113: #{forward.1} parent=1 // pred_fallthru
      _
    // Predicated region
    $region114: #{forward.1} parent=1 // pred_check
      _
    $region115: #{forward.1} parent=1 // pred_check_branch
      %186 = sbr.rel (0) target = $region117
    $region116: #{forward.1} parent=1 // pred_region
      %187 = dma.done [#allocation9], 2048
    $region117: #{forward.1} parent=1 // pred_fallthru
      _
    // Predicated region
    $region118: #{forward.1} parent=1 // pred_check
      _
    $region119: #{forward.1} parent=1 // pred_check_branch
      %189 = sbr.rel (0) target = $region121
    $region120: #{forward.1} parent=1 // pred_region
      %190 = dma.done [#allocation12], 2048
    $region121: #{forward.1} parent=1 // pred_fallthru
      _
    // Predicated region
    $region122: #{forward.1} parent=1 // pred_check
      _
    $region123: #{forward.1} parent=1 // pred_check_branch
      %192 = sbr.rel (0) target = $region125
    $region124: #{forward.1} parent=1 // pred_region
      %193 = dma.done [#allocation12], 4096
    $region125: #{forward.1} parent=1 // pred_fallthru
      _
    // Predicated region
    $region126: #{forward.1} parent=1 // pred_check
      _
    $region127: #{forward.1} parent=1 // pred_check_branch
      %195 = sbr.rel (0) target = $region129
    $region128: #{forward.1} parent=1 // pred_region
      %196 = dma.done [#allocation15], 4096
    $region129: #{forward.1} parent=1 // pred_fallthru
      _
    // Predicated region
    $region130: #{forward.1} parent=1 // pred_check
      _
    $region131: #{forward.1} parent=1 // pred_check_branch
      %198 = sbr.rel (0) target = $region133
    $region132: #{forward.1} parent=1 // pred_region
      %199 = dma.done [#allocation15], 2048
    $region133: #{forward.1} parent=1 // pred_fallthru
      _
    %v200 = vld [vmem:[%s0] sm:$0xff]
    %v201 = vld [vmem:[%s0 + $0x8] sm:$0xff]
    %v202 = vld [vmem:[%s0 + $0x10] sm:$0xff]
    %v203 = vld [vmem:[#allocation2] sm:$0xff]
    %v204 = vld [vmem:[#allocation2 + $0x8] sm:$0xff]
    %v205 = vld [vmem:[#allocation2 + $0x10] sm:$0xff]
    %v206 = vld [vmem:[#allocation2 + $0x18] sm:$0xff]
    %v207 = vld [vmem:[#allocation2 + $0x20] sm:$0xff]
    %v208 = vld [vmem:[#allocation2 + $0x28] sm:$0xff]
    %v209 = vld [vmem:[#allocation2 + $0x30] sm:$0xff]
    %v210 = vld [vmem:[#allocation2 + $0x38] sm:$0xff]
    %v211 = vld [vmem:[#allocation2 + $0x40] sm:$0x3]
    %v212 = vld [vmem:[#allocation2 + $0x48] sm:$0x3]
    %vm213 = vcmask 277504
    %v215 = vsel %vm213, %v200, 0
    %v218 = vsel %vm213, %v201, 0
    %v221 = vsel %vm213, %v202, 0
    %vm223 = vcmask 1041408
    %v225 = vsel %vm223, %v211, 0
    %v228 = vsel %vm223, %v212, 0
    %230 = vmatprep.subr.mxu0 0.0
    %231 = vmatpush1.msra.mxu0 0.0
    %232 = vmatprep.subr.mxu0 0.0
    %233 = vmatpush1.msra.mxu0 0.0
    %234 = vmatprep.subr.mxu0 0.0
    %235 = vmatpush1.msra.mxu0 0.0
    %236 = vmatprep.subr.mxu0 0.0
    %237 = vmatpush1.msra.mxu0 0.0
    %238 = vmatprep.subr.mxu0 0.0
    %239 = vmatpush1.msra.mxu0 0.0
    %240 = vmatprep.subr.mxu0 0.0
    %241 = vmatpush1.msra.mxu0 0.0
    %242 = vmatprep.subr.mxu0 0.0
    %243 = vmatpush1.msra.mxu0 0.0
    %244 = vmatprep.subr.mxu0 0.0
    %245 = vmatpush1.msra.mxu0 0.0
    %246 = vmatprep.subr.mxu0 0.0
    %247 = vmatpush1.msra.mxu0 0.0
    %248 = vmatprep.subr.mxu0 0.0
    %249 = vmatpush1.msra.mxu0 0.0
    %250 = vmatprep.subr.mxu0 0.0
    %251 = vmatpush1.msra.mxu0 0.0
    %252 = vmatprep.subr.mxu0 %v228
    %253 = vmatpush1.msra.mxu0 %v225
    %254 = vmatprep.subr.mxu0 %v210
    %255 = vmatpush1.msra.mxu0 %v209
    %256 = vmatprep.subr.mxu0 %v208
    %257 = vmatpush1.msra.mxu0 %v207
    %258 = vmatprep.subr.mxu0 %v206
    %259 = vmatpush1.msra.mxu0 %v205
    %260 = vmatprep.subr.mxu0 %v204
    %261 = vmatpush1.msra.mxu0 %v203
    %262 = vmatprep.subr.mxu0 0.0
    %263 = vmatpush2.msra.mxu0 0.0
    %264 = vmatprep.subr.mxu0 0.0
    %265 = vmatpush2.msra.mxu0 0.0
    %266 = vmatprep.subr.mxu0 0.0
    %267 = vmatpush2.msra.mxu0 0.0
    %268 = vmatprep.subr.mxu0 0.0
    %269 = vmatpush2.msra.mxu0 0.0
    %270 = vmatprep.subr.mxu0 0.0
    %271 = vmatpush2.msra.mxu0 0.0
    %272 = vmatprep.subr.mxu0 0.0
    %273 = vmatpush2.msra.mxu0 0.0
    %274 = vmatprep.subr.mxu0 0.0
    %275 = vmatpush2.msra.mxu0 0.0
    %276 = vmatprep.subr.mxu0 0.0
    %277 = vmatpush2.msra.mxu0 0.0
    %278 = vmatprep.subr.mxu0 0.0
    %279 = vmatpush2.msra.mxu0 0.0
    %280 = vmatprep.subr.mxu0 0.0
    %281 = vmatpush2.msra.mxu0 0.0
    %282 = vmatprep.subr.mxu0 0.0
    %283 = vmatpush2.msra.mxu0 0.0
    %284 = vmatprep.subr.mxu0 0.0
    %285 = vmatpush2.msra.mxu0 0.0
    %286 = vmatprep.subr.mxu0 0.0
    %287 = vmatpush2.msra.mxu0 0.0
    %288 = vmatprep.subr.mxu0 0.0
    %289 = vmatpush2.msra.mxu0 0.0
    %290 = vmatprep.subr.mxu0 0.0
    %291 = vmatpush2.msra.mxu0 0.0
    %292 = vmatprep.subr.mxu0 0.0
    %293 = vmatpush2.msra.mxu0 0.0
    %294 = vmatprep.mubr.f32.mxu0 0.0
    %295 = vmatmul.mubr.f32.gmra.mxu0 %v215
    %v296 = vpop.f32.mrf.mxu0
    %v297 = vadd.f32 0.0, %v296
    %v298 = vpop.f32.mrf.mxu0
    %v299 = vadd.f32 0.0, %v298
    %300 = vmatprep.mubr.f32.mxu0 0.0
    %301 = vmatmul.mubr.f32.gmra.mxu0 %v218
    %v302 = vpop.f32.mrf.mxu0
    %v303 = vadd.f32 0.0, %v302
    %v304 = vpop.f32.mrf.mxu0
    %v305 = vadd.f32 0.0, %v304
    %306 = vmatprep.mubr.f32.mxu0 0.0
    %307 = vmatmul.mubr.f32.gmra.mxu0 %v221
    %v308 = vpop.f32.mrf.mxu0
    %v309 = vadd.f32 0.0, %v308
    %v310 = vpop.f32.mrf.mxu0
    %v311 = vadd.f32 0.0, %v310
    %312 = vdwg.mxu0
    %v313 = vld [vmem:[#allocation5] sm:$0xff]
    %v314 = vld [vmem:[#allocation5 + $0x8] sm:$0xff]
    %v315 = vld [vmem:[#allocation5 + $0x10] sm:$0xff]
    %v316 = vld [vmem:[#allocation5 + $0x18] sm:$0xff]
    %v317 = vld [vmem:[#allocation5 + $0x20] sm:$0xff]
    %v318 = vld [vmem:[#allocation5 + $0x28] sm:$0xff]
    %v319 = vld [vmem:[#allocation5 + $0x30] sm:$0xff]
    %v320 = vld [vmem:[#allocation5 + $0x38] sm:$0xff]
    %v321 = vld [vmem:[#allocation5 + $0x40] sm:$0x3]
    %v322 = vld [vmem:[#allocation5 + $0x48] sm:$0x3]
    %v324 = vsel %vm223, %v321, 0
    %v327 = vsel %vm223, %v322, 0
    %329 = vmatprep.subr.mxu0 0.0
    %330 = vmatpush1.msra.mxu0 0.0
    %331 = vmatprep.subr.mxu0 0.0
    %332 = vmatpush1.msra.mxu0 0.0
    %333 = vmatprep.subr.mxu0 0.0
    %334 = vmatpush1.msra.mxu0 0.0
    %335 = vmatprep.subr.mxu0 0.0
    %336 = vmatpush1.msra.mxu0 0.0
    %337 = vmatprep.subr.mxu0 0.0
    %338 = vmatpush1.msra.mxu0 0.0
    %339 = vmatprep.subr.mxu0 0.0
    %340 = vmatpush1.msra.mxu0 0.0
    %341 = vmatprep.subr.mxu0 0.0
    %342 = vmatpush1.msra.mxu0 0.0
    %343 = vmatprep.subr.mxu0 0.0
    %344 = vmatpush1.msra.mxu0 0.0
    %345 = vmatprep.subr.mxu0 0.0
    %346 = vmatpush1.msra.mxu0 0.0
    %347 = vmatprep.subr.mxu0 0.0
    %348 = vmatpush1.msra.mxu0 0.0
    %349 = vmatprep.subr.mxu0 0.0
    %350 = vmatpush1.msra.mxu0 0.0
    %351 = vmatprep.subr.mxu0 %v327
    %352 = vmatpush1.msra.mxu0 %v324
    %353 = vmatprep.subr.mxu0 %v320
    %354 = vmatpush1.msra.mxu0 %v319
    %355 = vmatprep.subr.mxu0 %v318
    %356 = vmatpush1.msra.mxu0 %v317
    %357 = vmatprep.subr.mxu0 %v316
    %358 = vmatpush1.msra.mxu0 %v315
    %359 = vmatprep.subr.mxu0 %v314
    %360 = vmatpush1.msra.mxu0 %v313
    %361 = vmatprep.subr.mxu0 0.0
    %362 = vmatpush2.msra.mxu0 0.0
    %363 = vmatprep.subr.mxu0 0.0
    %364 = vmatpush2.msra.mxu0 0.0
    %365 = vmatprep.subr.mxu0 0.0
    %366 = vmatpush2.msra.mxu0 0.0
    %367 = vmatprep.subr.mxu0 0.0
    %368 = vmatpush2.msra.mxu0 0.0
    %369 = vmatprep.subr.mxu0 0.0
    %370 = vmatpush2.msra.mxu0 0.0
    %371 = vmatprep.subr.mxu0 0.0
    %372 = vmatpush2.msra.mxu0 0.0
    %373 = vmatprep.subr.mxu0 0.0
    %374 = vmatpush2.msra.mxu0 0.0
    %375 = vmatprep.subr.mxu0 0.0
    %376 = vmatpush2.msra.mxu0 0.0
    %377 = vmatprep.subr.mxu0 0.0
    %378 = vmatpush2.msra.mxu0 0.0
    %379 = vmatprep.subr.mxu0 0.0
    %380 = vmatpush2.msra.mxu0 0.0
    %381 = vmatprep.subr.mxu0 0.0
    %382 = vmatpush2.msra.mxu0 0.0
    %383 = vmatprep.subr.mxu0 0.0
    %384 = vmatpush2.msra.mxu0 0.0
    %385 = vmatprep.subr.mxu0 0.0
    %386 = vmatpush2.msra.mxu0 0.0
    %387 = vmatprep.subr.mxu0 0.0
    %388 = vmatpush2.msra.mxu0 0.0
    %389 = vmatprep.subr.mxu0 0.0
    %390 = vmatpush2.msra.mxu0 0.0
    %391 = vmatprep.subr.mxu0 0.0
    %392 = vmatpush2.msra.mxu0 0.0
    %393 = vmatprep.mubr.f32.mxu0 0.0
    %394 = vmatmul.mubr.f32.gmra.mxu0 %v215
    %v395 = vpop.f32.mrf.mxu0
    %v396 = vadd.f32 0.0, %v395
    %v397 = vpop.f32.mrf.mxu0
    %v398 = vadd.f32 0.0, %v397
    %399 = vmatprep.mubr.f32.mxu0 0.0
    %400 = vmatmul.mubr.f32.gmra.mxu0 %v218
    %v401 = vpop.f32.mrf.mxu0
    %v402 = vadd.f32 0.0, %v401
    %v403 = vpop.f32.mrf.mxu0
    %v404 = vadd.f32 0.0, %v403
    %405 = vmatprep.mubr.f32.mxu0 0.0
    %406 = vmatmul.mubr.f32.gmra.mxu0 %v221
    %v407 = vpop.f32.mrf.mxu0
    %v408 = vadd.f32 0.0, %v407
    %v409 = vpop.f32.mrf.mxu0
    %v410 = vadd.f32 0.0, %v409
    %411 = vdwg.mxu0
    %v412 = vmax.f32 %v297, %v396
    %v413 = vmax.f32 %v299, %v398
    %v414 = vmax.f32 %v303, %v402
    %v415 = vmax.f32 %v305, %v404
    %v416 = vmax.f32 %v309, %v408
    %v417 = vmax.f32 %v311, %v410
    %v418 = vld [vmem:[%s4] sm:$0x3]
    %v420 = vlaneseq
    %v421 = vshrl.u32 %v420, 7
    %v422 = vsub.s32 0, %v421
    %v423 = vrot.slane %v418, %v422
    %v424 = vlaneseq
    %v425 = vshrl.u32 %v424, 7
    %v426 = vsub.s32 1, %v425
    %v427 = vrot.slane %v418, %v426
    %v430 = vadd.f32 %v412, %v423
    %v431 = vadd.f32 %v413, %v427
    %v432 = vadd.f32 %v414, %v423
    %v433 = vadd.f32 %v415, %v427
    %v434 = vadd.f32 %v416, %v423
    %v435 = vadd.f32 %v417, %v427
    %v436 = vmax.f32 %v430, 0.0
    %v437 = vmax.f32 %v431, 0.0
    %v438 = vmax.f32 %v432, 0.0
    %v439 = vmax.f32 %v433, 0.0
    %v440 = vmax.f32 %v434, 0.0
    %v441 = vmax.f32 %v435, 0.0
    %v442 = vld [vmem:[%s5] sm:$0xff]
    %v443 = vld [vmem:[%s5 + $0x8] sm:$0xff]
    %v444 = vld [vmem:[%s5 + $0x10] sm:$0xff]
    %v445 = vld [vmem:[%s5 + $0x18] sm:$0xff]
    %v446 = vld [vmem:[%s5 + $0x20] sm:$0xff]
    %v447 = vld [vmem:[%s5 + $0x28] sm:$0xff]
    %v448 = vld [vmem:[%s5 + $0x30] sm:$0xff]
    %v449 = vld [vmem:[%s5 + $0x38] sm:$0xff]
    %v450 = vld [vmem:[%s5 + $0x40] sm:$0xff]
    %v451 = vld [vmem:[%s5 + $0x48] sm:$0xff]
    %v452 = vld [vmem:[%s5 + $0x50] sm:$0xff]
    %v453 = vld [vmem:[%s5 + $0x58] sm:$0xff]
    %v454 = vld [vmem:[%s5 + $0x60] sm:$0xff]
    %v455 = vld [vmem:[%s5 + $0x68] sm:$0xff]
    %v456 = vld [vmem:[%s5 + $0x70] sm:$0xff]
    %v457 = vld [vmem:[%s5 + $0x78] sm:$0xff]
    %v458 = vld [vmem:[%s5 + $0x80] sm:$0xff]
    %v459 = vld [vmem:[%s5 + $0x88] sm:$0xff]
    %v460 = vld [vmem:[%s5 + $0x90] sm:$0xff]
    %v461 = vld [vmem:[%s5 + $0x98] sm:$0xff]
    %v462 = vld [vmem:[%s5 + $0xa0] sm:$0xff]
    %v463 = vld [vmem:[%s5 + $0xa8] sm:$0xff]
    %v464 = vld [vmem:[%s5 + $0xb0] sm:$0xff]
    %v465 = vld [vmem:[%s5 + $0xb8] sm:$0xff]
    %v466 = vld [vmem:[%s5 + $0xc0] sm:$0xff]
    %v467 = vld [vmem:[%s5 + $0xc8] sm:$0xff]
    %v468 = vld [vmem:[%s5 + $0xd0] sm:$0xff]
    %v469 = vld [vmem:[%s5 + $0xd8] sm:$0xff]
    %v470 = vld [vmem:[%s5 + $0xe0] sm:$0xff]
    %v471 = vld [vmem:[%s5 + $0xe8] sm:$0xff]
    %v472 = vld [vmem:[%s5 + $0xf0] sm:$0xff]
    %v473 = vld [vmem:[%s5 + $0xf8] sm:$0xff]
    %v474 = vld [vmem:[%s5 + $0x100] sm:$0xff]
    %v475 = vld [vmem:[%s5 + $0x108] sm:$0xff]
    %v476 = vld [vmem:[%s5 + $0x110] sm:$0xff]
    %v477 = vld [vmem:[%s5 + $0x118] sm:$0xff]
    %v478 = vld [vmem:[%s5 + $0x120] sm:$0xff]
    %v479 = vld [vmem:[%s5 + $0x128] sm:$0xff]
    %v480 = vld [vmem:[%s5 + $0x130] sm:$0xff]
    %v481 = vld [vmem:[%s5 + $0x138] sm:$0xff]
    %v482 = vld [vmem:[%s5 + $0x140] sm:$0xff]
    %v483 = vld [vmem:[%s5 + $0x148] sm:$0xff]
    %vm484 = vcmask 326656
    %v486 = vsel %vm484, %v437, 0
    %v489 = vsel %vm484, %v439, 0
    %v492 = vsel %vm484, %v441, 0
    %494 = vmatprep.subr.mxu0 %v473
    %495 = vmatpush1.msra.mxu0 %v472
    %496 = vmatprep.subr.mxu0 %v471
    %497 = vmatpush1.msra.mxu0 %v470
    %498 = vmatprep.subr.mxu0 %v469
    %499 = vmatpush1.msra.mxu0 %v468
    %500 = vmatprep.subr.mxu0 %v467
    %501 = vmatpush1.msra.mxu0 %v466
    %502 = vmatprep.subr.mxu0 %v465
    %503 = vmatpush1.msra.mxu0 %v464
    %504 = vmatprep.subr.mxu0 %v463
    %505 = vmatpush1.msra.mxu0 %v462
    %506 = vmatprep.subr.mxu0 %v461
    %507 = vmatpush1.msra.mxu0 %v460
    %508 = vmatprep.subr.mxu0 %v459
    %509 = vmatpush1.msra.mxu0 %v458
    %510 = vmatprep.subr.mxu0 %v457
    %511 = vmatpush1.msra.mxu0 %v456
    %512 = vmatprep.subr.mxu0 %v455
    %513 = vmatpush1.msra.mxu0 %v454
    %514 = vmatprep.subr.mxu0 %v453
    %515 = vmatpush1.msra.mxu0 %v452
    %516 = vmatprep.subr.mxu0 %v451
    %517 = vmatpush1.msra.mxu0 %v450
    %518 = vmatprep.subr.mxu0 %v449
    %519 = vmatpush1.msra.mxu0 %v448
    %520 = vmatprep.subr.mxu0 %v447
    %521 = vmatpush1.msra.mxu0 %v446
    %522 = vmatprep.subr.mxu0 %v445
    %523 = vmatpush1.msra.mxu0 %v444
    %524 = vmatprep.subr.mxu0 %v443
    %525 = vmatpush1.msra.mxu0 %v442
    %526 = vmatprep.subr.mxu0 0.0
    %527 = vmatpush2.msra.mxu0 0.0
    %528 = vmatprep.subr.mxu0 0.0
    %529 = vmatpush2.msra.mxu0 0.0
    %530 = vmatprep.subr.mxu0 0.0
    %531 = vmatpush2.msra.mxu0 0.0
    %532 = vmatprep.subr.mxu0 0.0
    %533 = vmatpush2.msra.mxu0 0.0
    %534 = vmatprep.subr.mxu0 0.0
    %535 = vmatpush2.msra.mxu0 0.0
    %536 = vmatprep.subr.mxu0 0.0
    %537 = vmatpush2.msra.mxu0 0.0
    %538 = vmatprep.subr.mxu0 0.0
    %539 = vmatpush2.msra.mxu0 0.0
    %540 = vmatprep.subr.mxu0 0.0
    %541 = vmatpush2.msra.mxu0 0.0
    %542 = vmatprep.subr.mxu0 0.0
    %543 = vmatpush2.msra.mxu0 0.0
    %544 = vmatprep.subr.mxu0 0.0
    %545 = vmatpush2.msra.mxu0 0.0
    %546 = vmatprep.subr.mxu0 0.0
    %547 = vmatpush2.msra.mxu0 0.0
    %548 = vmatprep.subr.mxu0 %v483
    %549 = vmatpush2.msra.mxu0 %v482
    %550 = vmatprep.subr.mxu0 %v481
    %551 = vmatpush2.msra.mxu0 %v480
    %552 = vmatprep.subr.mxu0 %v479
    %553 = vmatpush2.msra.mxu0 %v478
    %554 = vmatprep.subr.mxu0 %v477
    %555 = vmatpush2.msra.mxu0 %v476
    %556 = vmatprep.subr.mxu0 %v475
    %557 = vmatpush2.msra.mxu0 %v474
    %558 = vmatprep.mubr.f32.mxu0 %v486
    %559 = vmatmul.mubr.f32.gmra.mxu0 %v436
    %v560 = vpop.f32.mrf.mxu0
    %v561 = vadd.f32 0.0, %v560
    %v562 = vpop.f32.mrf.mxu0
    %v563 = vadd.f32 0.0, %v562
    %564 = vmatprep.mubr.f32.mxu0 %v489
    %565 = vmatmul.mubr.f32.gmra.mxu0 %v438
    %v566 = vpop.f32.mrf.mxu0
    %v567 = vadd.f32 0.0, %v566
    %v568 = vpop.f32.mrf.mxu0
    %v569 = vadd.f32 0.0, %v568
    %570 = vmatprep.mubr.f32.mxu0 %v492
    %571 = vmatmul.mubr.f32.gmra.mxu0 %v440
    %v572 = vpop.f32.mrf.mxu0
    %v573 = vadd.f32 0.0, %v572
    %v574 = vpop.f32.mrf.mxu0
    %v575 = vadd.f32 0.0, %v574
    %576 = vdwg.mxu0
    %v577 = vld [vmem:[%s6] sm:$0xff]
    %v578 = vld [vmem:[%s6 + $0x8] sm:$0xff]
    %v579 = vld [vmem:[%s6 + $0x10] sm:$0xff]
    %v580 = vld [vmem:[%s6 + $0x18] sm:$0xff]
    %v581 = vld [vmem:[%s6 + $0x20] sm:$0xff]
    %v582 = vld [vmem:[%s6 + $0x28] sm:$0xff]
    %v583 = vld [vmem:[%s6 + $0x30] sm:$0xff]
    %v584 = vld [vmem:[%s6 + $0x38] sm:$0xff]
    %v585 = vld [vmem:[%s6 + $0x40] sm:$0xff]
    %v586 = vld [vmem:[%s6 + $0x48] sm:$0xff]
    %v587 = vld [vmem:[%s6 + $0x50] sm:$0xff]
    %v588 = vld [vmem:[%s6 + $0x58] sm:$0xff]
    %v589 = vld [vmem:[%s6 + $0x60] sm:$0xff]
    %v590 = vld [vmem:[%s6 + $0x68] sm:$0xff]
    %v591 = vld [vmem:[%s6 + $0x70] sm:$0xff]
    %v592 = vld [vmem:[%s6 + $0x78] sm:$0xff]
    %v593 = vld [vmem:[%s6 + $0x80] sm:$0xff]
    %v594 = vld [vmem:[%s6 + $0x88] sm:$0xff]
    %v595 = vld [vmem:[%s6 + $0x90] sm:$0xff]
    %v596 = vld [vmem:[%s6 + $0x98] sm:$0xff]
    %v597 = vld [vmem:[%s6 + $0xa0] sm:$0xff]
    %v598 = vld [vmem:[%s6 + $0xa8] sm:$0xff]
    %v599 = vld [vmem:[%s6 + $0xb0] sm:$0xff]
    %v600 = vld [vmem:[%s6 + $0xb8] sm:$0xff]
    %v601 = vld [vmem:[%s6 + $0xc0] sm:$0xff]
    %v602 = vld [vmem:[%s6 + $0xc8] sm:$0xff]
    %v603 = vld [vmem:[%s6 + $0xd0] sm:$0xff]
    %v604 = vld [vmem:[%s6 + $0xd8] sm:$0xff]
    %v605 = vld [vmem:[%s6 + $0xe0] sm:$0xff]
    %v606 = vld [vmem:[%s6 + $0xe8] sm:$0xff]
    %v607 = vld [vmem:[%s6 + $0xf0] sm:$0xff]
    %v608 = vld [vmem:[%s6 + $0xf8] sm:$0xff]
    %v609 = vld [vmem:[%s6 + $0x100] sm:$0xff]
    %v610 = vld [vmem:[%s6 + $0x108] sm:$0xff]
    %v611 = vld [vmem:[%s6 + $0x110] sm:$0xff]
    %v612 = vld [vmem:[%s6 + $0x118] sm:$0xff]
    %v613 = vld [vmem:[%s6 + $0x120] sm:$0xff]
    %v614 = vld [vmem:[%s6 + $0x128] sm:$0xff]
    %v615 = vld [vmem:[%s6 + $0x130] sm:$0xff]
    %v616 = vld [vmem:[%s6 + $0x138] sm:$0xff]
    %v617 = vld [vmem:[%s6 + $0x140] sm:$0xff]
    %v618 = vld [vmem:[%s6 + $0x148] sm:$0xff]
    %619 = vmatprep.subr.mxu0 %v608
    %620 = vmatpush1.msra.mxu0 %v607
    %621 = vmatprep.subr.mxu0 %v606
    %622 = vmatpush1.msra.mxu0 %v605
    %623 = vmatprep.subr.mxu0 %v604
    %624 = vmatpush1.msra.mxu0 %v603
    %625 = vmatprep.subr.mxu0 %v602
    %626 = vmatpush1.msra.mxu0 %v601
    %627 = vmatprep.subr.mxu0 %v600
    %628 = vmatpush1.msra.mxu0 %v599
    %629 = vmatprep.subr.mxu0 %v598
    %630 = vmatpush1.msra.mxu0 %v597
    %631 = vmatprep.subr.mxu0 %v596
    %632 = vmatpush1.msra.mxu0 %v595
    %633 = vmatprep.subr.mxu0 %v594
    %634 = vmatpush1.msra.mxu0 %v593
    %635 = vmatprep.subr.mxu0 %v592
    %636 = vmatpush1.msra.mxu0 %v591
    %637 = vmatprep.subr.mxu0 %v590
    %638 = vmatpush1.msra.mxu0 %v589
    %639 = vmatprep.subr.mxu0 %v588
    %640 = vmatpush1.msra.mxu0 %v587
    %641 = vmatprep.subr.mxu0 %v586
    %642 = vmatpush1.msra.mxu0 %v585
    %643 = vmatprep.subr.mxu0 %v584
    %644 = vmatpush1.msra.mxu0 %v583
    %645 = vmatprep.subr.mxu0 %v582
    %646 = vmatpush1.msra.mxu0 %v581
    %647 = vmatprep.subr.mxu0 %v580
    %648 = vmatpush1.msra.mxu0 %v579
    %649 = vmatprep.subr.mxu0 %v578
    %650 = vmatpush1.msra.mxu0 %v577
    %651 = vmatprep.subr.mxu0 0.0
    %652 = vmatpush2.msra.mxu0 0.0
    %653 = vmatprep.subr.mxu0 0.0
    %654 = vmatpush2.msra.mxu0 0.0
    %655 = vmatprep.subr.mxu0 0.0
    %656 = vmatpush2.msra.mxu0 0.0
    %657 = vmatprep.subr.mxu0 0.0
    %658 = vmatpush2.msra.mxu0 0.0
    %659 = vmatprep.subr.mxu0 0.0
    %660 = vmatpush2.msra.mxu0 0.0
    %661 = vmatprep.subr.mxu0 0.0
    %662 = vmatpush2.msra.mxu0 0.0
    %663 = vmatprep.subr.mxu0 0.0
    %664 = vmatpush2.msra.mxu0 0.0
    %665 = vmatprep.subr.mxu0 0.0
    %666 = vmatpush2.msra.mxu0 0.0
    %667 = vmatprep.subr.mxu0 0.0
    %668 = vmatpush2.msra.mxu0 0.0
    %669 = vmatprep.subr.mxu0 0.0
    %670 = vmatpush2.msra.mxu0 0.0
    %671 = vmatprep.subr.mxu0 0.0
    %672 = vmatpush2.msra.mxu0 0.0
    %673 = vmatprep.subr.mxu0 %v618
    %674 = vmatpush2.msra.mxu0 %v617
    %675 = vmatprep.subr.mxu0 %v616
    %676 = vmatpush2.msra.mxu0 %v615
    %677 = vmatprep.subr.mxu0 %v614
    %678 = vmatpush2.msra.mxu0 %v613
    %679 = vmatprep.subr.mxu0 %v612
    %680 = vmatpush2.msra.mxu0 %v611
    %681 = vmatprep.subr.mxu0 %v610
    %682 = vmatpush2.msra.mxu0 %v609
    %683 = vmatprep.mubr.f32.mxu0 %v486
    %684 = vmatmul.mubr.f32.gmra.mxu0 %v436
    %v685 = vpop.f32.mrf.mxu0
    %v686 = vadd.f32 0.0, %v685
    %v687 = vpop.f32.mrf.mxu0
    %v688 = vadd.f32 0.0, %v687
    %689 = vmatprep.mubr.f32.mxu0 %v489
    %690 = vmatmul.mubr.f32.gmra.mxu0 %v438
    %v691 = vpop.f32.mrf.mxu0
    %v692 = vadd.f32 0.0, %v691
    %v693 = vpop.f32.mrf.mxu0
    %v694 = vadd.f32 0.0, %v693
    %695 = vmatprep.mubr.f32.mxu0 %v492
    %696 = vmatmul.mubr.f32.gmra.mxu0 %v440
    %v697 = vpop.f32.mrf.mxu0
    %v698 = vadd.f32 0.0, %v697
    %v699 = vpop.f32.mrf.mxu0
    %v700 = vadd.f32 0.0, %v699
    %701 = vdwg.mxu0
    %v702 = vmax.f32 %v561, %v686
    %v703 = vmax.f32 %v563, %v688
    %v704 = vmax.f32 %v567, %v692
    %v705 = vmax.f32 %v569, %v694
    %v706 = vmax.f32 %v573, %v698
    %v707 = vmax.f32 %v575, %v700
    %v708 = vld [vmem:[%s7] sm:$0x3]
    %v710 = vlaneseq
    %v711 = vshrl.u32 %v710, 7
    %v712 = vsub.s32 0, %v711
    %v713 = vrot.slane %v708, %v712
    %v714 = vlaneseq
    %v715 = vshrl.u32 %v714, 7
    %v716 = vsub.s32 1, %v715
    %v717 = vrot.slane %v708, %v716
    %v720 = vadd.f32 %v702, %v713
    %v721 = vadd.f32 %v703, %v717
    %v722 = vadd.f32 %v704, %v713
    %v723 = vadd.f32 %v705, %v717
    %v724 = vadd.f32 %v706, %v713
    %v725 = vadd.f32 %v707, %v717
    %v726 = vmax.f32 %v720, 0.0
    %v727 = vmax.f32 %v721, 0.0
    %v728 = vmax.f32 %v722, 0.0
    %v729 = vmax.f32 %v723, 0.0
    %v730 = vmax.f32 %v724, 0.0
    %v731 = vmax.f32 %v725, 0.0
    %v732 = vld [vmem:[#allocation7] sm:$0xff]
    %v733 = vld [vmem:[#allocation7 + $0x8] sm:$0xff]
    %v734 = vld [vmem:[#allocation7 + $0x10] sm:$0xff]
    %v735 = vld [vmem:[#allocation7 + $0x18] sm:$0xff]
    %v736 = vld [vmem:[#allocation7 + $0x20] sm:$0xff]
    %v737 = vld [vmem:[#allocation7 + $0x28] sm:$0xff]
    %v738 = vld [vmem:[#allocation7 + $0x30] sm:$0xff]
    %v739 = vld [vmem:[#allocation7 + $0x38] sm:$0xff]
    %v740 = vld [vmem:[#allocation7 + $0x40] sm:$0xff]
    %v741 = vld [vmem:[#allocation7 + $0x48] sm:$0xff]
    %v742 = vld [vmem:[#allocation7 + $0x50] sm:$0xff]
    %v743 = vld [vmem:[#allocation7 + $0x58] sm:$0xff]
    %v744 = vld [vmem:[#allocation7 + $0x60] sm:$0xff]
    %v745 = vld [vmem:[#allocation7 + $0x68] sm:$0xff]
    %v746 = vld [vmem:[#allocation7 + $0x70] sm:$0xff]
    %v747 = vld [vmem:[#allocation7 + $0x78] sm:$0xff]
    %v748 = vld [vmem:[#allocation7 + $0x80] sm:$0xff]
    %v749 = vld [vmem:[#allocation7 + $0x88] sm:$0xff]
    %vm750 = vcmask 130048
    %v752 = vsel %vm750, %v727, 0
    %v755 = vsel %vm750, %v729, 0
    %v758 = vsel %vm750, %v731, 0
    %760 = vmatprep.subr.mxu0 0.0
    %761 = vmatpush1.msra.mxu0 %v747
    %762 = vmatprep.subr.mxu0 0.0
    %763 = vmatpush1.msra.mxu0 %v746
    %764 = vmatprep.subr.mxu0 0.0
    %765 = vmatpush1.msra.mxu0 %v745
    %766 = vmatprep.subr.mxu0 0.0
    %767 = vmatpush1.msra.mxu0 %v744
    %768 = vmatprep.subr.mxu0 0.0
    %769 = vmatpush1.msra.mxu0 %v743
    %770 = vmatprep.subr.mxu0 0.0
    %771 = vmatpush1.msra.mxu0 %v742
    %772 = vmatprep.subr.mxu0 0.0
    %773 = vmatpush1.msra.mxu0 %v741
    %774 = vmatprep.subr.mxu0 0.0
    %775 = vmatpush1.msra.mxu0 %v740
    %776 = vmatprep.subr.mxu0 0.0
    %777 = vmatpush1.msra.mxu0 %v739
    %778 = vmatprep.subr.mxu0 0.0
    %779 = vmatpush1.msra.mxu0 %v738
    %780 = vmatprep.subr.mxu0 0.0
    %781 = vmatpush1.msra.mxu0 %v737
    %782 = vmatprep.subr.mxu0 0.0
    %783 = vmatpush1.msra.mxu0 %v736
    %784 = vmatprep.subr.mxu0 0.0
    %785 = vmatpush1.msra.mxu0 %v735
    %786 = vmatprep.subr.mxu0 0.0
    %787 = vmatpush1.msra.mxu0 %v734
    %788 = vmatprep.subr.mxu0 0.0
    %789 = vmatpush1.msra.mxu0 %v733
    %790 = vmatprep.subr.mxu0 0.0
    %791 = vmatpush1.msra.mxu0 %v732
    %792 = vmatprep.subr.mxu0 0.0
    %793 = vmatpush2.msra.mxu0 0.0
    %794 = vmatprep.subr.mxu0 0.0
    %795 = vmatpush2.msra.mxu0 0.0
    %796 = vmatprep.subr.mxu0 0.0
    %797 = vmatpush2.msra.mxu0 0.0
    %798 = vmatprep.subr.mxu0 0.0
    %799 = vmatpush2.msra.mxu0 0.0
    %800 = vmatprep.subr.mxu0 0.0
    %801 = vmatpush2.msra.mxu0 0.0
    %802 = vmatprep.subr.mxu0 0.0
    %803 = vmatpush2.msra.mxu0 0.0
    %804 = vmatprep.subr.mxu0 0.0
    %805 = vmatpush2.msra.mxu0 0.0
    %806 = vmatprep.subr.mxu0 0.0
    %807 = vmatpush2.msra.mxu0 0.0
    %808 = vmatprep.subr.mxu0 0.0
    %809 = vmatpush2.msra.mxu0 0.0
    %810 = vmatprep.subr.mxu0 0.0
    %811 = vmatpush2.msra.mxu0 0.0
    %812 = vmatprep.subr.mxu0 0.0
    %813 = vmatpush2.msra.mxu0 0.0
    %814 = vmatprep.subr.mxu0 0.0
    %815 = vmatpush2.msra.mxu0 0.0
    %816 = vmatprep.subr.mxu0 0.0
    %817 = vmatpush2.msra.mxu0 0.0
    %818 = vmatprep.subr.mxu0 0.0
    %819 = vmatpush2.msra.mxu0 0.0
    %820 = vmatprep.subr.mxu0 0.0
    %821 = vmatpush2.msra.mxu0 %v749
    %822 = vmatprep.subr.mxu0 0.0
    %823 = vmatpush2.msra.mxu0 %v748
    %824 = vmatprep.mubr.f32.mxu0 %v752
    %825 = vmatmul.mubr.f32.gmra.mxu0 %v726
    %v826 = vpop.f32.mrf.mxu0
    %v827 = vadd.f32 0.0, %v826
    %v828 = vpop.f32.mrf.mxu0
    %829 = vmatprep.mubr.f32.mxu0 %v755
    %830 = vmatmul.mubr.f32.gmra.mxu0 %v728
    %v831 = vpop.f32.mrf.mxu0
    %v832 = vadd.f32 0.0, %v831
    %v833 = vpop.f32.mrf.mxu0
    %834 = vmatprep.mubr.f32.mxu0 %v758
    %835 = vmatmul.mubr.f32.gmra.mxu0 %v730
    %v836 = vpop.f32.mrf.mxu0
    %v837 = vadd.f32 0.0, %v836
    %v838 = vpop.f32.mrf.mxu0
    %839 = vdwg.mxu0
    %v840 = vld [vmem:[%s9] sm:$0xff]
    %v841 = vld [vmem:[%s9 + $0x8] sm:$0xff]
    %v842 = vld [vmem:[%s9 + $0x10] sm:$0xff]
    %v843 = vld [vmem:[%s9 + $0x18] sm:$0xff]
    %v844 = vld [vmem:[%s9 + $0x20] sm:$0xff]
    %v845 = vld [vmem:[%s9 + $0x28] sm:$0xff]
    %v846 = vld [vmem:[%s9 + $0x30] sm:$0xff]
    %v847 = vld [vmem:[%s9 + $0x38] sm:$0xff]
    %v848 = vld [vmem:[%s9 + $0x40] sm:$0xff]
    %v849 = vld [vmem:[%s9 + $0x48] sm:$0xff]
    %v850 = vld [vmem:[%s9 + $0x50] sm:$0xff]
    %v851 = vld [vmem:[%s9 + $0x58] sm:$0xff]
    %v852 = vld [vmem:[%s9 + $0x60] sm:$0xff]
    %v853 = vld [vmem:[%s9 + $0x68] sm:$0xff]
    %v854 = vld [vmem:[%s9 + $0x70] sm:$0xff]
    %v855 = vld [vmem:[%s9 + $0x78] sm:$0xff]
    %v856 = vld [vmem:[%s9 + $0x80] sm:$0xff]
    %v857 = vld [vmem:[%s9 + $0x88] sm:$0xff]
    %858 = vmatprep.subr.mxu0 0.0
    %859 = vmatpush1.msra.mxu0 %v855
    %860 = vmatprep.subr.mxu0 0.0
    %861 = vmatpush1.msra.mxu0 %v854
    %862 = vmatprep.subr.mxu0 0.0
    %863 = vmatpush1.msra.mxu0 %v853
    %864 = vmatprep.subr.mxu0 0.0
    %865 = vmatpush1.msra.mxu0 %v852
    %866 = vmatprep.subr.mxu0 0.0
    %867 = vmatpush1.msra.mxu0 %v851
    %868 = vmatprep.subr.mxu0 0.0
    %869 = vmatpush1.msra.mxu0 %v850
    %870 = vmatprep.subr.mxu0 0.0
    %871 = vmatpush1.msra.mxu0 %v849
    %872 = vmatprep.subr.mxu0 0.0
    %873 = vmatpush1.msra.mxu0 %v848
    %874 = vmatprep.subr.mxu0 0.0
    %875 = vmatpush1.msra.mxu0 %v847
    %876 = vmatprep.subr.mxu0 0.0
    %877 = vmatpush1.msra.mxu0 %v846
    %878 = vmatprep.subr.mxu0 0.0
    %879 = vmatpush1.msra.mxu0 %v845
    %880 = vmatprep.subr.mxu0 0.0
    %881 = vmatpush1.msra.mxu0 %v844
    %882 = vmatprep.subr.mxu0 0.0
    %883 = vmatpush1.msra.mxu0 %v843
    %884 = vmatprep.subr.mxu0 0.0
    %885 = vmatpush1.msra.mxu0 %v842
    %886 = vmatprep.subr.mxu0 0.0
    %887 = vmatpush1.msra.mxu0 %v841
    %888 = vmatprep.subr.mxu0 0.0
    %889 = vmatpush1.msra.mxu0 %v840
    %890 = vmatprep.subr.mxu0 0.0
    %891 = vmatpush2.msra.mxu0 0.0
    %892 = vmatprep.subr.mxu0 0.0
    %893 = vmatpush2.msra.mxu0 0.0
    %894 = vmatprep.subr.mxu0 0.0
    %895 = vmatpush2.msra.mxu0 0.0
    %896 = vmatprep.subr.mxu0 0.0
    %897 = vmatpush2.msra.mxu0 0.0
    %898 = vmatprep.subr.mxu0 0.0
    %899 = vmatpush2.msra.mxu0 0.0
    %900 = vmatprep.subr.mxu0 0.0
    %901 = vmatpush2.msra.mxu0 0.0
    %902 = vmatprep.subr.mxu0 0.0
    %903 = vmatpush2.msra.mxu0 0.0
    %904 = vmatprep.subr.mxu0 0.0
    %905 = vmatpush2.msra.mxu0 0.0
    %906 = vmatprep.subr.mxu0 0.0
    %907 = vmatpush2.msra.mxu0 0.0
    %908 = vmatprep.subr.mxu0 0.0
    %909 = vmatpush2.msra.mxu0 0.0
    %910 = vmatprep.subr.mxu0 0.0
    %911 = vmatpush2.msra.mxu0 0.0
    %912 = vmatprep.subr.mxu0 0.0
    %913 = vmatpush2.msra.mxu0 0.0
    %914 = vmatprep.subr.mxu0 0.0
    %915 = vmatpush2.msra.mxu0 0.0
    %916 = vmatprep.subr.mxu0 0.0
    %917 = vmatpush2.msra.mxu0 0.0
    %918 = vmatprep.subr.mxu0 0.0
    %919 = vmatpush2.msra.mxu0 %v857
    %920 = vmatprep.subr.mxu0 0.0
    %921 = vmatpush2.msra.mxu0 %v856
    %922 = vmatprep.mubr.f32.mxu0 %v752
    %923 = vmatmul.mubr.f32.gmra.mxu0 %v726
    %v924 = vpop.f32.mrf.mxu0
    %v925 = vadd.f32 0.0, %v924
    %v926 = vpop.f32.mrf.mxu0
    %927 = vmatprep.mubr.f32.mxu0 %v755
    %928 = vmatmul.mubr.f32.gmra.mxu0 %v728
    %v929 = vpop.f32.mrf.mxu0
    %v930 = vadd.f32 0.0, %v929
    %v931 = vpop.f32.mrf.mxu0
    %932 = vmatprep.mubr.f32.mxu0 %v758
    %933 = vmatmul.mubr.f32.gmra.mxu0 %v730
    %v934 = vpop.f32.mrf.mxu0
    %v935 = vadd.f32 0.0, %v934
    %v936 = vpop.f32.mrf.mxu0
    %937 = vdwg.mxu0
    %v938 = vmax.f32 %v827, %v925
    %v939 = vmax.f32 %v832, %v930
    %v940 = vmax.f32 %v837, %v935
    %v941 = vld [vmem:[%s10] sm:$0x1]
    %v943 = vlaneseq
    %v944 = vshrl.u32 %v943, 7
    %v945 = vsub.s32 0, %v944
    %v946 = vrot.slane %v941, %v945
    %v948 = vadd.f32 %v938, %v946
    %v949 = vadd.f32 %v939, %v946
    %v950 = vadd.f32 %v940, %v946
    %v951 = vxor.u32 %v948, 2147483648
    %v952 = vxor.u32 %v949, 2147483648
    %v953 = vxor.u32 %v950, 2147483648
    %v954 = vmul.f32 %v951, 1.442695
    %v955 = vpow.pop %v954
    %v956 = vmul.f32 %v952, 1.442695
    %v957 = vpow.pop %v956
    %v958 = vmul.f32 %v953, 1.442695
    %v959 = vpow.pop %v958
    %v960 = vadd.f32 %v955, 1.0
    %v961 = vadd.f32 %v957, 1.0
    %v962 = vadd.f32 %v959, 1.0
    %v963 = vrcp.pop %v960
    %v964 = vmul.f32 1.0, %v963
    %v965 = vrcp.pop %v961
    %v966 = vmul.f32 1.0, %v965
    %v967 = vrcp.pop %v962
    %v968 = vmul.f32 1.0, %v967
    %v969 = vld [vmem:[%s1] sm:$0x3]
    %v970 = vld [vmem:[%s12] sm:$0xf]
    %vm971 = vcmask 31744
    %v973 = vsel %vm971, %v969, 0
    %vm975 = vcmask 1043456
    %v977 = vsel %vm975, %v970, 0
    %979 = vmatprep.subr.mxu0 0.0
    %980 = vmatpush1.msra.mxu0 0.0
    %981 = vmatprep.subr.mxu0 0.0
    %982 = vmatpush1.msra.mxu0 0.0
    %983 = vmatprep.subr.mxu0 0.0
    %984 = vmatpush1.msra.mxu0 0.0
    %985 = vmatprep.subr.mxu0 0.0
    %986 = vmatpush1.msra.mxu0 0.0
    %987 = vmatprep.subr.mxu0 0.0
    %988 = vmatpush1.msra.mxu0 0.0
    %989 = vmatprep.subr.mxu0 0.0
    %990 = vmatpush1.msra.mxu0 0.0
    %991 = vmatprep.subr.mxu0 0.0
    %992 = vmatpush1.msra.mxu0 0.0
    %993 = vmatprep.subr.mxu0 0.0
    %994 = vmatpush1.msra.mxu0 0.0
    %995 = vmatprep.subr.mxu0 0.0
    %996 = vmatpush1.msra.mxu0 0.0
    %997 = vmatprep.subr.mxu0 0.0
    %998 = vmatpush1.msra.mxu0 0.0
    %999 = vmatprep.subr.mxu0 0.0
    %1000 = vmatpush1.msra.mxu0 0.0
    %1001 = vmatprep.subr.mxu0 0.0
    %1002 = vmatpush1.msra.mxu0 0.0
    %1003 = vmatprep.subr.mxu0 0.0
    %1004 = vmatpush1.msra.mxu0 0.0
    %1005 = vmatprep.subr.mxu0 0.0
    %1006 = vmatpush1.msra.mxu0 0.0
    %1007 = vmatprep.subr.mxu0 0.0
    %1008 = vmatpush1.msra.mxu0 0.0
    %1009 = vmatprep.subr.mxu0 0.0
    %1010 = vmatpush1.msra.mxu0 %v977
    %1011 = vmatprep.subr.mxu0 0.0
    %1012 = vmatpush2.msra.mxu0 0.0
    %1013 = vmatprep.subr.mxu0 0.0
    %1014 = vmatpush2.msra.mxu0 0.0
    %1015 = vmatprep.subr.mxu0 0.0
    %1016 = vmatpush2.msra.mxu0 0.0
    %1017 = vmatprep.subr.mxu0 0.0
    %1018 = vmatpush2.msra.mxu0 0.0
    %1019 = vmatprep.subr.mxu0 0.0
    %1020 = vmatpush2.msra.mxu0 0.0
    %1021 = vmatprep.subr.mxu0 0.0
    %1022 = vmatpush2.msra.mxu0 0.0
    %1023 = vmatprep.subr.mxu0 0.0
    %1024 = vmatpush2.msra.mxu0 0.0
    %1025 = vmatprep.subr.mxu0 0.0
    %1026 = vmatpush2.msra.mxu0 0.0
    %1027 = vmatprep.subr.mxu0 0.0
    %1028 = vmatpush2.msra.mxu0 0.0
    %1029 = vmatprep.subr.mxu0 0.0
    %1030 = vmatpush2.msra.mxu0 0.0
    %1031 = vmatprep.subr.mxu0 0.0
    %1032 = vmatpush2.msra.mxu0 0.0
    %1033 = vmatprep.subr.mxu0 0.0
    %1034 = vmatpush2.msra.mxu0 0.0
    %1035 = vmatprep.subr.mxu0 0.0
    %1036 = vmatpush2.msra.mxu0 0.0
    %1037 = vmatprep.subr.mxu0 0.0
    %1038 = vmatpush2.msra.mxu0 0.0
    %1039 = vmatprep.subr.mxu0 0.0
    %1040 = vmatpush2.msra.mxu0 0.0
    %1041 = vmatprep.subr.mxu0 0.0
    %1042 = vmatpush2.msra.mxu0 0.0
    %1043 = vmatprep.mubr.f32.mxu0 0.0
    %1044 = vmatmul.mubr.f32.gmra.mxu0 %v973
    %v1045 = vpop.f32.mrf.mxu0
    %v1046 = vadd.f32 0.0, %v1045
    %v1047 = vpop.f32.mrf.mxu0
    %1048 = vdwg.mxu0
    %v1049 = vld [vmem:[%s13] sm:$0xf]
    %v1051 = vsel %vm975, %v1049, 0
    %1053 = vmatprep.subr.mxu0 0.0
    %1054 = vmatpush1.msra.mxu0 0.0
    %1055 = vmatprep.subr.mxu0 0.0
    %1056 = vmatpush1.msra.mxu0 0.0
    %1057 = vmatprep.subr.mxu0 0.0
    %1058 = vmatpush1.msra.mxu0 0.0
    %1059 = vmatprep.subr.mxu0 0.0
    %1060 = vmatpush1.msra.mxu0 0.0
    %1061 = vmatprep.subr.mxu0 0.0
    %1062 = vmatpush1.msra.mxu0 0.0
    %1063 = vmatprep.subr.mxu0 0.0
    %1064 = vmatpush1.msra.mxu0 0.0
    %1065 = vmatprep.subr.mxu0 0.0
    %1066 = vmatpush1.msra.mxu0 0.0
    %1067 = vmatprep.subr.mxu0 0.0
    %1068 = vmatpush1.msra.mxu0 0.0
    %1069 = vmatprep.subr.mxu0 0.0
    %1070 = vmatpush1.msra.mxu0 0.0
    %1071 = vmatprep.subr.mxu0 0.0
    %1072 = vmatpush1.msra.mxu0 0.0
    %1073 = vmatprep.subr.mxu0 0.0
    %1074 = vmatpush1.msra.mxu0 0.0
    %1075 = vmatprep.subr.mxu0 0.0
    %1076 = vmatpush1.msra.mxu0 0.0
    %1077 = vmatprep.subr.mxu0 0.0
    %1078 = vmatpush1.msra.mxu0 0.0
    %1079 = vmatprep.subr.mxu0 0.0
    %1080 = vmatpush1.msra.mxu0 0.0
    %1081 = vmatprep.subr.mxu0 0.0
    %1082 = vmatpush1.msra.mxu0 0.0
    %1083 = vmatprep.subr.mxu0 0.0
    %1084 = vmatpush1.msra.mxu0 %v1051
    %1085 = vmatprep.subr.mxu0 0.0
    %1086 = vmatpush2.msra.mxu0 0.0
    %1087 = vmatprep.subr.mxu0 0.0
    %1088 = vmatpush2.msra.mxu0 0.0
    %1089 = vmatprep.subr.mxu0 0.0
    %1090 = vmatpush2.msra.mxu0 0.0
    %1091 = vmatprep.subr.mxu0 0.0
    %1092 = vmatpush2.msra.mxu0 0.0
    %1093 = vmatprep.subr.mxu0 0.0
    %1094 = vmatpush2.msra.mxu0 0.0
    %1095 = vmatprep.subr.mxu0 0.0
    %1096 = vmatpush2.msra.mxu0 0.0
    %1097 = vmatprep.subr.mxu0 0.0
    %1098 = vmatpush2.msra.mxu0 0.0
    %1099 = vmatprep.subr.mxu0 0.0
    %1100 = vmatpush2.msra.mxu0 0.0
    %1101 = vmatprep.subr.mxu0 0.0
    %1102 = vmatpush2.msra.mxu0 0.0
    %1103 = vmatprep.subr.mxu0 0.0
    %1104 = vmatpush2.msra.mxu0 0.0
    %1105 = vmatprep.subr.mxu0 0.0
    %1106 = vmatpush2.msra.mxu0 0.0
    %1107 = vmatprep.subr.mxu0 0.0
    %1108 = vmatpush2.msra.mxu0 0.0
    %1109 = vmatprep.subr.mxu0 0.0
    %1110 = vmatpush2.msra.mxu0 0.0
    %1111 = vmatprep.subr.mxu0 0.0
    %1112 = vmatpush2.msra.mxu0 0.0
    %1113 = vmatprep.subr.mxu0 0.0
    %1114 = vmatpush2.msra.mxu0 0.0
    %1115 = vmatprep.subr.mxu0 0.0
    %1116 = vmatpush2.msra.mxu0 0.0
    %1117 = vmatprep.mubr.f32.mxu0 0.0
    %1118 = vmatmul.mubr.f32.gmra.mxu0 %v973
    %v1119 = vpop.f32.mrf.mxu0
    %v1120 = vadd.f32 0.0, %v1119
    %v1121 = vpop.f32.mrf.mxu0
    %1122 = vdwg.mxu0
    %v1123 = vmax.f32 %v1046, %v1120
    %v1124 = vld [vmem:[%s14] sm:$0x1]
    %v1126 = vlaneseq
    %v1127 = vshrl.u32 %v1126, 7
    %v1128 = vsub.s32 0, %v1127
    %v1129 = vrot.slane %v1124, %v1128
    %v1131 = vadd.f32 %v1123, %v1129
    %v1132 = vmax.f32 %v1131, 0.0
    %v1133 = vld [vmem:[#allocation10] sm:$0xff]
    %v1134 = vld [vmem:[#allocation10 + $0x8] sm:$0xff]
    %v1135 = vld [vmem:[#allocation10 + $0x10] sm:$0xff]
    %v1136 = vld [vmem:[#allocation10 + $0x18] sm:$0xff]
    %v1137 = vld [vmem:[#allocation10 + $0x20] sm:$0xff]
    %v1138 = vld [vmem:[#allocation10 + $0x28] sm:$0xff]
    %v1139 = vld [vmem:[#allocation10 + $0x30] sm:$0xff]
    %v1140 = vld [vmem:[#allocation10 + $0x38] sm:$0xff]
    %v1141 = vld [vmem:[#allocation10 + $0x40] sm:$0xff]
    %v1142 = vld [vmem:[#allocation10 + $0x48] sm:$0xff]
    %v1143 = vld [vmem:[#allocation10 + $0x50] sm:$0xff]
    %v1144 = vld [vmem:[#allocation10 + $0x58] sm:$0xff]
    %v1145 = vld [vmem:[#allocation10 + $0x60] sm:$0xff]
    %v1146 = vld [vmem:[#allocation10 + $0x68] sm:$0xff]
    %v1147 = vld [vmem:[#allocation10 + $0x70] sm:$0xff]
    %v1148 = vld [vmem:[#allocation10 + $0x78] sm:$0xff]
    %1149 = vmatprep.subr.mxu0 0.0
    %1150 = vmatpush1.msra.mxu0 %v1148
    %1151 = vmatprep.subr.mxu0 0.0
    %1152 = vmatpush1.msra.mxu0 %v1147
    %1153 = vmatprep.subr.mxu0 0.0
    %1154 = vmatpush1.msra.mxu0 %v1146
    %1155 = vmatprep.subr.mxu0 0.0
    %1156 = vmatpush1.msra.mxu0 %v1145
    %1157 = vmatprep.subr.mxu0 0.0
    %1158 = vmatpush1.msra.mxu0 %v1144
    %1159 = vmatprep.subr.mxu0 0.0
    %1160 = vmatpush1.msra.mxu0 %v1143
    %1161 = vmatprep.subr.mxu0 0.0
    %1162 = vmatpush1.msra.mxu0 %v1142
    %1163 = vmatprep.subr.mxu0 0.0
    %1164 = vmatpush1.msra.mxu0 %v1141
    %1165 = vmatprep.subr.mxu0 0.0
    %1166 = vmatpush1.msra.mxu0 %v1140
    %1167 = vmatprep.subr.mxu0 0.0
    %1168 = vmatpush1.msra.mxu0 %v1139
    %1169 = vmatprep.subr.mxu0 0.0
    %1170 = vmatpush1.msra.mxu0 %v1138
    %1171 = vmatprep.subr.mxu0 0.0
    %1172 = vmatpush1.msra.mxu0 %v1137
    %1173 = vmatprep.subr.mxu0 0.0
    %1174 = vmatpush1.msra.mxu0 %v1136
    %1175 = vmatprep.subr.mxu0 0.0
    %1176 = vmatpush1.msra.mxu0 %v1135
    %1177 = vmatprep.subr.mxu0 0.0
    %1178 = vmatpush1.msra.mxu0 %v1134
    %1179 = vmatprep.subr.mxu0 0.0
    %1180 = vmatpush1.msra.mxu0 %v1133
    %1181 = vmatprep.subr.mxu0 0.0
    %1182 = vmatpush2.msra.mxu0 0.0
    %1183 = vmatprep.subr.mxu0 0.0
    %1184 = vmatpush2.msra.mxu0 0.0
    %1185 = vmatprep.subr.mxu0 0.0
    %1186 = vmatpush2.msra.mxu0 0.0
    %1187 = vmatprep.subr.mxu0 0.0
    %1188 = vmatpush2.msra.mxu0 0.0
    %1189 = vmatprep.subr.mxu0 0.0
    %1190 = vmatpush2.msra.mxu0 0.0
    %1191 = vmatprep.subr.mxu0 0.0
    %1192 = vmatpush2.msra.mxu0 0.0
    %1193 = vmatprep.subr.mxu0 0.0
    %1194 = vmatpush2.msra.mxu0 0.0
    %1195 = vmatprep.subr.mxu0 0.0
    %1196 = vmatpush2.msra.mxu0 0.0
    %1197 = vmatprep.subr.mxu0 0.0
    %1198 = vmatpush2.msra.mxu0 0.0
    %1199 = vmatprep.subr.mxu0 0.0
    %1200 = vmatpush2.msra.mxu0 0.0
    %1201 = vmatprep.subr.mxu0 0.0
    %1202 = vmatpush2.msra.mxu0 0.0
    %1203 = vmatprep.subr.mxu0 0.0
    %1204 = vmatpush2.msra.mxu0 0.0
    %1205 = vmatprep.subr.mxu0 0.0
    %1206 = vmatpush2.msra.mxu0 0.0
    %1207 = vmatprep.subr.mxu0 0.0
    %1208 = vmatpush2.msra.mxu0 0.0
    %1209 = vmatprep.subr.mxu0 0.0
    %1210 = vmatpush2.msra.mxu0 0.0
    %1211 = vmatprep.subr.mxu0 0.0
    %1212 = vmatpush2.msra.mxu0 0.0
    %1213 = vmatprep.mubr.f32.mxu0 0.0
    %1214 = vmatmul.mubr.f32.gmra.mxu0 %v1132
    %v1215 = vpop.f32.mrf.mxu0
    %v1216 = vadd.f32 0.0, %v1215
    %v1217 = vpop.f32.mrf.mxu0
    %1218 = vdwg.mxu0
    %v1219 = vld [vmem:[#allocation11] sm:$0xff]
    %v1220 = vld [vmem:[#allocation11 + $0x8] sm:$0xff]
    %v1221 = vld [vmem:[#allocation11 + $0x10] sm:$0xff]
    %v1222 = vld [vmem:[#allocation11 + $0x18] sm:$0xff]
    %v1223 = vld [vmem:[#allocation11 + $0x20] sm:$0xff]
    %v1224 = vld [vmem:[#allocation11 + $0x28] sm:$0xff]
    %v1225 = vld [vmem:[#allocation11 + $0x30] sm:$0xff]
    %v1226 = vld [vmem:[#allocation11 + $0x38] sm:$0xff]
    %v1227 = vld [vmem:[#allocation11 + $0x40] sm:$0xff]
    %v1228 = vld [vmem:[#allocation11 + $0x48] sm:$0xff]
    %v1229 = vld [vmem:[#allocation11 + $0x50] sm:$0xff]
    %v1230 = vld [vmem:[#allocation11 + $0x58] sm:$0xff]
    %v1231 = vld [vmem:[#allocation11 + $0x60] sm:$0xff]
    %v1232 = vld [vmem:[#allocation11 + $0x68] sm:$0xff]
    %v1233 = vld [vmem:[#allocation11 + $0x70] sm:$0xff]
    %v1234 = vld [vmem:[#allocation11 + $0x78] sm:$0xff]
    %1235 = vmatprep.subr.mxu0 0.0
    %1236 = vmatpush1.msra.mxu0 %v1234
    %1237 = vmatprep.subr.mxu0 0.0
    %1238 = vmatpush1.msra.mxu0 %v1233
    %1239 = vmatprep.subr.mxu0 0.0
    %1240 = vmatpush1.msra.mxu0 %v1232
    %1241 = vmatprep.subr.mxu0 0.0
    %1242 = vmatpush1.msra.mxu0 %v1231
    %1243 = vmatprep.subr.mxu0 0.0
    %1244 = vmatpush1.msra.mxu0 %v1230
    %1245 = vmatprep.subr.mxu0 0.0
    %1246 = vmatpush1.msra.mxu0 %v1229
    %1247 = vmatprep.subr.mxu0 0.0
    %1248 = vmatpush1.msra.mxu0 %v1228
    %1249 = vmatprep.subr.mxu0 0.0
    %1250 = vmatpush1.msra.mxu0 %v1227
    %1251 = vmatprep.subr.mxu0 0.0
    %1252 = vmatpush1.msra.mxu0 %v1226
    %1253 = vmatprep.subr.mxu0 0.0
    %1254 = vmatpush1.msra.mxu0 %v1225
    %1255 = vmatprep.subr.mxu0 0.0
    %1256 = vmatpush1.msra.mxu0 %v1224
    %1257 = vmatprep.subr.mxu0 0.0
    %1258 = vmatpush1.msra.mxu0 %v1223
    %1259 = vmatprep.subr.mxu0 0.0
    %1260 = vmatpush1.msra.mxu0 %v1222
    %1261 = vmatprep.subr.mxu0 0.0
    %1262 = vmatpush1.msra.mxu0 %v1221
    %1263 = vmatprep.subr.mxu0 0.0
    %1264 = vmatpush1.msra.mxu0 %v1220
    %1265 = vmatprep.subr.mxu0 0.0
    %1266 = vmatpush1.msra.mxu0 %v1219
    %1267 = vmatprep.subr.mxu0 0.0
    %1268 = vmatpush2.msra.mxu0 0.0
    %1269 = vmatprep.subr.mxu0 0.0
    %1270 = vmatpush2.msra.mxu0 0.0
    %1271 = vmatprep.subr.mxu0 0.0
    %1272 = vmatpush2.msra.mxu0 0.0
    %1273 = vmatprep.subr.mxu0 0.0
    %1274 = vmatpush2.msra.mxu0 0.0
    %1275 = vmatprep.subr.mxu0 0.0
    %1276 = vmatpush2.msra.mxu0 0.0
    %1277 = vmatprep.subr.mxu0 0.0
    %1278 = vmatpush2.msra.mxu0 0.0
    %1279 = vmatprep.subr.mxu0 0.0
    %1280 = vmatpush2.msra.mxu0 0.0
    %1281 = vmatprep.subr.mxu0 0.0
    %1282 = vmatpush2.msra.mxu0 0.0
    %1283 = vmatprep.subr.mxu0 0.0
    %1284 = vmatpush2.msra.mxu0 0.0
    %1285 = vmatprep.subr.mxu0 0.0
    %1286 = vmatpush2.msra.mxu0 0.0
    %1287 = vmatprep.subr.mxu0 0.0
    %1288 = vmatpush2.msra.mxu0 0.0
    %1289 = vmatprep.subr.mxu0 0.0
    %1290 = vmatpush2.msra.mxu0 0.0
    %1291 = vmatprep.subr.mxu0 0.0
    %1292 = vmatpush2.msra.mxu0 0.0
    %1293 = vmatprep.subr.mxu0 0.0
    %1294 = vmatpush2.msra.mxu0 0.0
    %1295 = vmatprep.subr.mxu0 0.0
    %1296 = vmatpush2.msra.mxu0 0.0
    %1297 = vmatprep.subr.mxu0 0.0
    %1298 = vmatpush2.msra.mxu0 0.0
    %1299 = vmatprep.mubr.f32.mxu0 0.0
    %1300 = vmatmul.mubr.f32.gmra.mxu0 %v1132
    %v1301 = vpop.f32.mrf.mxu0
    %v1302 = vadd.f32 0.0, %v1301
    %v1303 = vpop.f32.mrf.mxu0
    %1304 = vdwg.mxu0
    %v1305 = vmax.f32 %v1216, %v1302
    %v1306 = vld [vmem:[%s17] sm:$0x1]
    %v1308 = vlaneseq
    %v1309 = vshrl.u32 %v1308, 7
    %v1310 = vsub.s32 0, %v1309
    %v1311 = vrot.slane %v1306, %v1310
    %v1313 = vadd.f32 %v1305, %v1311
    %v1314 = vmax.f32 %v1313, 0.0
    %v1315 = vld [vmem:[#allocation13] sm:$0xff]
    %v1316 = vld [vmem:[#allocation13 + $0x8] sm:$0xff]
    %v1317 = vld [vmem:[#allocation13 + $0x10] sm:$0xff]
    %v1318 = vld [vmem:[#allocation13 + $0x18] sm:$0xff]
    %v1319 = vld [vmem:[#allocation13 + $0x20] sm:$0xff]
    %v1320 = vld [vmem:[#allocation13 + $0x28] sm:$0xff]
    %v1321 = vld [vmem:[#allocation13 + $0x30] sm:$0xff]
    %v1322 = vld [vmem:[#allocation13 + $0x38] sm:$0xff]
    %v1323 = vld [vmem:[#allocation13 + $0x40] sm:$0xff]
    %v1324 = vld [vmem:[#allocation13 + $0x48] sm:$0xff]
    %v1325 = vld [vmem:[#allocation13 + $0x50] sm:$0xff]
    %v1326 = vld [vmem:[#allocation13 + $0x58] sm:$0xff]
    %v1327 = vld [vmem:[#allocation13 + $0x60] sm:$0xff]
    %v1328 = vld [vmem:[#allocation13 + $0x68] sm:$0xff]
    %v1329 = vld [vmem:[#allocation13 + $0x70] sm:$0xff]
    %v1330 = vld [vmem:[#allocation13 + $0x78] sm:$0xff]
    %v1331 = vld [vmem:[#allocation13 + $0x80] sm:$0xff]
    %v1332 = vld [vmem:[#allocation13 + $0x88] sm:$0xff]
    %v1333 = vld [vmem:[#allocation13 + $0x90] sm:$0xff]
    %v1334 = vld [vmem:[#allocation13 + $0x98] sm:$0xff]
    %v1335 = vld [vmem:[#allocation13 + $0xa0] sm:$0xff]
    %v1336 = vld [vmem:[#allocation13 + $0xa8] sm:$0xff]
    %v1337 = vld [vmem:[#allocation13 + $0xb0] sm:$0xff]
    %v1338 = vld [vmem:[#allocation13 + $0xb8] sm:$0xff]
    %v1339 = vld [vmem:[#allocation13 + $0xc0] sm:$0xff]
    %v1340 = vld [vmem:[#allocation13 + $0xc8] sm:$0xff]
    %v1341 = vld [vmem:[#allocation13 + $0xd0] sm:$0xff]
    %v1342 = vld [vmem:[#allocation13 + $0xd8] sm:$0xff]
    %v1343 = vld [vmem:[#allocation13 + $0xe0] sm:$0xff]
    %v1344 = vld [vmem:[#allocation13 + $0xe8] sm:$0xff]
    %v1345 = vld [vmem:[#allocation13 + $0xf0] sm:$0xff]
    %v1346 = vld [vmem:[#allocation13 + $0xf8] sm:$0xff]
    %v1347 = vld [vmem:[%s19] sm:$0x3]
    %v1349 = vlaneseq
    %v1350 = vshrl.u32 %v1349, 7
    %v1351 = vsub.s32 0, %v1350
    %v1352 = vrot.slane %v1347, %v1351
    %v1353 = vlaneseq
    %v1354 = vshrl.u32 %v1353, 7
    %v1355 = vsub.s32 1, %v1354
    %v1356 = vrot.slane %v1347, %v1355
    %1359 = vmatprep.subr.mxu0 %v1346
    %1360 = vmatpush1.msra.mxu0 %v1345
    %1361 = vmatprep.subr.mxu0 %v1344
    %1362 = vmatpush1.msra.mxu0 %v1343
    %1363 = vmatprep.subr.mxu0 %v1342
    %1364 = vmatpush1.msra.mxu0 %v1341
    %1365 = vmatprep.subr.mxu0 %v1340
    %1366 = vmatpush1.msra.mxu0 %v1339
    %1367 = vmatprep.subr.mxu0 %v1338
    %1368 = vmatpush1.msra.mxu0 %v1337
    %1369 = vmatprep.subr.mxu0 %v1336
    %1370 = vmatpush1.msra.mxu0 %v1335
    %1371 = vmatprep.subr.mxu0 %v1334
    %1372 = vmatpush1.msra.mxu0 %v1333
    %1373 = vmatprep.subr.mxu0 %v1332
    %1374 = vmatpush1.msra.mxu0 %v1331
    %1375 = vmatprep.subr.mxu0 %v1330
    %1376 = vmatpush1.msra.mxu0 %v1329
    %1377 = vmatprep.subr.mxu0 %v1328
    %1378 = vmatpush1.msra.mxu0 %v1327
    %1379 = vmatprep.subr.mxu0 %v1326
    %1380 = vmatpush1.msra.mxu0 %v1325
    %1381 = vmatprep.subr.mxu0 %v1324
    %1382 = vmatpush1.msra.mxu0 %v1323
    %1383 = vmatprep.subr.mxu0 %v1322
    %1384 = vmatpush1.msra.mxu0 %v1321
    %1385 = vmatprep.subr.mxu0 %v1320
    %1386 = vmatpush1.msra.mxu0 %v1319
    %1387 = vmatprep.subr.mxu0 %v1318
    %1388 = vmatpush1.msra.mxu0 %v1317
    %1389 = vmatprep.subr.mxu0 %v1316
    %1390 = vmatpush1.msra.mxu0 %v1315
    %1391 = vmatprep.subr.mxu0 0.0
    %1392 = vmatpush2.msra.mxu0 0.0
    %1393 = vmatprep.subr.mxu0 0.0
    %1394 = vmatpush2.msra.mxu0 0.0
    %1395 = vmatprep.subr.mxu0 0.0
    %1396 = vmatpush2.msra.mxu0 0.0
    %1397 = vmatprep.subr.mxu0 0.0
    %1398 = vmatpush2.msra.mxu0 0.0
    %1399 = vmatprep.subr.mxu0 0.0
    %1400 = vmatpush2.msra.mxu0 0.0
    %1401 = vmatprep.subr.mxu0 0.0
    %1402 = vmatpush2.msra.mxu0 0.0
    %1403 = vmatprep.subr.mxu0 0.0
    %1404 = vmatpush2.msra.mxu0 0.0
    %1405 = vmatprep.subr.mxu0 0.0
    %1406 = vmatpush2.msra.mxu0 0.0
    %1407 = vmatprep.subr.mxu0 0.0
    %1408 = vmatpush2.msra.mxu0 0.0
    %1409 = vmatprep.subr.mxu0 0.0
    %1410 = vmatpush2.msra.mxu0 0.0
    %1411 = vmatprep.subr.mxu0 0.0
    %1412 = vmatpush2.msra.mxu0 0.0
    %1413 = vmatprep.subr.mxu0 0.0
    %1414 = vmatpush2.msra.mxu0 0.0
    %1415 = vmatprep.subr.mxu0 0.0
    %1416 = vmatpush2.msra.mxu0 0.0
    %1417 = vmatprep.subr.mxu0 0.0
    %1418 = vmatpush2.msra.mxu0 0.0
    %1419 = vmatprep.subr.mxu0 0.0
    %1420 = vmatpush2.msra.mxu0 0.0
    %1421 = vmatprep.subr.mxu0 0.0
    %1422 = vmatpush2.msra.mxu0 0.0
    %1423 = vmatprep.mubr.f32.mxu0 0.0
    %1424 = vmatmul.mubr.f32.gmra.mxu0 %v1314
    %v1425 = vpop.f32.mrf.mxu0
    %v1426 = vadd.f32 %v1352, %v1425
    %v1427 = vpop.f32.mrf.mxu0
    %v1428 = vadd.f32 %v1356, %v1427
    %1429 = vdwg.mxu0
    %v1430 = vxor.u32 %v1426, 2147483648
    %v1431 = vxor.u32 %v1428, 2147483648
    %v1432 = vmul.f32 %v1430, 1.442695
    %v1433 = vpow.pop %v1432
    %v1434 = vmul.f32 %v1431, 1.442695
    %v1435 = vpow.pop %v1434
    %v1436 = vadd.f32 %v1433, 1.0
    %v1437 = vadd.f32 %v1435, 1.0
    %v1438 = vrcp.pop %v1436
    %v1439 = vmul.f32 1.0, %v1438
    %v1440 = vrcp.pop %v1437
    %v1441 = vmul.f32 1.0, %v1440
    %v1442 = vld [vmem:[#allocation14] sm:$0xff]
    %v1443 = vld [vmem:[#allocation14 + $0x8] sm:$0xff]
    %v1444 = vld [vmem:[#allocation14 + $0x10] sm:$0xff]
    %v1445 = vld [vmem:[#allocation14 + $0x18] sm:$0xff]
    %v1446 = vld [vmem:[#allocation14 + $0x20] sm:$0xff]
    %v1447 = vld [vmem:[#allocation14 + $0x28] sm:$0xff]
    %v1448 = vld [vmem:[#allocation14 + $0x30] sm:$0xff]
    %v1449 = vld [vmem:[#allocation14 + $0x38] sm:$0xff]
    %v1450 = vld [vmem:[#allocation14 + $0x40] sm:$0xff]
    %v1451 = vld [vmem:[#allocation14 + $0x48] sm:$0xff]
    %v1452 = vld [vmem:[#allocation14 + $0x50] sm:$0xff]
    %v1453 = vld [vmem:[#allocation14 + $0x58] sm:$0xff]
    %v1454 = vld [vmem:[#allocation14 + $0x60] sm:$0xff]
    %v1455 = vld [vmem:[#allocation14 + $0x68] sm:$0xff]
    %v1456 = vld [vmem:[#allocation14 + $0x70] sm:$0xff]
    %v1457 = vld [vmem:[#allocation14 + $0x78] sm:$0xff]
    %v1458 = vld [vmem:[#allocation14 + $0x80] sm:$0xff]
    %v1459 = vld [vmem:[#allocation14 + $0x88] sm:$0xff]
    %v1460 = vld [vmem:[#allocation14 + $0x90] sm:$0xff]
    %v1461 = vld [vmem:[#allocation14 + $0x98] sm:$0xff]
    %v1462 = vld [vmem:[#allocation14 + $0xa0] sm:$0xff]
    %v1463 = vld [vmem:[#allocation14 + $0xa8] sm:$0xff]
    %v1464 = vld [vmem:[#allocation14 + $0xb0] sm:$0xff]
    %v1465 = vld [vmem:[#allocation14 + $0xb8] sm:$0xff]
    %v1466 = vld [vmem:[#allocation14 + $0xc0] sm:$0xff]
    %v1467 = vld [vmem:[#allocation14 + $0xc8] sm:$0xff]
    %v1468 = vld [vmem:[#allocation14 + $0xd0] sm:$0xff]
    %v1469 = vld [vmem:[#allocation14 + $0xd8] sm:$0xff]
    %v1470 = vld [vmem:[#allocation14 + $0xe0] sm:$0xff]
    %v1471 = vld [vmem:[#allocation14 + $0xe8] sm:$0xff]
    %v1472 = vld [vmem:[#allocation14 + $0xf0] sm:$0xff]
    %v1473 = vld [vmem:[#allocation14 + $0xf8] sm:$0xff]
    %v1474 = vld [vmem:[%s21] sm:$0x1]
    %v1476 = vlaneseq
    %v1477 = vshrl.u32 %v1476, 7
    %v1478 = vsub.s32 0, %v1477
    %v1479 = vrot.slane %v1474, %v1478
    %1481 = vmatprep.subr.mxu0 0.0
    %1482 = vmatpush1.msra.mxu0 %v1457
    %1483 = vmatprep.subr.mxu0 0.0
    %1484 = vmatpush1.msra.mxu0 %v1456
    %1485 = vmatprep.subr.mxu0 0.0
    %1486 = vmatpush1.msra.mxu0 %v1455
    %1487 = vmatprep.subr.mxu0 0.0
    %1488 = vmatpush1.msra.mxu0 %v1454
    %1489 = vmatprep.subr.mxu0 0.0
    %1490 = vmatpush1.msra.mxu0 %v1453
    %1491 = vmatprep.subr.mxu0 0.0
    %1492 = vmatpush1.msra.mxu0 %v1452
    %1493 = vmatprep.subr.mxu0 0.0
    %1494 = vmatpush1.msra.mxu0 %v1451
    %1495 = vmatprep.subr.mxu0 0.0
    %1496 = vmatpush1.msra.mxu0 %v1450
    %1497 = vmatprep.subr.mxu0 0.0
    %1498 = vmatpush1.msra.mxu0 %v1449
    %1499 = vmatprep.subr.mxu0 0.0
    %1500 = vmatpush1.msra.mxu0 %v1448
    %1501 = vmatprep.subr.mxu0 0.0
    %1502 = vmatpush1.msra.mxu0 %v1447
    %1503 = vmatprep.subr.mxu0 0.0
    %1504 = vmatpush1.msra.mxu0 %v1446
    %1505 = vmatprep.subr.mxu0 0.0
    %1506 = vmatpush1.msra.mxu0 %v1445
    %1507 = vmatprep.subr.mxu0 0.0
    %1508 = vmatpush1.msra.mxu0 %v1444
    %1509 = vmatprep.subr.mxu0 0.0
    %1510 = vmatpush1.msra.mxu0 %v1443
    %1511 = vmatprep.subr.mxu0 0.0
    %1512 = vmatpush1.msra.mxu0 %v1442
    %1513 = vmatprep.subr.mxu0 0.0
    %1514 = vmatpush2.msra.mxu0 %v1473
    %1515 = vmatprep.subr.mxu0 0.0
    %1516 = vmatpush2.msra.mxu0 %v1472
    %1517 = vmatprep.subr.mxu0 0.0
    %1518 = vmatpush2.msra.mxu0 %v1471
    %1519 = vmatprep.subr.mxu0 0.0
    %1520 = vmatpush2.msra.mxu0 %v1470
    %1521 = vmatprep.subr.mxu0 0.0
    %1522 = vmatpush2.msra.mxu0 %v1469
    %1523 = vmatprep.subr.mxu0 0.0
    %1524 = vmatpush2.msra.mxu0 %v1468
    %1525 = vmatprep.subr.mxu0 0.0
    %1526 = vmatpush2.msra.mxu0 %v1467
    %1527 = vmatprep.subr.mxu0 0.0
    %1528 = vmatpush2.msra.mxu0 %v1466
    %1529 = vmatprep.subr.mxu0 0.0
    %1530 = vmatpush2.msra.mxu0 %v1465
    %1531 = vmatprep.subr.mxu0 0.0
    %1532 = vmatpush2.msra.mxu0 %v1464
    %1533 = vmatprep.subr.mxu0 0.0
    %1534 = vmatpush2.msra.mxu0 %v1463
    %1535 = vmatprep.subr.mxu0 0.0
    %1536 = vmatpush2.msra.mxu0 %v1462
    %1537 = vmatprep.subr.mxu0 0.0
    %1538 = vmatpush2.msra.mxu0 %v1461
    %1539 = vmatprep.subr.mxu0 0.0
    %1540 = vmatpush2.msra.mxu0 %v1460
    %1541 = vmatprep.subr.mxu0 0.0
    %1542 = vmatpush2.msra.mxu0 %v1459
    %1543 = vmatprep.subr.mxu0 0.0
    %1544 = vmatpush2.msra.mxu0 %v1458
    %1545 = vmatprep.mubr.f32.mxu0 %v1441
    %1546 = vmatmul.mubr.f32.gmra.mxu0 %v1439
    %v1547 = vpop.f32.mrf.mxu0
    %v1548 = vadd.f32 %v1479, %v1547
    %v1549 = vpop.f32.mrf.mxu0
    %1550 = vdwg.mxu0
    %v1551 = vld [vmem:[#allocation16] sm:$0xff]
    %v1552 = vld [vmem:[#allocation16 + $0x8] sm:$0xff]
    %v1553 = vld [vmem:[#allocation16 + $0x10] sm:$0xff]
    %v1554 = vld [vmem:[#allocation16 + $0x18] sm:$0xff]
    %v1555 = vld [vmem:[#allocation16 + $0x20] sm:$0xff]
    %v1556 = vld [vmem:[#allocation16 + $0x28] sm:$0xff]
    %v1557 = vld [vmem:[#allocation16 + $0x30] sm:$0xff]
    %v1558 = vld [vmem:[#allocation16 + $0x38] sm:$0xff]
    %v1559 = vld [vmem:[#allocation16 + $0x40] sm:$0xff]
    %v1560 = vld [vmem:[#allocation16 + $0x48] sm:$0xff]
    %v1561 = vld [vmem:[#allocation16 + $0x50] sm:$0xff]
    %v1562 = vld [vmem:[#allocation16 + $0x58] sm:$0xff]
    %v1563 = vld [vmem:[#allocation16 + $0x60] sm:$0xff]
    %v1564 = vld [vmem:[#allocation16 + $0x68] sm:$0xff]
    %v1565 = vld [vmem:[#allocation16 + $0x70] sm:$0xff]
    %v1566 = vld [vmem:[#allocation16 + $0x78] sm:$0xff]
    %v1567 = vld [vmem:[%s23] sm:$0x1]
    %v1569 = vlaneseq
    %v1570 = vshrl.u32 %v1569, 7
    %v1571 = vsub.s32 0, %v1570
    %v1572 = vrot.slane %v1567, %v1571
    %1574 = vmatprep.subr.mxu0 0.0
    %1575 = vmatpush1.msra.mxu0 %v1566
    %1576 = vmatprep.subr.mxu0 0.0
    %1577 = vmatpush1.msra.mxu0 %v1565
    %1578 = vmatprep.subr.mxu0 0.0
    %1579 = vmatpush1.msra.mxu0 %v1564
    %1580 = vmatprep.subr.mxu0 0.0
    %1581 = vmatpush1.msra.mxu0 %v1563
    %1582 = vmatprep.subr.mxu0 0.0
    %1583 = vmatpush1.msra.mxu0 %v1562
    %1584 = vmatprep.subr.mxu0 0.0
    %1585 = vmatpush1.msra.mxu0 %v1561
    %1586 = vmatprep.subr.mxu0 0.0
    %1587 = vmatpush1.msra.mxu0 %v1560
    %1588 = vmatprep.subr.mxu0 0.0
    %1589 = vmatpush1.msra.mxu0 %v1559
    %1590 = vmatprep.subr.mxu0 0.0
    %1591 = vmatpush1.msra.mxu0 %v1558
    %1592 = vmatprep.subr.mxu0 0.0
    %1593 = vmatpush1.msra.mxu0 %v1557
    %1594 = vmatprep.subr.mxu0 0.0
    %1595 = vmatpush1.msra.mxu0 %v1556
    %1596 = vmatprep.subr.mxu0 0.0
    %1597 = vmatpush1.msra.mxu0 %v1555
    %1598 = vmatprep.subr.mxu0 0.0
    %1599 = vmatpush1.msra.mxu0 %v1554
    %1600 = vmatprep.subr.mxu0 0.0
    %1601 = vmatpush1.msra.mxu0 %v1553
    %1602 = vmatprep.subr.mxu0 0.0
    %1603 = vmatpush1.msra.mxu0 %v1552
    %1604 = vmatprep.subr.mxu0 0.0
    %1605 = vmatpush1.msra.mxu0 %v1551
    %1606 = vmatprep.subr.mxu0 0.0
    %1607 = vmatpush2.msra.mxu0 0.0
    %1608 = vmatprep.subr.mxu0 0.0
    %1609 = vmatpush2.msra.mxu0 0.0
    %1610 = vmatprep.subr.mxu0 0.0
    %1611 = vmatpush2.msra.mxu0 0.0
    %1612 = vmatprep.subr.mxu0 0.0
    %1613 = vmatpush2.msra.mxu0 0.0
    %1614 = vmatprep.subr.mxu0 0.0
    %1615 = vmatpush2.msra.mxu0 0.0
    %1616 = vmatprep.subr.mxu0 0.0
    %1617 = vmatpush2.msra.mxu0 0.0
    %1618 = vmatprep.subr.mxu0 0.0
    %1619 = vmatpush2.msra.mxu0 0.0
    %1620 = vmatprep.subr.mxu0 0.0
    %1621 = vmatpush2.msra.mxu0 0.0
    %1622 = vmatprep.subr.mxu0 0.0
    %1623 = vmatpush2.msra.mxu0 0.0
    %1624 = vmatprep.subr.mxu0 0.0
    %1625 = vmatpush2.msra.mxu0 0.0
    %1626 = vmatprep.subr.mxu0 0.0
    %1627 = vmatpush2.msra.mxu0 0.0
    %1628 = vmatprep.subr.mxu0 0.0
    %1629 = vmatpush2.msra.mxu0 0.0
    %1630 = vmatprep.subr.mxu0 0.0
    %1631 = vmatpush2.msra.mxu0 0.0
    %1632 = vmatprep.subr.mxu0 0.0
    %1633 = vmatpush2.msra.mxu0 0.0
    %1634 = vmatprep.subr.mxu0 0.0
    %1635 = vmatpush2.msra.mxu0 0.0
    %1636 = vmatprep.subr.mxu0 0.0
    %1637 = vmatpush2.msra.mxu0 0.0
    %1638 = vmatprep.mubr.f32.mxu0 0.0
    %1639 = vmatmul.mubr.f32.gmra.mxu0 %v1548
    %v1640 = vpop.f32.mrf.mxu0
    %v1641 = vadd.f32 %v1572, %v1640
    %v1642 = vpop.f32.mrf.mxu0
    %1643 = vdwg.mxu0
    %v1644 = vld [vmem:[#allocation8] sm:$0xff]
    %v1645 = vld [vmem:[#allocation8 + $0x8] sm:$0xff]
    %v1646 = vld [vmem:[#allocation8 + $0x10] sm:$0xff]
    %v1647 = vld [vmem:[#allocation8 + $0x18] sm:$0xff]
    %v1648 = vld [vmem:[#allocation8 + $0x20] sm:$0xff]
    %v1649 = vld [vmem:[#allocation8 + $0x28] sm:$0xff]
    %v1650 = vld [vmem:[#allocation8 + $0x30] sm:$0xff]
    %v1651 = vld [vmem:[#allocation8 + $0x38] sm:$0xff]
    %v1652 = vld [vmem:[#allocation8 + $0x40] sm:$0xff]
    %v1653 = vld [vmem:[#allocation8 + $0x48] sm:$0xff]
    %v1654 = vld [vmem:[#allocation8 + $0x50] sm:$0xff]
    %v1655 = vld [vmem:[#allocation8 + $0x58] sm:$0xff]
    %v1656 = vld [vmem:[#allocation8 + $0x60] sm:$0xff]
    %v1657 = vld [vmem:[#allocation8 + $0x68] sm:$0xff]
    %v1658 = vld [vmem:[#allocation8 + $0x70] sm:$0xff]
    %v1659 = vld [vmem:[#allocation8 + $0x78] sm:$0xff]
    %1660 = vmatprep.subr.mxu0 0.0
    %1661 = vmatpush1.msra.mxu0 %v1659
    %1662 = vmatprep.subr.mxu0 0.0
    %1663 = vmatpush1.msra.mxu0 %v1658
    %1664 = vmatprep.subr.mxu0 0.0
    %1665 = vmatpush1.msra.mxu0 %v1657
    %1666 = vmatprep.subr.mxu0 0.0
    %1667 = vmatpush1.msra.mxu0 %v1656
    %1668 = vmatprep.subr.mxu0 0.0
    %1669 = vmatpush1.msra.mxu0 %v1655
    %1670 = vmatprep.subr.mxu0 0.0
    %1671 = vmatpush1.msra.mxu0 %v1654
    %1672 = vmatprep.subr.mxu0 0.0
    %1673 = vmatpush1.msra.mxu0 %v1653
    %1674 = vmatprep.subr.mxu0 0.0
    %1675 = vmatpush1.msra.mxu0 %v1652
    %1676 = vmatprep.subr.mxu0 0.0
    %1677 = vmatpush1.msra.mxu0 %v1651
    %1678 = vmatprep.subr.mxu0 0.0
    %1679 = vmatpush1.msra.mxu0 %v1650
    %1680 = vmatprep.subr.mxu0 0.0
    %1681 = vmatpush1.msra.mxu0 %v1649
    %1682 = vmatprep.subr.mxu0 0.0
    %1683 = vmatpush1.msra.mxu0 %v1648
    %1684 = vmatprep.subr.mxu0 0.0
    %1685 = vmatpush1.msra.mxu0 %v1647
    %1686 = vmatprep.subr.mxu0 0.0
    %1687 = vmatpush1.msra.mxu0 %v1646
    %1688 = vmatprep.subr.mxu0 0.0
    %1689 = vmatpush1.msra.mxu0 %v1645
    %1690 = vmatprep.subr.mxu0 0.0
    %1691 = vmatpush1.msra.mxu0 %v1644
    %1692 = vmatprep.subr.mxu0 0.0
    %1693 = vmatpush2.msra.mxu0 0.0
    %1694 = vmatprep.subr.mxu0 0.0
    %1695 = vmatpush2.msra.mxu0 0.0
    %1696 = vmatprep.subr.mxu0 0.0
    %1697 = vmatpush2.msra.mxu0 0.0
    %1698 = vmatprep.subr.mxu0 0.0
    %1699 = vmatpush2.msra.mxu0 0.0
    %1700 = vmatprep.subr.mxu0 0.0
    %1701 = vmatpush2.msra.mxu0 0.0
    %1702 = vmatprep.subr.mxu0 0.0
    %1703 = vmatpush2.msra.mxu0 0.0
    %1704 = vmatprep.subr.mxu0 0.0
    %1705 = vmatpush2.msra.mxu0 0.0
    %1706 = vmatprep.subr.mxu0 0.0
    %1707 = vmatpush2.msra.mxu0 0.0
    %1708 = vmatprep.subr.mxu0 0.0
    %1709 = vmatpush2.msra.mxu0 0.0
    %1710 = vmatprep.subr.mxu0 0.0
    %1711 = vmatpush2.msra.mxu0 0.0
    %1712 = vmatprep.subr.mxu0 0.0
    %1713 = vmatpush2.msra.mxu0 0.0
    %1714 = vmatprep.subr.mxu0 0.0
    %1715 = vmatpush2.msra.mxu0 0.0
    %1716 = vmatprep.subr.mxu0 0.0
    %1717 = vmatpush2.msra.mxu0 0.0
    %1718 = vmatprep.subr.mxu0 0.0
    %1719 = vmatpush2.msra.mxu0 0.0
    %1720 = vmatprep.subr.mxu0 0.0
    %1721 = vmatpush2.msra.mxu0 0.0
    %1722 = vmatprep.subr.mxu0 0.0
    %1723 = vmatpush2.msra.mxu0 0.0
    %1724 = vmatprep.mubr.f32.mxu0 0.0
    %1725 = vmatmul.mubr.f32.gmra.mxu0 %v964
    %v1726 = vpop.f32.mrf.mxu0
    %v1727 = vadd.f32 0.0, %v1726
    %v1728 = vpop.f32.mrf.mxu0
    %1729 = vdwg.mxu0
    %v1730 = vadd.f32 %v1641, %v1727
    %v1731 = vld [vmem:[#allocation8 + $0x80] sm:$0xff]
    %v1732 = vld [vmem:[#allocation8 + $0x88] sm:$0xff]
    %v1733 = vld [vmem:[#allocation8 + $0x90] sm:$0xff]
    %v1734 = vld [vmem:[#allocation8 + $0x98] sm:$0xff]
    %v1735 = vld [vmem:[#allocation8 + $0xa0] sm:$0xff]
    %v1736 = vld [vmem:[#allocation8 + $0xa8] sm:$0xff]
    %v1737 = vld [vmem:[#allocation8 + $0xb0] sm:$0xff]
    %v1738 = vld [vmem:[#allocation8 + $0xb8] sm:$0xff]
    %v1739 = vld [vmem:[#allocation8 + $0xc0] sm:$0xff]
    %v1740 = vld [vmem:[#allocation8 + $0xc8] sm:$0xff]
    %v1741 = vld [vmem:[#allocation8 + $0xd0] sm:$0xff]
    %v1742 = vld [vmem:[#allocation8 + $0xd8] sm:$0xff]
    %v1743 = vld [vmem:[#allocation8 + $0xe0] sm:$0xff]
    %v1744 = vld [vmem:[#allocation8 + $0xe8] sm:$0xff]
    %v1745 = vld [vmem:[#allocation8 + $0xf0] sm:$0xff]
    %v1746 = vld [vmem:[#allocation8 + $0xf8] sm:$0xff]
    %v1748 = vrot.slane %v964, 2
    %1750 = vmatprep.subr.mxu0 0.0
    %1751 = vmatpush1.msra.mxu0 %v1746
    %1752 = vmatprep.subr.mxu0 0.0
    %1753 = vmatpush1.msra.mxu0 %v1745
    %1754 = vmatprep.subr.mxu0 0.0
    %1755 = vmatpush1.msra.mxu0 %v1744
    %1756 = vmatprep.subr.mxu0 0.0
    %1757 = vmatpush1.msra.mxu0 %v1743
    %1758 = vmatprep.subr.mxu0 0.0
    %1759 = vmatpush1.msra.mxu0 %v1742
    %1760 = vmatprep.subr.mxu0 0.0
    %1761 = vmatpush1.msra.mxu0 %v1741
    %1762 = vmatprep.subr.mxu0 0.0
    %1763 = vmatpush1.msra.mxu0 %v1740
    %1764 = vmatprep.subr.mxu0 0.0
    %1765 = vmatpush1.msra.mxu0 %v1739
    %1766 = vmatprep.subr.mxu0 0.0
    %1767 = vmatpush1.msra.mxu0 %v1738
    %1768 = vmatprep.subr.mxu0 0.0
    %1769 = vmatpush1.msra.mxu0 %v1737
    %1770 = vmatprep.subr.mxu0 0.0
    %1771 = vmatpush1.msra.mxu0 %v1736
    %1772 = vmatprep.subr.mxu0 0.0
    %1773 = vmatpush1.msra.mxu0 %v1735
    %1774 = vmatprep.subr.mxu0 0.0
    %1775 = vmatpush1.msra.mxu0 %v1734
    %1776 = vmatprep.subr.mxu0 0.0
    %1777 = vmatpush1.msra.mxu0 %v1733
    %1778 = vmatprep.subr.mxu0 0.0
    %1779 = vmatpush1.msra.mxu0 %v1732
    %1780 = vmatprep.subr.mxu0 0.0
    %1781 = vmatpush1.msra.mxu0 %v1731
    %1782 = vmatprep.subr.mxu0 0.0
    %1783 = vmatpush2.msra.mxu0 0.0
    %1784 = vmatprep.subr.mxu0 0.0
    %1785 = vmatpush2.msra.mxu0 0.0
    %1786 = vmatprep.subr.mxu0 0.0
    %1787 = vmatpush2.msra.mxu0 0.0
    %1788 = vmatprep.subr.mxu0 0.0
    %1789 = vmatpush2.msra.mxu0 0.0
    %1790 = vmatprep.subr.mxu0 0.0
    %1791 = vmatpush2.msra.mxu0 0.0
    %1792 = vmatprep.subr.mxu0 0.0
    %1793 = vmatpush2.msra.mxu0 0.0
    %1794 = vmatprep.subr.mxu0 0.0
    %1795 = vmatpush2.msra.mxu0 0.0
    %1796 = vmatprep.subr.mxu0 0.0
    %1797 = vmatpush2.msra.mxu0 0.0
    %1798 = vmatprep.subr.mxu0 0.0
    %1799 = vmatpush2.msra.mxu0 0.0
    %1800 = vmatprep.subr.mxu0 0.0
    %1801 = vmatpush2.msra.mxu0 0.0
    %1802 = vmatprep.subr.mxu0 0.0
    %1803 = vmatpush2.msra.mxu0 0.0
    %1804 = vmatprep.subr.mxu0 0.0
    %1805 = vmatpush2.msra.mxu0 0.0
    %1806 = vmatprep.subr.mxu0 0.0
    %1807 = vmatpush2.msra.mxu0 0.0
    %1808 = vmatprep.subr.mxu0 0.0
    %1809 = vmatpush2.msra.mxu0 0.0
    %1810 = vmatprep.subr.mxu0 0.0
    %1811 = vmatpush2.msra.mxu0 0.0
    %1812 = vmatprep.subr.mxu0 0.0
    %1813 = vmatpush2.msra.mxu0 0.0
    %1814 = vmatprep.mubr.f32.mxu0 0.0
    %1815 = vmatmul.mubr.f32.gmra.mxu0 %v1748
    %v1816 = vpop.f32.mrf.mxu0
    %v1817 = vadd.f32 0.0, %v1816
    %v1818 = vpop.f32.mrf.mxu0
    %1819 = vdwg.mxu0
    %v1820 = vadd.f32 %v1730, %v1817
    %v1821 = vld [vmem:[#allocation8 + $0x100] sm:$0xff]
    %v1822 = vld [vmem:[#allocation8 + $0x108] sm:$0xff]
    %v1823 = vld [vmem:[#allocation8 + $0x110] sm:$0xff]
    %v1824 = vld [vmem:[#allocation8 + $0x118] sm:$0xff]
    %v1825 = vld [vmem:[#allocation8 + $0x120] sm:$0xff]
    %v1826 = vld [vmem:[#allocation8 + $0x128] sm:$0xff]
    %v1827 = vld [vmem:[#allocation8 + $0x130] sm:$0xff]
    %v1828 = vld [vmem:[#allocation8 + $0x138] sm:$0xff]
    %v1829 = vld [vmem:[#allocation8 + $0x140] sm:$0xff]
    %v1830 = vld [vmem:[#allocation8 + $0x148] sm:$0xff]
    %v1831 = vld [vmem:[#allocation8 + $0x150] sm:$0xff]
    %v1832 = vld [vmem:[#allocation8 + $0x158] sm:$0xff]
    %v1833 = vld [vmem:[#allocation8 + $0x160] sm:$0xff]
    %v1834 = vld [vmem:[#allocation8 + $0x168] sm:$0xff]
    %v1835 = vld [vmem:[#allocation8 + $0x170] sm:$0xff]
    %v1836 = vld [vmem:[#allocation8 + $0x178] sm:$0xff]
    %v1837 = vrot.slane %v964, 4
    %1839 = vmatprep.subr.mxu0 0.0
    %1840 = vmatpush1.msra.mxu0 %v1836
    %1841 = vmatprep.subr.mxu0 0.0
    %1842 = vmatpush1.msra.mxu0 %v1835
    %1843 = vmatprep.subr.mxu0 0.0
    %1844 = vmatpush1.msra.mxu0 %v1834
    %1845 = vmatprep.subr.mxu0 0.0
    %1846 = vmatpush1.msra.mxu0 %v1833
    %1847 = vmatprep.subr.mxu0 0.0
    %1848 = vmatpush1.msra.mxu0 %v1832
    %1849 = vmatprep.subr.mxu0 0.0
    %1850 = vmatpush1.msra.mxu0 %v1831
    %1851 = vmatprep.subr.mxu0 0.0
    %1852 = vmatpush1.msra.mxu0 %v1830
    %1853 = vmatprep.subr.mxu0 0.0
    %1854 = vmatpush1.msra.mxu0 %v1829
    %1855 = vmatprep.subr.mxu0 0.0
    %1856 = vmatpush1.msra.mxu0 %v1828
    %1857 = vmatprep.subr.mxu0 0.0
    %1858 = vmatpush1.msra.mxu0 %v1827
    %1859 = vmatprep.subr.mxu0 0.0
    %1860 = vmatpush1.msra.mxu0 %v1826
    %1861 = vmatprep.subr.mxu0 0.0
    %1862 = vmatpush1.msra.mxu0 %v1825
    %1863 = vmatprep.subr.mxu0 0.0
    %1864 = vmatpush1.msra.mxu0 %v1824
    %1865 = vmatprep.subr.mxu0 0.0
    %1866 = vmatpush1.msra.mxu0 %v1823
    %1867 = vmatprep.subr.mxu0 0.0
    %1868 = vmatpush1.msra.mxu0 %v1822
    %1869 = vmatprep.subr.mxu0 0.0
    %1870 = vmatpush1.msra.mxu0 %v1821
    %1871 = vmatprep.subr.mxu0 0.0
    %1872 = vmatpush2.msra.mxu0 0.0
    %1873 = vmatprep.subr.mxu0 0.0
    %1874 = vmatpush2.msra.mxu0 0.0
    %1875 = vmatprep.subr.mxu0 0.0
    %1876 = vmatpush2.msra.mxu0 0.0
    %1877 = vmatprep.subr.mxu0 0.0
    %1878 = vmatpush2.msra.mxu0 0.0
    %1879 = vmatprep.subr.mxu0 0.0
    %1880 = vmatpush2.msra.mxu0 0.0
    %1881 = vmatprep.subr.mxu0 0.0
    %1882 = vmatpush2.msra.mxu0 0.0
    %1883 = vmatprep.subr.mxu0 0.0
    %1884 = vmatpush2.msra.mxu0 0.0
    %1885 = vmatprep.subr.mxu0 0.0
    %1886 = vmatpush2.msra.mxu0 0.0
    %1887 = vmatprep.subr.mxu0 0.0
    %1888 = vmatpush2.msra.mxu0 0.0
    %1889 = vmatprep.subr.mxu0 0.0
    %1890 = vmatpush2.msra.mxu0 0.0
    %1891 = vmatprep.subr.mxu0 0.0
    %1892 = vmatpush2.msra.mxu0 0.0
    %1893 = vmatprep.subr.mxu0 0.0
    %1894 = vmatpush2.msra.mxu0 0.0
    %1895 = vmatprep.subr.mxu0 0.0
    %1896 = vmatpush2.msra.mxu0 0.0
    %1897 = vmatprep.subr.mxu0 0.0
    %1898 = vmatpush2.msra.mxu0 0.0
    %1899 = vmatprep.subr.mxu0 0.0
    %1900 = vmatpush2.msra.mxu0 0.0
    %1901 = vmatprep.subr.mxu0 0.0
    %1902 = vmatpush2.msra.mxu0 0.0
    %1903 = vmatprep.mubr.f32.mxu0 0.0
    %1904 = vmatmul.mubr.f32.gmra.mxu0 %v1837
    %v1905 = vpop.f32.mrf.mxu0
    %v1906 = vadd.f32 0.0, %v1905
    %v1907 = vpop.f32.mrf.mxu0
    %1908 = vdwg.mxu0
    %v1909 = vadd.f32 %v1820, %v1906
    %v1910 = vld [vmem:[#allocation8 + $0x180] sm:$0xff]
    %v1911 = vld [vmem:[#allocation8 + $0x188] sm:$0xff]
    %v1912 = vld [vmem:[#allocation8 + $0x190] sm:$0xff]
    %v1913 = vld [vmem:[#allocation8 + $0x198] sm:$0xff]
    %v1914 = vld [vmem:[#allocation8 + $0x1a0] sm:$0xff]
    %v1915 = vld [vmem:[#allocation8 + $0x1a8] sm:$0xff]
    %v1916 = vld [vmem:[#allocation8 + $0x1b0] sm:$0xff]
    %v1917 = vld [vmem:[#allocation8 + $0x1b8] sm:$0xff]
    %v1918 = vld [vmem:[#allocation8 + $0x1c0] sm:$0xff]
    %v1919 = vld [vmem:[#allocation8 + $0x1c8] sm:$0xff]
    %v1920 = vld [vmem:[#allocation8 + $0x1d0] sm:$0xff]
    %v1921 = vld [vmem:[#allocation8 + $0x1d8] sm:$0xff]
    %v1922 = vld [vmem:[#allocation8 + $0x1e0] sm:$0xff]
    %v1923 = vld [vmem:[#allocation8 + $0x1e8] sm:$0xff]
    %v1924 = vld [vmem:[#allocation8 + $0x1f0] sm:$0xff]
    %v1925 = vld [vmem:[#allocation8 + $0x1f8] sm:$0xff]
    %v1926 = vrot.slane %v964, 6
    %1928 = vmatprep.subr.mxu0 0.0
    %1929 = vmatpush1.msra.mxu0 %v1925
    %1930 = vmatprep.subr.mxu0 0.0
    %1931 = vmatpush1.msra.mxu0 %v1924
    %1932 = vmatprep.subr.mxu0 0.0
    %1933 = vmatpush1.msra.mxu0 %v1923
    %1934 = vmatprep.subr.mxu0 0.0
    %1935 = vmatpush1.msra.mxu0 %v1922
    %1936 = vmatprep.subr.mxu0 0.0
    %1937 = vmatpush1.msra.mxu0 %v1921
    %1938 = vmatprep.subr.mxu0 0.0
    %1939 = vmatpush1.msra.mxu0 %v1920
    %1940 = vmatprep.subr.mxu0 0.0
    %1941 = vmatpush1.msra.mxu0 %v1919
    %1942 = vmatprep.subr.mxu0 0.0
    %1943 = vmatpush1.msra.mxu0 %v1918
    %1944 = vmatprep.subr.mxu0 0.0
    %1945 = vmatpush1.msra.mxu0 %v1917
    %1946 = vmatprep.subr.mxu0 0.0
    %1947 = vmatpush1.msra.mxu0 %v1916
    %1948 = vmatprep.subr.mxu0 0.0
    %1949 = vmatpush1.msra.mxu0 %v1915
    %1950 = vmatprep.subr.mxu0 0.0
    %1951 = vmatpush1.msra.mxu0 %v1914
    %1952 = vmatprep.subr.mxu0 0.0
    %1953 = vmatpush1.msra.mxu0 %v1913
    %1954 = vmatprep.subr.mxu0 0.0
    %1955 = vmatpush1.msra.mxu0 %v1912
    %1956 = vmatprep.subr.mxu0 0.0
    %1957 = vmatpush1.msra.mxu0 %v1911
    %1958 = vmatprep.subr.mxu0 0.0
    %1959 = vmatpush1.msra.mxu0 %v1910
    %1960 = vmatprep.subr.mxu0 0.0
    %1961 = vmatpush2.msra.mxu0 0.0
    %1962 = vmatprep.subr.mxu0 0.0
    %1963 = vmatpush2.msra.mxu0 0.0
    %1964 = vmatprep.subr.mxu0 0.0
    %1965 = vmatpush2.msra.mxu0 0.0
    %1966 = vmatprep.subr.mxu0 0.0
    %1967 = vmatpush2.msra.mxu0 0.0
    %1968 = vmatprep.subr.mxu0 0.0
    %1969 = vmatpush2.msra.mxu0 0.0
    %1970 = vmatprep.subr.mxu0 0.0
    %1971 = vmatpush2.msra.mxu0 0.0
    %1972 = vmatprep.subr.mxu0 0.0
    %1973 = vmatpush2.msra.mxu0 0.0
    %1974 = vmatprep.subr.mxu0 0.0
    %1975 = vmatpush2.msra.mxu0 0.0
    %1976 = vmatprep.subr.mxu0 0.0
    %1977 = vmatpush2.msra.mxu0 0.0
    %1978 = vmatprep.subr.mxu0 0.0
    %1979 = vmatpush2.msra.mxu0 0.0
    %1980 = vmatprep.subr.mxu0 0.0
    %1981 = vmatpush2.msra.mxu0 0.0
    %1982 = vmatprep.subr.mxu0 0.0
    %1983 = vmatpush2.msra.mxu0 0.0
    %1984 = vmatprep.subr.mxu0 0.0
    %1985 = vmatpush2.msra.mxu0 0.0
    %1986 = vmatprep.subr.mxu0 0.0
    %1987 = vmatpush2.msra.mxu0 0.0
    %1988 = vmatprep.subr.mxu0 0.0
    %1989 = vmatpush2.msra.mxu0 0.0
    %1990 = vmatprep.subr.mxu0 0.0
    %1991 = vmatpush2.msra.mxu0 0.0
    %1992 = vmatprep.mubr.f32.mxu0 0.0
    %1993 = vmatmul.mubr.f32.gmra.mxu0 %v1926
    %v1994 = vpop.f32.mrf.mxu0
    %v1995 = vadd.f32 0.0, %v1994
    %v1996 = vpop.f32.mrf.mxu0
    %1997 = vdwg.mxu0
    %v1998 = vadd.f32 %v1909, %v1995
    %v1999 = vld [vmem:[#allocation8 + $0x200] sm:$0xff]
    %v2000 = vld [vmem:[#allocation8 + $0x208] sm:$0xff]
    %v2001 = vld [vmem:[#allocation8 + $0x210] sm:$0xff]
    %v2002 = vld [vmem:[#allocation8 + $0x218] sm:$0xff]
    %v2003 = vld [vmem:[#allocation8 + $0x220] sm:$0xff]
    %v2004 = vld [vmem:[#allocation8 + $0x228] sm:$0xff]
    %v2005 = vld [vmem:[#allocation8 + $0x230] sm:$0xff]
    %v2006 = vld [vmem:[#allocation8 + $0x238] sm:$0xff]
    %v2007 = vld [vmem:[#allocation8 + $0x240] sm:$0xff]
    %v2008 = vld [vmem:[#allocation8 + $0x248] sm:$0xff]
    %v2009 = vld [vmem:[#allocation8 + $0x250] sm:$0xff]
    %v2010 = vld [vmem:[#allocation8 + $0x258] sm:$0xff]
    %v2011 = vld [vmem:[#allocation8 + $0x260] sm:$0xff]
    %v2012 = vld [vmem:[#allocation8 + $0x268] sm:$0xff]
    %v2013 = vld [vmem:[#allocation8 + $0x270] sm:$0xff]
    %v2014 = vld [vmem:[#allocation8 + $0x278] sm:$0xff]
    %2015 = vmatprep.subr.mxu0 0.0
    %2016 = vmatpush1.msra.mxu0 %v2014
    %2017 = vmatprep.subr.mxu0 0.0
    %2018 = vmatpush1.msra.mxu0 %v2013
    %2019 = vmatprep.subr.mxu0 0.0
    %2020 = vmatpush1.msra.mxu0 %v2012
    %2021 = vmatprep.subr.mxu0 0.0
    %2022 = vmatpush1.msra.mxu0 %v2011
    %2023 = vmatprep.subr.mxu0 0.0
    %2024 = vmatpush1.msra.mxu0 %v2010
    %2025 = vmatprep.subr.mxu0 0.0
    %2026 = vmatpush1.msra.mxu0 %v2009
    %2027 = vmatprep.subr.mxu0 0.0
    %2028 = vmatpush1.msra.mxu0 %v2008
    %2029 = vmatprep.subr.mxu0 0.0
    %2030 = vmatpush1.msra.mxu0 %v2007
    %2031 = vmatprep.subr.mxu0 0.0
    %2032 = vmatpush1.msra.mxu0 %v2006
    %2033 = vmatprep.subr.mxu0 0.0
    %2034 = vmatpush1.msra.mxu0 %v2005
    %2035 = vmatprep.subr.mxu0 0.0
    %2036 = vmatpush1.msra.mxu0 %v2004
    %2037 = vmatprep.subr.mxu0 0.0
    %2038 = vmatpush1.msra.mxu0 %v2003
    %2039 = vmatprep.subr.mxu0 0.0
    %2040 = vmatpush1.msra.mxu0 %v2002
    %2041 = vmatprep.subr.mxu0 0.0
    %2042 = vmatpush1.msra.mxu0 %v2001
    %2043 = vmatprep.subr.mxu0 0.0
    %2044 = vmatpush1.msra.mxu0 %v2000
    %2045 = vmatprep.subr.mxu0 0.0
    %2046 = vmatpush1.msra.mxu0 %v1999
    %2047 = vmatprep.subr.mxu0 0.0
    %2048 = vmatpush2.msra.mxu0 0.0
    %2049 = vmatprep.subr.mxu0 0.0
    %2050 = vmatpush2.msra.mxu0 0.0
    %2051 = vmatprep.subr.mxu0 0.0
    %2052 = vmatpush2.msra.mxu0 0.0
    %2053 = vmatprep.subr.mxu0 0.0
    %2054 = vmatpush2.msra.mxu0 0.0
    %2055 = vmatprep.subr.mxu0 0.0
    %2056 = vmatpush2.msra.mxu0 0.0
    %2057 = vmatprep.subr.mxu0 0.0
    %2058 = vmatpush2.msra.mxu0 0.0
    %2059 = vmatprep.subr.mxu0 0.0
    %2060 = vmatpush2.msra.mxu0 0.0
    %2061 = vmatprep.subr.mxu0 0.0
    %2062 = vmatpush2.msra.mxu0 0.0
    %2063 = vmatprep.subr.mxu0 0.0
    %2064 = vmatpush2.msra.mxu0 0.0
    %2065 = vmatprep.subr.mxu0 0.0
    %2066 = vmatpush2.msra.mxu0 0.0
    %2067 = vmatprep.subr.mxu0 0.0
    %2068 = vmatpush2.msra.mxu0 0.0
    %2069 = vmatprep.subr.mxu0 0.0
    %2070 = vmatpush2.msra.mxu0 0.0
    %2071 = vmatprep.subr.mxu0 0.0
    %2072 = vmatpush2.msra.mxu0 0.0
    %2073 = vmatprep.subr.mxu0 0.0
    %2074 = vmatpush2.msra.mxu0 0.0
    %2075 = vmatprep.subr.mxu0 0.0
    %2076 = vmatpush2.msra.mxu0 0.0
    %2077 = vmatprep.subr.mxu0 0.0
    %2078 = vmatpush2.msra.mxu0 0.0
    %2079 = vmatprep.mubr.f32.mxu0 0.0
    %2080 = vmatmul.mubr.f32.gmra.mxu0 %v966
    %v2081 = vpop.f32.mrf.mxu0
    %v2082 = vadd.f32 0.0, %v2081
    %v2083 = vpop.f32.mrf.mxu0
    %2084 = vdwg.mxu0
    %v2085 = vadd.f32 %v1998, %v2082
    %v2086 = vld [vmem:[#allocation8 + $0x280] sm:$0xff]
    %v2087 = vld [vmem:[#allocation8 + $0x288] sm:$0xff]
    %v2088 = vld [vmem:[#allocation8 + $0x290] sm:$0xff]
    %v2089 = vld [vmem:[#allocation8 + $0x298] sm:$0xff]
    %v2090 = vld [vmem:[#allocation8 + $0x2a0] sm:$0xff]
    %v2091 = vld [vmem:[#allocation8 + $0x2a8] sm:$0xff]
    %v2092 = vld [vmem:[#allocation8 + $0x2b0] sm:$0xff]
    %v2093 = vld [vmem:[#allocation8 + $0x2b8] sm:$0xff]
    %v2094 = vld [vmem:[#allocation8 + $0x2c0] sm:$0xff]
    %v2095 = vld [vmem:[#allocation8 + $0x2c8] sm:$0xff]
    %v2096 = vld [vmem:[#allocation8 + $0x2d0] sm:$0xff]
    %v2097 = vld [vmem:[#allocation8 + $0x2d8] sm:$0xff]
    %v2098 = vld [vmem:[#allocation8 + $0x2e0] sm:$0xff]
    %v2099 = vld [vmem:[#allocation8 + $0x2e8] sm:$0xff]
    %v2100 = vld [vmem:[#allocation8 + $0x2f0] sm:$0xff]
    %v2101 = vld [vmem:[#allocation8 + $0x2f8] sm:$0xff]
    %v2103 = vrot.slane %v966, 2
    %2105 = vmatprep.subr.mxu0 0.0
    %2106 = vmatpush1.msra.mxu0 %v2101
    %2107 = vmatprep.subr.mxu0 0.0
    %2108 = vmatpush1.msra.mxu0 %v2100
    %2109 = vmatprep.subr.mxu0 0.0
    %2110 = vmatpush1.msra.mxu0 %v2099
    %2111 = vmatprep.subr.mxu0 0.0
    %2112 = vmatpush1.msra.mxu0 %v2098
    %2113 = vmatprep.subr.mxu0 0.0
    %2114 = vmatpush1.msra.mxu0 %v2097
    %2115 = vmatprep.subr.mxu0 0.0
    %2116 = vmatpush1.msra.mxu0 %v2096
    %2117 = vmatprep.subr.mxu0 0.0
    %2118 = vmatpush1.msra.mxu0 %v2095
    %2119 = vmatprep.subr.mxu0 0.0
    %2120 = vmatpush1.msra.mxu0 %v2094
    %2121 = vmatprep.subr.mxu0 0.0
    %2122 = vmatpush1.msra.mxu0 %v2093
    %2123 = vmatprep.subr.mxu0 0.0
    %2124 = vmatpush1.msra.mxu0 %v2092
    %2125 = vmatprep.subr.mxu0 0.0
    %2126 = vmatpush1.msra.mxu0 %v2091
    %2127 = vmatprep.subr.mxu0 0.0
    %2128 = vmatpush1.msra.mxu0 %v2090
    %2129 = vmatprep.subr.mxu0 0.0
    %2130 = vmatpush1.msra.mxu0 %v2089
    %2131 = vmatprep.subr.mxu0 0.0
    %2132 = vmatpush1.msra.mxu0 %v2088
    %2133 = vmatprep.subr.mxu0 0.0
    %2134 = vmatpush1.msra.mxu0 %v2087
    %2135 = vmatprep.subr.mxu0 0.0
    %2136 = vmatpush1.msra.mxu0 %v2086
    %2137 = vmatprep.subr.mxu0 0.0
    %2138 = vmatpush2.msra.mxu0 0.0
    %2139 = vmatprep.subr.mxu0 0.0
    %2140 = vmatpush2.msra.mxu0 0.0
    %2141 = vmatprep.subr.mxu0 0.0
    %2142 = vmatpush2.msra.mxu0 0.0
    %2143 = vmatprep.subr.mxu0 0.0
    %2144 = vmatpush2.msra.mxu0 0.0
    %2145 = vmatprep.subr.mxu0 0.0
    %2146 = vmatpush2.msra.mxu0 0.0
    %2147 = vmatprep.subr.mxu0 0.0
    %2148 = vmatpush2.msra.mxu0 0.0
    %2149 = vmatprep.subr.mxu0 0.0
    %2150 = vmatpush2.msra.mxu0 0.0
    %2151 = vmatprep.subr.mxu0 0.0
    %2152 = vmatpush2.msra.mxu0 0.0
    %2153 = vmatprep.subr.mxu0 0.0
    %2154 = vmatpush2.msra.mxu0 0.0
    %2155 = vmatprep.subr.mxu0 0.0
    %2156 = vmatpush2.msra.mxu0 0.0
    %2157 = vmatprep.subr.mxu0 0.0
    %2158 = vmatpush2.msra.mxu0 0.0
    %2159 = vmatprep.subr.mxu0 0.0
    %2160 = vmatpush2.msra.mxu0 0.0
    %2161 = vmatprep.subr.mxu0 0.0
    %2162 = vmatpush2.msra.mxu0 0.0
    %2163 = vmatprep.subr.mxu0 0.0
    %2164 = vmatpush2.msra.mxu0 0.0
    %2165 = vmatprep.subr.mxu0 0.0
    %2166 = vmatpush2.msra.mxu0 0.0
    %2167 = vmatprep.subr.mxu0 0.0
    %2168 = vmatpush2.msra.mxu0 0.0
    %2169 = vmatprep.mubr.f32.mxu0 0.0
    %2170 = vmatmul.mubr.f32.gmra.mxu0 %v2103
    %v2171 = vpop.f32.mrf.mxu0
    %v2172 = vadd.f32 0.0, %v2171
    %v2173 = vpop.f32.mrf.mxu0
    %2174 = vdwg.mxu0
    %v2175 = vadd.f32 %v2085, %v2172
    %v2176 = vld [vmem:[#allocation8 + $0x300] sm:$0xff]
    %v2177 = vld [vmem:[#allocation8 + $0x308] sm:$0xff]
    %v2178 = vld [vmem:[#allocation8 + $0x310] sm:$0xff]
    %v2179 = vld [vmem:[#allocation8 + $0x318] sm:$0xff]
    %v2180 = vld [vmem:[#allocation8 + $0x320] sm:$0xff]
    %v2181 = vld [vmem:[#allocation8 + $0x328] sm:$0xff]
    %v2182 = vld [vmem:[#allocation8 + $0x330] sm:$0xff]
    %v2183 = vld [vmem:[#allocation8 + $0x338] sm:$0xff]
    %v2184 = vld [vmem:[#allocation8 + $0x340] sm:$0xff]
    %v2185 = vld [vmem:[#allocation8 + $0x348] sm:$0xff]
    %v2186 = vld [vmem:[#allocation8 + $0x350] sm:$0xff]
    %v2187 = vld [vmem:[#allocation8 + $0x358] sm:$0xff]
    %v2188 = vld [vmem:[#allocation8 + $0x360] sm:$0xff]
    %v2189 = vld [vmem:[#allocation8 + $0x368] sm:$0xff]
    %v2190 = vld [vmem:[#allocation8 + $0x370] sm:$0xff]
    %v2191 = vld [vmem:[#allocation8 + $0x378] sm:$0xff]
    %v2192 = vrot.slane %v966, 4
    %2194 = vmatprep.subr.mxu0 0.0
    %2195 = vmatpush1.msra.mxu0 %v2191
    %2196 = vmatprep.subr.mxu0 0.0
    %2197 = vmatpush1.msra.mxu0 %v2190
    %2198 = vmatprep.subr.mxu0 0.0
    %2199 = vmatpush1.msra.mxu0 %v2189
    %2200 = vmatprep.subr.mxu0 0.0
    %2201 = vmatpush1.msra.mxu0 %v2188
    %2202 = vmatprep.subr.mxu0 0.0
    %2203 = vmatpush1.msra.mxu0 %v2187
    %2204 = vmatprep.subr.mxu0 0.0
    %2205 = vmatpush1.msra.mxu0 %v2186
    %2206 = vmatprep.subr.mxu0 0.0
    %2207 = vmatpush1.msra.mxu0 %v2185
    %2208 = vmatprep.subr.mxu0 0.0
    %2209 = vmatpush1.msra.mxu0 %v2184
    %2210 = vmatprep.subr.mxu0 0.0
    %2211 = vmatpush1.msra.mxu0 %v2183
    %2212 = vmatprep.subr.mxu0 0.0
    %2213 = vmatpush1.msra.mxu0 %v2182
    %2214 = vmatprep.subr.mxu0 0.0
    %2215 = vmatpush1.msra.mxu0 %v2181
    %2216 = vmatprep.subr.mxu0 0.0
    %2217 = vmatpush1.msra.mxu0 %v2180
    %2218 = vmatprep.subr.mxu0 0.0
    %2219 = vmatpush1.msra.mxu0 %v2179
    %2220 = vmatprep.subr.mxu0 0.0
    %2221 = vmatpush1.msra.mxu0 %v2178
    %2222 = vmatprep.subr.mxu0 0.0
    %2223 = vmatpush1.msra.mxu0 %v2177
    %2224 = vmatprep.subr.mxu0 0.0
    %2225 = vmatpush1.msra.mxu0 %v2176
    %2226 = vmatprep.subr.mxu0 0.0
    %2227 = vmatpush2.msra.mxu0 0.0
    %2228 = vmatprep.subr.mxu0 0.0
    %2229 = vmatpush2.msra.mxu0 0.0
    %2230 = vmatprep.subr.mxu0 0.0
    %2231 = vmatpush2.msra.mxu0 0.0
    %2232 = vmatprep.subr.mxu0 0.0
    %2233 = vmatpush2.msra.mxu0 0.0
    %2234 = vmatprep.subr.mxu0 0.0
    %2235 = vmatpush2.msra.mxu0 0.0
    %2236 = vmatprep.subr.mxu0 0.0
    %2237 = vmatpush2.msra.mxu0 0.0
    %2238 = vmatprep.subr.mxu0 0.0
    %2239 = vmatpush2.msra.mxu0 0.0
    %2240 = vmatprep.subr.mxu0 0.0
    %2241 = vmatpush2.msra.mxu0 0.0
    %2242 = vmatprep.subr.mxu0 0.0
    %2243 = vmatpush2.msra.mxu0 0.0
    %2244 = vmatprep.subr.mxu0 0.0
    %2245 = vmatpush2.msra.mxu0 0.0
    %2246 = vmatprep.subr.mxu0 0.0
    %2247 = vmatpush2.msra.mxu0 0.0
    %2248 = vmatprep.subr.mxu0 0.0
    %2249 = vmatpush2.msra.mxu0 0.0
    %2250 = vmatprep.subr.mxu0 0.0
    %2251 = vmatpush2.msra.mxu0 0.0
    %2252 = vmatprep.subr.mxu0 0.0
    %2253 = vmatpush2.msra.mxu0 0.0
    %2254 = vmatprep.subr.mxu0 0.0
    %2255 = vmatpush2.msra.mxu0 0.0
    %2256 = vmatprep.subr.mxu0 0.0
    %2257 = vmatpush2.msra.mxu0 0.0
    %2258 = vmatprep.mubr.f32.mxu0 0.0
    %2259 = vmatmul.mubr.f32.gmra.mxu0 %v2192
    %v2260 = vpop.f32.mrf.mxu0
    %v2261 = vadd.f32 0.0, %v2260
    %v2262 = vpop.f32.mrf.mxu0
    %2263 = vdwg.mxu0
    %v2264 = vadd.f32 %v2175, %v2261
    %v2265 = vld [vmem:[#allocation8 + $0x380] sm:$0xff]
    %v2266 = vld [vmem:[#allocation8 + $0x388] sm:$0xff]
    %v2267 = vld [vmem:[#allocation8 + $0x390] sm:$0xff]
    %v2268 = vld [vmem:[#allocation8 + $0x398] sm:$0xff]
    %v2269 = vld [vmem:[#allocation8 + $0x3a0] sm:$0xff]
    %v2270 = vld [vmem:[#allocation8 + $0x3a8] sm:$0xff]
    %v2271 = vld [vmem:[#allocation8 + $0x3b0] sm:$0xff]
    %v2272 = vld [vmem:[#allocation8 + $0x3b8] sm:$0xff]
    %v2273 = vld [vmem:[#allocation8 + $0x3c0] sm:$0xff]
    %v2274 = vld [vmem:[#allocation8 + $0x3c8] sm:$0xff]
    %v2275 = vld [vmem:[#allocation8 + $0x3d0] sm:$0xff]
    %v2276 = vld [vmem:[#allocation8 + $0x3d8] sm:$0xff]
    %v2277 = vld [vmem:[#allocation8 + $0x3e0] sm:$0xff]
    %v2278 = vld [vmem:[#allocation8 + $0x3e8] sm:$0xff]
    %v2279 = vld [vmem:[#allocation8 + $0x3f0] sm:$0xff]
    %v2280 = vld [vmem:[#allocation8 + $0x3f8] sm:$0xff]
    %v2281 = vrot.slane %v966, 6
    %2283 = vmatprep.subr.mxu0 0.0
    %2284 = vmatpush1.msra.mxu0 %v2280
    %2285 = vmatprep.subr.mxu0 0.0
    %2286 = vmatpush1.msra.mxu0 %v2279
    %2287 = vmatprep.subr.mxu0 0.0
    %2288 = vmatpush1.msra.mxu0 %v2278
    %2289 = vmatprep.subr.mxu0 0.0
    %2290 = vmatpush1.msra.mxu0 %v2277
    %2291 = vmatprep.subr.mxu0 0.0
    %2292 = vmatpush1.msra.mxu0 %v2276
    %2293 = vmatprep.subr.mxu0 0.0
    %2294 = vmatpush1.msra.mxu0 %v2275
    %2295 = vmatprep.subr.mxu0 0.0
    %2296 = vmatpush1.msra.mxu0 %v2274
    %2297 = vmatprep.subr.mxu0 0.0
    %2298 = vmatpush1.msra.mxu0 %v2273
    %2299 = vmatprep.subr.mxu0 0.0
    %2300 = vmatpush1.msra.mxu0 %v2272
    %2301 = vmatprep.subr.mxu0 0.0
    %2302 = vmatpush1.msra.mxu0 %v2271
    %2303 = vmatprep.subr.mxu0 0.0
    %2304 = vmatpush1.msra.mxu0 %v2270
    %2305 = vmatprep.subr.mxu0 0.0
    %2306 = vmatpush1.msra.mxu0 %v2269
    %2307 = vmatprep.subr.mxu0 0.0
    %2308 = vmatpush1.msra.mxu0 %v2268
    %2309 = vmatprep.subr.mxu0 0.0
    %2310 = vmatpush1.msra.mxu0 %v2267
    %2311 = vmatprep.subr.mxu0 0.0
    %2312 = vmatpush1.msra.mxu0 %v2266
    %2313 = vmatprep.subr.mxu0 0.0
    %2314 = vmatpush1.msra.mxu0 %v2265
    %2315 = vmatprep.subr.mxu0 0.0
    %2316 = vmatpush2.msra.mxu0 0.0
    %2317 = vmatprep.subr.mxu0 0.0
    %2318 = vmatpush2.msra.mxu0 0.0
    %2319 = vmatprep.subr.mxu0 0.0
    %2320 = vmatpush2.msra.mxu0 0.0
    %2321 = vmatprep.subr.mxu0 0.0
    %2322 = vmatpush2.msra.mxu0 0.0
    %2323 = vmatprep.subr.mxu0 0.0
    %2324 = vmatpush2.msra.mxu0 0.0
    %2325 = vmatprep.subr.mxu0 0.0
    %2326 = vmatpush2.msra.mxu0 0.0
    %2327 = vmatprep.subr.mxu0 0.0
    %2328 = vmatpush2.msra.mxu0 0.0
    %2329 = vmatprep.subr.mxu0 0.0
    %2330 = vmatpush2.msra.mxu0 0.0
    %2331 = vmatprep.subr.mxu0 0.0
    %2332 = vmatpush2.msra.mxu0 0.0
    %2333 = vmatprep.subr.mxu0 0.0
    %2334 = vmatpush2.msra.mxu0 0.0
    %2335 = vmatprep.subr.mxu0 0.0
    %2336 = vmatpush2.msra.mxu0 0.0
    %2337 = vmatprep.subr.mxu0 0.0
    %2338 = vmatpush2.msra.mxu0 0.0
    %2339 = vmatprep.subr.mxu0 0.0
    %2340 = vmatpush2.msra.mxu0 0.0
    %2341 = vmatprep.subr.mxu0 0.0
    %2342 = vmatpush2.msra.mxu0 0.0
    %2343 = vmatprep.subr.mxu0 0.0
    %2344 = vmatpush2.msra.mxu0 0.0
    %2345 = vmatprep.subr.mxu0 0.0
    %2346 = vmatpush2.msra.mxu0 0.0
    %2347 = vmatprep.mubr.f32.mxu0 0.0
    %2348 = vmatmul.mubr.f32.gmra.mxu0 %v2281
    %v2349 = vpop.f32.mrf.mxu0
    %v2350 = vadd.f32 0.0, %v2349
    %v2351 = vpop.f32.mrf.mxu0
    %2352 = vdwg.mxu0
    %v2353 = vadd.f32 %v2264, %v2350
    %v2354 = vld [vmem:[#allocation8 + $0x400] sm:$0xff]
    %v2355 = vld [vmem:[#allocation8 + $0x408] sm:$0xff]
    %v2356 = vld [vmem:[#allocation8 + $0x410] sm:$0xff]
    %v2357 = vld [vmem:[#allocation8 + $0x418] sm:$0xff]
    %v2358 = vld [vmem:[#allocation8 + $0x420] sm:$0xff]
    %v2359 = vld [vmem:[#allocation8 + $0x428] sm:$0xff]
    %v2360 = vld [vmem:[#allocation8 + $0x430] sm:$0xff]
    %v2361 = vld [vmem:[#allocation8 + $0x438] sm:$0xff]
    %v2362 = vld [vmem:[#allocation8 + $0x440] sm:$0xff]
    %v2363 = vld [vmem:[#allocation8 + $0x448] sm:$0xff]
    %v2364 = vld [vmem:[#allocation8 + $0x450] sm:$0xff]
    %v2365 = vld [vmem:[#allocation8 + $0x458] sm:$0xff]
    %v2366 = vld [vmem:[#allocation8 + $0x460] sm:$0xff]
    %v2367 = vld [vmem:[#allocation8 + $0x468] sm:$0xff]
    %v2368 = vld [vmem:[#allocation8 + $0x470] sm:$0xff]
    %v2369 = vld [vmem:[#allocation8 + $0x478] sm:$0xff]
    %2370 = vmatprep.subr.mxu0 0.0
    %2371 = vmatpush1.msra.mxu0 %v2369
    %2372 = vmatprep.subr.mxu0 0.0
    %2373 = vmatpush1.msra.mxu0 %v2368
    %2374 = vmatprep.subr.mxu0 0.0
    %2375 = vmatpush1.msra.mxu0 %v2367
    %2376 = vmatprep.subr.mxu0 0.0
    %2377 = vmatpush1.msra.mxu0 %v2366
    %2378 = vmatprep.subr.mxu0 0.0
    %2379 = vmatpush1.msra.mxu0 %v2365
    %2380 = vmatprep.subr.mxu0 0.0
    %2381 = vmatpush1.msra.mxu0 %v2364
    %2382 = vmatprep.subr.mxu0 0.0
    %2383 = vmatpush1.msra.mxu0 %v2363
    %2384 = vmatprep.subr.mxu0 0.0
    %2385 = vmatpush1.msra.mxu0 %v2362
    %2386 = vmatprep.subr.mxu0 0.0
    %2387 = vmatpush1.msra.mxu0 %v2361
    %2388 = vmatprep.subr.mxu0 0.0
    %2389 = vmatpush1.msra.mxu0 %v2360
    %2390 = vmatprep.subr.mxu0 0.0
    %2391 = vmatpush1.msra.mxu0 %v2359
    %2392 = vmatprep.subr.mxu0 0.0
    %2393 = vmatpush1.msra.mxu0 %v2358
    %2394 = vmatprep.subr.mxu0 0.0
    %2395 = vmatpush1.msra.mxu0 %v2357
    %2396 = vmatprep.subr.mxu0 0.0
    %2397 = vmatpush1.msra.mxu0 %v2356
    %2398 = vmatprep.subr.mxu0 0.0
    %2399 = vmatpush1.msra.mxu0 %v2355
    %2400 = vmatprep.subr.mxu0 0.0
    %2401 = vmatpush1.msra.mxu0 %v2354
    %2402 = vmatprep.subr.mxu0 0.0
    %2403 = vmatpush2.msra.mxu0 0.0
    %2404 = vmatprep.subr.mxu0 0.0
    %2405 = vmatpush2.msra.mxu0 0.0
    %2406 = vmatprep.subr.mxu0 0.0
    %2407 = vmatpush2.msra.mxu0 0.0
    %2408 = vmatprep.subr.mxu0 0.0
    %2409 = vmatpush2.msra.mxu0 0.0
    %2410 = vmatprep.subr.mxu0 0.0
    %2411 = vmatpush2.msra.mxu0 0.0
    %2412 = vmatprep.subr.mxu0 0.0
    %2413 = vmatpush2.msra.mxu0 0.0
    %2414 = vmatprep.subr.mxu0 0.0
    %2415 = vmatpush2.msra.mxu0 0.0
    %2416 = vmatprep.subr.mxu0 0.0
    %2417 = vmatpush2.msra.mxu0 0.0
    %2418 = vmatprep.subr.mxu0 0.0
    %2419 = vmatpush2.msra.mxu0 0.0
    %2420 = vmatprep.subr.mxu0 0.0
    %2421 = vmatpush2.msra.mxu0 0.0
    %2422 = vmatprep.subr.mxu0 0.0
    %2423 = vmatpush2.msra.mxu0 0.0
    %2424 = vmatprep.subr.mxu0 0.0
    %2425 = vmatpush2.msra.mxu0 0.0
    %2426 = vmatprep.subr.mxu0 0.0
    %2427 = vmatpush2.msra.mxu0 0.0
    %2428 = vmatprep.subr.mxu0 0.0
    %2429 = vmatpush2.msra.mxu0 0.0
    %2430 = vmatprep.subr.mxu0 0.0
    %2431 = vmatpush2.msra.mxu0 0.0
    %2432 = vmatprep.subr.mxu0 0.0
    %2433 = vmatpush2.msra.mxu0 0.0
    %2434 = vmatprep.mubr.f32.mxu0 0.0
    %2435 = vmatmul.mubr.f32.gmra.mxu0 %v968
    %v2436 = vpop.f32.mrf.mxu0
    %v2437 = vadd.f32 0.0, %v2436
    %v2438 = vpop.f32.mrf.mxu0
    %2439 = vdwg.mxu0
    %v2440 = vadd.f32 %v2353, %v2437
    %v2441 = vld [vmem:[#allocation8 + $0x480] sm:$0xff]
    %v2442 = vld [vmem:[#allocation8 + $0x488] sm:$0xff]
    %v2443 = vld [vmem:[#allocation8 + $0x490] sm:$0xff]
    %v2444 = vld [vmem:[#allocation8 + $0x498] sm:$0xff]
    %v2445 = vld [vmem:[#allocation8 + $0x4a0] sm:$0xff]
    %v2446 = vld [vmem:[#allocation8 + $0x4a8] sm:$0xff]
    %v2447 = vld [vmem:[#allocation8 + $0x4b0] sm:$0xff]
    %v2448 = vld [vmem:[#allocation8 + $0x4b8] sm:$0xff]
    %v2449 = vld [vmem:[#allocation8 + $0x4c0] sm:$0xff]
    %v2450 = vld [vmem:[#allocation8 + $0x4c8] sm:$0xff]
    %v2451 = vld [vmem:[#allocation8 + $0x4d0] sm:$0xff]
    %v2452 = vld [vmem:[#allocation8 + $0x4d8] sm:$0xff]
    %v2453 = vld [vmem:[#allocation8 + $0x4e0] sm:$0xff]
    %v2454 = vld [vmem:[#allocation8 + $0x4e8] sm:$0xff]
    %v2455 = vld [vmem:[#allocation8 + $0x4f0] sm:$0xff]
    %v2456 = vld [vmem:[#allocation8 + $0x4f8] sm:$0xff]
    %v2458 = vrot.slane %v968, 2
    %2460 = vmatprep.subr.mxu0 0.0
    %2461 = vmatpush1.msra.mxu0 %v2456
    %2462 = vmatprep.subr.mxu0 0.0
    %2463 = vmatpush1.msra.mxu0 %v2455
    %2464 = vmatprep.subr.mxu0 0.0
    %2465 = vmatpush1.msra.mxu0 %v2454
    %2466 = vmatprep.subr.mxu0 0.0
    %2467 = vmatpush1.msra.mxu0 %v2453
    %2468 = vmatprep.subr.mxu0 0.0
    %2469 = vmatpush1.msra.mxu0 %v2452
    %2470 = vmatprep.subr.mxu0 0.0
    %2471 = vmatpush1.msra.mxu0 %v2451
    %2472 = vmatprep.subr.mxu0 0.0
    %2473 = vmatpush1.msra.mxu0 %v2450
    %2474 = vmatprep.subr.mxu0 0.0
    %2475 = vmatpush1.msra.mxu0 %v2449
    %2476 = vmatprep.subr.mxu0 0.0
    %2477 = vmatpush1.msra.mxu0 %v2448
    %2478 = vmatprep.subr.mxu0 0.0
    %2479 = vmatpush1.msra.mxu0 %v2447
    %2480 = vmatprep.subr.mxu0 0.0
    %2481 = vmatpush1.msra.mxu0 %v2446
    %2482 = vmatprep.subr.mxu0 0.0
    %2483 = vmatpush1.msra.mxu0 %v2445
    %2484 = vmatprep.subr.mxu0 0.0
    %2485 = vmatpush1.msra.mxu0 %v2444
    %2486 = vmatprep.subr.mxu0 0.0
    %2487 = vmatpush1.msra.mxu0 %v2443
    %2488 = vmatprep.subr.mxu0 0.0
    %2489 = vmatpush1.msra.mxu0 %v2442
    %2490 = vmatprep.subr.mxu0 0.0
    %2491 = vmatpush1.msra.mxu0 %v2441
    %2492 = vmatprep.subr.mxu0 0.0
    %2493 = vmatpush2.msra.mxu0 0.0
    %2494 = vmatprep.subr.mxu0 0.0
    %2495 = vmatpush2.msra.mxu0 0.0
    %2496 = vmatprep.subr.mxu0 0.0
    %2497 = vmatpush2.msra.mxu0 0.0
    %2498 = vmatprep.subr.mxu0 0.0
    %2499 = vmatpush2.msra.mxu0 0.0
    %2500 = vmatprep.subr.mxu0 0.0
    %2501 = vmatpush2.msra.mxu0 0.0
    %2502 = vmatprep.subr.mxu0 0.0
    %2503 = vmatpush2.msra.mxu0 0.0
    %2504 = vmatprep.subr.mxu0 0.0
    %2505 = vmatpush2.msra.mxu0 0.0
    %2506 = vmatprep.subr.mxu0 0.0
    %2507 = vmatpush2.msra.mxu0 0.0
    %2508 = vmatprep.subr.mxu0 0.0
    %2509 = vmatpush2.msra.mxu0 0.0
    %2510 = vmatprep.subr.mxu0 0.0
    %2511 = vmatpush2.msra.mxu0 0.0
    %2512 = vmatprep.subr.mxu0 0.0
    %2513 = vmatpush2.msra.mxu0 0.0
    %2514 = vmatprep.subr.mxu0 0.0
    %2515 = vmatpush2.msra.mxu0 0.0
    %2516 = vmatprep.subr.mxu0 0.0
    %2517 = vmatpush2.msra.mxu0 0.0
    %2518 = vmatprep.subr.mxu0 0.0
    %2519 = vmatpush2.msra.mxu0 0.0
    %2520 = vmatprep.subr.mxu0 0.0
    %2521 = vmatpush2.msra.mxu0 0.0
    %2522 = vmatprep.subr.mxu0 0.0
    %2523 = vmatpush2.msra.mxu0 0.0
    %2524 = vmatprep.mubr.f32.mxu0 0.0
    %2525 = vmatmul.mubr.f32.gmra.mxu0 %v2458
    %v2526 = vpop.f32.mrf.mxu0
    %v2527 = vadd.f32 0.0, %v2526
    %v2528 = vpop.f32.mrf.mxu0
    %2529 = vdwg.mxu0
    %v2530 = vadd.f32 %v2440, %v2527
    %v2531 = vld [vmem:[#allocation8 + $0x500] sm:$0xff]
    %v2532 = vld [vmem:[#allocation8 + $0x508] sm:$0xff]
    %v2533 = vld [vmem:[#allocation8 + $0x510] sm:$0xff]
    %v2534 = vld [vmem:[#allocation8 + $0x518] sm:$0xff]
    %v2535 = vld [vmem:[#allocation8 + $0x520] sm:$0xff]
    %v2536 = vld [vmem:[#allocation8 + $0x528] sm:$0xff]
    %v2537 = vld [vmem:[#allocation8 + $0x530] sm:$0xff]
    %v2538 = vld [vmem:[#allocation8 + $0x538] sm:$0xff]
    %v2539 = vld [vmem:[#allocation8 + $0x540] sm:$0xff]
    %v2540 = vld [vmem:[#allocation8 + $0x548] sm:$0xff]
    %v2541 = vld [vmem:[#allocation8 + $0x550] sm:$0xff]
    %v2542 = vld [vmem:[#allocation8 + $0x558] sm:$0xff]
    %v2543 = vld [vmem:[#allocation8 + $0x560] sm:$0xff]
    %v2544 = vld [vmem:[#allocation8 + $0x568] sm:$0xff]
    %v2545 = vld [vmem:[#allocation8 + $0x570] sm:$0xff]
    %v2546 = vld [vmem:[#allocation8 + $0x578] sm:$0xff]
    %v2547 = vrot.slane %v968, 4
    %2549 = vmatprep.subr.mxu0 0.0
    %2550 = vmatpush1.msra.mxu0 %v2546
    %2551 = vmatprep.subr.mxu0 0.0
    %2552 = vmatpush1.msra.mxu0 %v2545
    %2553 = vmatprep.subr.mxu0 0.0
    %2554 = vmatpush1.msra.mxu0 %v2544
    %2555 = vmatprep.subr.mxu0 0.0
    %2556 = vmatpush1.msra.mxu0 %v2543
    %2557 = vmatprep.subr.mxu0 0.0
    %2558 = vmatpush1.msra.mxu0 %v2542
    %2559 = vmatprep.subr.mxu0 0.0
    %2560 = vmatpush1.msra.mxu0 %v2541
    %2561 = vmatprep.subr.mxu0 0.0
    %2562 = vmatpush1.msra.mxu0 %v2540
    %2563 = vmatprep.subr.mxu0 0.0
    %2564 = vmatpush1.msra.mxu0 %v2539
    %2565 = vmatprep.subr.mxu0 0.0
    %2566 = vmatpush1.msra.mxu0 %v2538
    %2567 = vmatprep.subr.mxu0 0.0
    %2568 = vmatpush1.msra.mxu0 %v2537
    %2569 = vmatprep.subr.mxu0 0.0
    %2570 = vmatpush1.msra.mxu0 %v2536
    %2571 = vmatprep.subr.mxu0 0.0
    %2572 = vmatpush1.msra.mxu0 %v2535
    %2573 = vmatprep.subr.mxu0 0.0
    %2574 = vmatpush1.msra.mxu0 %v2534
    %2575 = vmatprep.subr.mxu0 0.0
    %2576 = vmatpush1.msra.mxu0 %v2533
    %2577 = vmatprep.subr.mxu0 0.0
    %2578 = vmatpush1.msra.mxu0 %v2532
    %2579 = vmatprep.subr.mxu0 0.0
    %2580 = vmatpush1.msra.mxu0 %v2531
    %2581 = vmatprep.subr.mxu0 0.0
    %2582 = vmatpush2.msra.mxu0 0.0
    %2583 = vmatprep.subr.mxu0 0.0
    %2584 = vmatpush2.msra.mxu0 0.0
    %2585 = vmatprep.subr.mxu0 0.0
    %2586 = vmatpush2.msra.mxu0 0.0
    %2587 = vmatprep.subr.mxu0 0.0
    %2588 = vmatpush2.msra.mxu0 0.0
    %2589 = vmatprep.subr.mxu0 0.0
    %2590 = vmatpush2.msra.mxu0 0.0
    %2591 = vmatprep.subr.mxu0 0.0
    %2592 = vmatpush2.msra.mxu0 0.0
    %2593 = vmatprep.subr.mxu0 0.0
    %2594 = vmatpush2.msra.mxu0 0.0
    %2595 = vmatprep.subr.mxu0 0.0
    %2596 = vmatpush2.msra.mxu0 0.0
    %2597 = vmatprep.subr.mxu0 0.0
    %2598 = vmatpush2.msra.mxu0 0.0
    %2599 = vmatprep.subr.mxu0 0.0
    %2600 = vmatpush2.msra.mxu0 0.0
    %2601 = vmatprep.subr.mxu0 0.0
    %2602 = vmatpush2.msra.mxu0 0.0
    %2603 = vmatprep.subr.mxu0 0.0
    %2604 = vmatpush2.msra.mxu0 0.0
    %2605 = vmatprep.subr.mxu0 0.0
    %2606 = vmatpush2.msra.mxu0 0.0
    %2607 = vmatprep.subr.mxu0 0.0
    %2608 = vmatpush2.msra.mxu0 0.0
    %2609 = vmatprep.subr.mxu0 0.0
    %2610 = vmatpush2.msra.mxu0 0.0
    %2611 = vmatprep.subr.mxu0 0.0
    %2612 = vmatpush2.msra.mxu0 0.0
    %2613 = vmatprep.mubr.f32.mxu0 0.0
    %2614 = vmatmul.mubr.f32.gmra.mxu0 %v2547
    %v2615 = vpop.f32.mrf.mxu0
    %v2616 = vadd.f32 0.0, %v2615
    %v2617 = vpop.f32.mrf.mxu0
    %2618 = vdwg.mxu0
    %v2619 = vadd.f32 %v2530, %v2616
    %v2620 = vld [vmem:[#allocation8 + $0x580] sm:$0xff]
    %v2621 = vld [vmem:[#allocation8 + $0x588] sm:$0xff]
    %v2622 = vld [vmem:[#allocation8 + $0x590] sm:$0xff]
    %v2623 = vld [vmem:[#allocation8 + $0x598] sm:$0xff]
    %v2624 = vld [vmem:[#allocation8 + $0x5a0] sm:$0xff]
    %v2625 = vld [vmem:[#allocation8 + $0x5a8] sm:$0xff]
    %v2626 = vld [vmem:[#allocation8 + $0x5b0] sm:$0xff]
    %v2627 = vld [vmem:[#allocation8 + $0x5b8] sm:$0xff]
    %v2628 = vld [vmem:[#allocation8 + $0x5c0] sm:$0xff]
    %v2629 = vld [vmem:[#allocation8 + $0x5c8] sm:$0xff]
    %v2630 = vld [vmem:[#allocation8 + $0x5d0] sm:$0xff]
    %v2631 = vld [vmem:[#allocation8 + $0x5d8] sm:$0xff]
    %v2632 = vld [vmem:[#allocation8 + $0x5e0] sm:$0xff]
    %v2633 = vld [vmem:[#allocation8 + $0x5e8] sm:$0xff]
    %v2634 = vld [vmem:[#allocation8 + $0x5f0] sm:$0xff]
    %v2635 = vld [vmem:[#allocation8 + $0x5f8] sm:$0xff]
    %v2636 = vrot.slane %v968, 6
    %2638 = vmatprep.subr.mxu0 0.0
    %2639 = vmatpush1.msra.mxu0 %v2635
    %2640 = vmatprep.subr.mxu0 0.0
    %2641 = vmatpush1.msra.mxu0 %v2634
    %2642 = vmatprep.subr.mxu0 0.0
    %2643 = vmatpush1.msra.mxu0 %v2633
    %2644 = vmatprep.subr.mxu0 0.0
    %2645 = vmatpush1.msra.mxu0 %v2632
    %2646 = vmatprep.subr.mxu0 0.0
    %2647 = vmatpush1.msra.mxu0 %v2631
    %2648 = vmatprep.subr.mxu0 0.0
    %2649 = vmatpush1.msra.mxu0 %v2630
    %2650 = vmatprep.subr.mxu0 0.0
    %2651 = vmatpush1.msra.mxu0 %v2629
    %2652 = vmatprep.subr.mxu0 0.0
    %2653 = vmatpush1.msra.mxu0 %v2628
    %2654 = vmatprep.subr.mxu0 0.0
    %2655 = vmatpush1.msra.mxu0 %v2627
    %2656 = vmatprep.subr.mxu0 0.0
    %2657 = vmatpush1.msra.mxu0 %v2626
    %2658 = vmatprep.subr.mxu0 0.0
    %2659 = vmatpush1.msra.mxu0 %v2625
    %2660 = vmatprep.subr.mxu0 0.0
    %2661 = vmatpush1.msra.mxu0 %v2624
    %2662 = vmatprep.subr.mxu0 0.0
    %2663 = vmatpush1.msra.mxu0 %v2623
    %2664 = vmatprep.subr.mxu0 0.0
    %2665 = vmatpush1.msra.mxu0 %v2622
    %2666 = vmatprep.subr.mxu0 0.0
    %2667 = vmatpush1.msra.mxu0 %v2621
    %2668 = vmatprep.subr.mxu0 0.0
    %2669 = vmatpush1.msra.mxu0 %v2620
    %2670 = vmatprep.subr.mxu0 0.0
    %2671 = vmatpush2.msra.mxu0 0.0
    %2672 = vmatprep.subr.mxu0 0.0
    %2673 = vmatpush2.msra.mxu0 0.0
    %2674 = vmatprep.subr.mxu0 0.0
    %2675 = vmatpush2.msra.mxu0 0.0
    %2676 = vmatprep.subr.mxu0 0.0
    %2677 = vmatpush2.msra.mxu0 0.0
    %2678 = vmatprep.subr.mxu0 0.0
    %2679 = vmatpush2.msra.mxu0 0.0
    %2680 = vmatprep.subr.mxu0 0.0
    %2681 = vmatpush2.msra.mxu0 0.0
    %2682 = vmatprep.subr.mxu0 0.0
    %2683 = vmatpush2.msra.mxu0 0.0
    %2684 = vmatprep.subr.mxu0 0.0
    %2685 = vmatpush2.msra.mxu0 0.0
    %2686 = vmatprep.subr.mxu0 0.0
    %2687 = vmatpush2.msra.mxu0 0.0
    %2688 = vmatprep.subr.mxu0 0.0
    %2689 = vmatpush2.msra.mxu0 0.0
    %2690 = vmatprep.subr.mxu0 0.0
    %2691 = vmatpush2.msra.mxu0 0.0
    %2692 = vmatprep.subr.mxu0 0.0
    %2693 = vmatpush2.msra.mxu0 0.0
    %2694 = vmatprep.subr.mxu0 0.0
    %2695 = vmatpush2.msra.mxu0 0.0
    %2696 = vmatprep.subr.mxu0 0.0
    %2697 = vmatpush2.msra.mxu0 0.0
    %2698 = vmatprep.subr.mxu0 0.0
    %2699 = vmatpush2.msra.mxu0 0.0
    %2700 = vmatprep.subr.mxu0 0.0
    %2701 = vmatpush2.msra.mxu0 0.0
    %2702 = vmatprep.mubr.f32.mxu0 0.0
    %2703 = vmatmul.mubr.f32.gmra.mxu0 %v2636
    %v2704 = vpop.f32.mrf.mxu0
    %v2705 = vadd.f32 0.0, %v2704
    %v2706 = vpop.f32.mrf.mxu0
    %2707 = vdwg.mxu0
    %v2708 = vadd.f32 %v2619, %v2705
    %vm2709 = vcmask 123904
    %2710 = vst.msk [vmem:[#allocation17] sm:$0x3] %vm2709, %v2708
    // Predicated region
    $region134: #{forward.1} parent=1 // pred_check
      _
    $region135: #{forward.1} parent=1 // pred_check_branch
      %2712 = sbr.rel (0) target = $region137
    $region136: #{forward.1} parent=1 // pred_region
      %s2714 = ssub.s32 32, 32
      %2715 = vsyncadd [#allocation4], %s2714
      %s2717 = sshll.u32 [#allocation17], 4
      %s2718 = int_to_ptr.vmem [resolvable:$true] %s2717
      %2720 = dma.vmem_to_hbm [thread:$0]  %s2718, 32, %s24, [#allocation4]
    $region137: #{forward.1} parent=1 // pred_fallthru
      _
    // Predicated region
    $region138: #{forward.1} parent=1 // pred_check
      _
    $region139: #{forward.1} parent=1 // pred_check_branch
      %2722 = sbr.rel (0) target = $region141
    $region140: #{forward.1} parent=1 // pred_region
      %2723 = dma.done [#allocation4], 32
    $region141: #{forward.1} parent=1 // pred_fallthru
      _
    %2724 = vsyncpa [#allocation3], 1
    %2725 = vsyncpa [#allocation6], 1
    %2726 = vsyncpa [#allocation9], 1
    %2727 = vsyncpa [#allocation12], 1
    %2728 = vsyncpa [#allocation15], 1
    %2729 = vsyncpa [#allocation4], 1

</llo_original>
